<compile_context>
chip_gen: v5e
topology: v5e:2x2
jax: 0.10.0
libtpu: 0.0.40
codegen_flags: <defaults>
</compile_context>

<pallas_src>
import math

import jax
import jax.numpy as jnp
from jax.experimental import pallas as pl
from jax.experimental.pallas import tpu as pltpu

_INV_SQRT2 = 1.0 / math.sqrt(2.0)


def _gelu_exact(x):
    # PyTorch nn.GELU default: 0.5 * x * (1 + erf(x / sqrt(2))), computed in f32.
    return 0.5 * x * (1.0 + jax.lax.erf(x * _INV_SQRT2))


def mlp_kernel(x_ref, w1_ref, b1_ref, w2_ref, b2_ref, o_ref):
    # Layer 0: Linear(input_dim -> hidden_dim) + GELU.
    # bf16 operands -> native MXU rate; f32 accumulation via preferred_element_type.
    x = x_ref[...].astype(jnp.bfloat16)
    h = jnp.dot(x, w1_ref[...], preferred_element_type=jnp.float32)
    h = _gelu_exact(h + b1_ref[...])
    # Bound the live hidden tile: bf16 before the second matmul (halves vreg /
    # VMEM pressure and feeds the MXU at full rate).
    h = h.astype(jnp.bfloat16)
    # Layer 1: Linear(hidden_dim -> output_dim), no output activation.
    o = jnp.dot(h, w2_ref[...], preferred_element_type=jnp.float32) + b2_ref[...]
    o_ref[...] = o.astype(o_ref.dtype)


def basic_mlp(x, w1, b1, w2, b2, *, batch_tile=256):
    """Forward pass of BasicMLP(input_dim, hidden_dim, output_dim, n_hidden_layers=0).

    x : (B, D_in)   float32
    w1: (D_in, H)   b1: (1, H)
    w2: (H, D_out)  b2: (1, D_out)
    returns (B, D_out) float32
    """
    B, D_in = x.shape
    H = w1.shape[1]
    D_out = w2.shape[1]

    # Weights in bf16 (f32 accumulation in-kernel); biases stay f32.
    w1 = w1.astype(jnp.bfloat16)
    w2 = w2.astype(jnp.bfloat16)

    tb = min(batch_tile, B)
    grid = (pl.cdiv(B, tb),)

    # Weights/biases: constant block index => DMA'd once and resident in VMEM.
    # Single-buffered: the default double buffer is wasted on constant blocks.
    def resident(shape):
        return pl.BlockSpec(
            shape,
            lambda i: (0,) * len(shape),
            pipeline_mode=pl.Buffered(1),
        )

    # Explicit VMEM budget: weights x 1 buffer + padded bias tiles
    #   + 2x double-buffered x/out tiles + hidden (f32 + bf16 copy) headroom.
    bytes_w = (D_in * H + H * D_out) * 2          # bf16, single-buffered
    bytes_b = (8 * H + 8 * D_out) * 4             # f32 bias rows, sublane-padded
    bytes_x = 2 * tb * D_in * 4                   # double-buffered x tiles
    bytes_o = 2 * tb * D_out * 4                  # double-buffered out tiles
    bytes_h = tb * H * (4 + 2)                    # f32 hidden + bf16 copy
    needed = bytes_w + bytes_b + bytes_x + bytes_o + bytes_h
    vmem_limit = int(min(max(2 * needed, 32 << 20), 64 << 20))

    cost = pl.CostEstimate(
        flops=2 * B * (D_in * H + H * D_out),
        transcendentals=B * H,  # erf in GELU
        bytes_accessed=(x.size * 4 + w1.size * 2 + b1.size * 4
                        + w2.size * 2 + b2.size * 4 + B * D_out * 4),
    )

    return pl.pallas_call(
        mlp_kernel,
        out_shape=jax.ShapeDtypeStruct((B, D_out), x.dtype),
        grid_spec=pltpu.PrefetchScalarGridSpec(
            num_scalar_prefetch=0,
            grid=grid,
            in_specs=[
                pl.BlockSpec((tb, D_in), lambda i: (i, 0)),   # x: batch-tiled
                resident((D_in, H)),                          # w1 (bf16)
                resident((1, H)),                             # b1
                resident((H, D_out)),                         # w2 (bf16)
                resident((1, D_out)),                         # b2
            ],
            out_specs=pl.BlockSpec((tb, D_out), lambda i: (i, 0)),
        ),
        compiler_params=pltpu.CompilerParams(
            # Batch tiles are independent -> megacore-shardable on v7x.
            dimension_semantics=("parallel",),
            vmem_limit_bytes=vmem_limit,
        ),
        cost_estimate=cost,
    )(x, w1, b1, w2, b2)


def init_linear_params(key, fan_in, fan_out):
    """Deterministic init mimicking torch.nn.Linear defaults (Kaiming-uniform)."""
    kw, kb = jax.random.split(key)
    bound = 1.0 / math.sqrt(fan_in)
    # Weight stored as (fan_in, fan_out) = transpose of the PyTorch layout.
    w = jax.random.uniform(kw, (fan_in, fan_out), jnp.float32, -bound, bound)
    b = jax.random.uniform(kb, (1, fan_out), jnp.float32, -bound, bound)
    return w, b


if __name__ == "__main__":
    # BasicMLP(input_dim=128, hidden_dim=256, output_dim=128, n_hidden_layers=0)
    # Lane-aligned feature dims (multiples of 128); batch 512 with a 256-row
    # batch tile -> grid=(2,), so v7x's two TensorCores each get one fat tile.
    input_dim, hidden_dim, output_dim = 128, 256, 128
    batch = 512

    key = jax.random.PRNGKey(0)
    kx, k1, k2 = jax.random.split(key, 3)

    x = jax.random.normal(kx, (batch, input_dim), jnp.float32)
    w1, b1 = init_linear_params(k1, input_dim, hidden_dim)
    w2, b2 = init_linear_params(k2, hidden_dim, output_dim)

    out = basic_mlp(x, w1, b1, w2, b2, batch_tile=256)
    out = jax.block_until_ready(out)

    # Pure-f32 JAX reference (exact-erf GELU, matching torch.nn.GELU default).
    # Tolerance loosened vs the f32-only kernel because matmul operands are
    # bf16 (f32 accumulation); expected drift is O(1e-3).
    ref = jax.nn.gelu(x @ w1 + b1, approximate=False) @ w2 + b2
    assert out.shape == (batch, output_dim)
    assert jnp.allclose(out, ref, atol=2e-2, rtol=2e-2), "mismatch vs reference"

    print("KERNEL_OK")
</pallas_src>

<mosaic_0001>
module attributes {stable_mosaic.version = 11 : i64} {
  func.func @mlp_kernel(%arg0: i32, %arg1: memref<256x128xf32, #tpu.memory_space<vmem>>, %arg2: memref<128x256xbf16, #tpu.memory_space<vmem>>, %arg3: memref<1x256xf32, #tpu.memory_space<vmem>>, %arg4: memref<256x128xbf16, #tpu.memory_space<vmem>>, %arg5: memref<1x128xf32, #tpu.memory_space<vmem>>, %arg6: memref<256x128xf32, #tpu.memory_space<vmem>>) attributes {dimension_semantics = [#tpu.dimension_semantics<parallel>], iteration_bounds = array<i64: 2>, scalar_prefetch = 0 : i64, scratch_operands = 0 : i64, tpu.core_type = #tpu.core_type<tc>, window_params = [{transform_indices = @transform_0, window_bounds = array<i64: 256, 128>}, {pipeline_mode = #tpu.pipeline_mode<synchronous>, transform_indices = @transform_1, window_bounds = array<i64: 128, 256>}, {pipeline_mode = #tpu.pipeline_mode<synchronous>, transform_indices = @transform_2, window_bounds = array<i64: 1, 256>}, {pipeline_mode = #tpu.pipeline_mode<synchronous>, transform_indices = @transform_3, window_bounds = array<i64: 256, 128>}, {pipeline_mode = #tpu.pipeline_mode<synchronous>, transform_indices = @transform_4, window_bounds = array<i64: 1, 128>}, {transform_indices = @transform_5, window_bounds = array<i64: 256, 128>}]} {
    %c0 = arith.constant 0 : index
    %c0_0 = arith.constant 0 : index
    %0 = vector.load %arg1[%c0, %c0_0] : memref<256x128xf32, #tpu.memory_space<vmem>>, vector<256x128xf32>
    %1 = arith.truncf %0 : vector<256x128xf32> to vector<256x128xbf16>
    %c0_1 = arith.constant 0 : index
    %c0_2 = arith.constant 0 : index
    %2 = vector.load %arg2[%c0_1, %c0_2] : memref<128x256xbf16, #tpu.memory_space<vmem>>, vector<128x256xbf16>
    %cst = arith.constant dense<0.000000e+00> : vector<256x256xf32>
    %3 = tpu.matmul %1, %2, %cst {dimension_numbers = #tpu.dot_dimension_numbers<[1], [0], [0], [1], [0, 0, 1, 1], [], []>} : vector<256x128xbf16>, vector<128x256xbf16>, vector<256x256xf32> -> vector<256x256xf32>
    %c0_3 = arith.constant 0 : index
    %c0_4 = arith.constant 0 : index
    %4 = vector.load %arg3[%c0_3, %c0_4] : memref<1x256xf32, #tpu.memory_space<vmem>>, vector<1x256xf32>
    %5 = vector.broadcast %4 : vector<1x256xf32> to vector<256x256xf32>
    %6 = arith.addf %3, %5 : vector<256x256xf32>
    %cst_5 = arith.constant 5.000000e-01 : f32
    %7 = vector.broadcast %cst_5 : f32 to vector<256x256xf32>
    %8 = arith.mulf %7, %6 : vector<256x256xf32>
    %cst_6 = arith.constant 0.707106769 : f32
    %9 = vector.broadcast %cst_6 : f32 to vector<256x256xf32>
    %10 = arith.mulf %6, %9 : vector<256x256xf32>
    %11 = math.erf %10 : vector<256x256xf32>
    %cst_7 = arith.constant 1.000000e+00 : f32
    %12 = vector.broadcast %cst_7 : f32 to vector<256x256xf32>
    %13 = arith.addf %12, %11 : vector<256x256xf32>
    %14 = arith.mulf %8, %13 : vector<256x256xf32>
    %15 = arith.truncf %14 : vector<256x256xf32> to vector<256x256xbf16>
    %c0_8 = arith.constant 0 : index
    %c0_9 = arith.constant 0 : index
    %16 = vector.load %arg4[%c0_8, %c0_9] : memref<256x128xbf16, #tpu.memory_space<vmem>>, vector<256x128xbf16>
    %cst_10 = arith.constant dense<0.000000e+00> : vector<256x128xf32>
    %17 = tpu.matmul %15, %16, %cst_10 {dimension_numbers = #tpu.dot_dimension_numbers<[1], [0], [0], [1], [0, 0, 1, 1], [], []>} : vector<256x256xbf16>, vector<256x128xbf16>, vector<256x128xf32> -> vector<256x128xf32>
    %c0_11 = arith.constant 0 : index
    %c0_12 = arith.constant 0 : index
    %18 = vector.load %arg5[%c0_11, %c0_12] : memref<1x128xf32, #tpu.memory_space<vmem>>, vector<1x128xf32>
    %19 = vector.broadcast %18 : vector<1x128xf32> to vector<256x128xf32>
    %20 = arith.addf %17, %19 : vector<256x128xf32>
    %c0_13 = arith.constant 0 : index
    %c0_14 = arith.constant 0 : index
    %21 = vector.load %arg6[%c0_13, %c0_14] : memref<256x128xf32, #tpu.memory_space<vmem>>, vector<256x128xf32>
    tpu.vector_store %arg6[%c0_13, %c0_14], %20 {strides = array<i32>} : memref<256x128xf32, #tpu.memory_space<vmem>>, vector<256x128xf32>,
    return
  }
  func.func @transform_0(%arg0: i32) -> (i32, i32) {
    %c0_i32 = arith.constant 0 : i32
    %c0_i32_0 = arith.constant 0 : i32
    return %arg0, %c0_i32 : i32, i32
  }
  func.func @transform_1(%arg0: i32) -> (i32, i32) {
    %c0_i32 = arith.constant 0 : i32
    %c0_i32_0 = arith.constant 0 : i32
    %c0_i32_1 = arith.constant 0 : i32
    return %c0_i32, %c0_i32_0 : i32, i32
  }
  func.func @transform_2(%arg0: i32) -> (i32, i32) {
    %c0_i32 = arith.constant 0 : i32
    %c0_i32_0 = arith.constant 0 : i32
    %c0_i32_1 = arith.constant 0 : i32
    return %c0_i32, %c0_i32_0 : i32, i32
  }
  func.func @transform_3(%arg0: i32) -> (i32, i32) {
    %c0_i32 = arith.constant 0 : i32
    %c0_i32_0 = arith.constant 0 : i32
    %c0_i32_1 = arith.constant 0 : i32
    return %c0_i32, %c0_i32_0 : i32, i32
  }
  func.func @transform_4(%arg0: i32) -> (i32, i32) {
    %c0_i32 = arith.constant 0 : i32
    %c0_i32_0 = arith.constant 0 : i32
    %c0_i32_1 = arith.constant 0 : i32
    return %c0_i32, %c0_i32_0 : i32, i32
  }
  func.func @transform_5(%arg0: i32) -> (i32, i32) {
    %c0_i32 = arith.constant 0 : i32
    %c0_i32_0 = arith.constant 0 : i32
    return %arg0, %c0_i32 : i32, i32
  }
}

</mosaic_0001>

<llo_original>
// kernel: tpu_custom_call.1
$region0: #{tpu_custom_call.1}
  #allocation0 [shape = 'u32[]', space=smem, size = 0x4, offset = 0x4, fixed_abs, tag = 'smem constant byte address 0x4 - core index']
  #allocation1 [shape = 'u32[72,128]{1,0:T(1,128)}', space=vmem, size = 0x9000, scoped, tag = 'internal scratch']
  %s0 = inlined_call_operand.hbm [shape: f32[512,128], index: 0, kind: input, shape index: {}]
  %s1 = inlined_call_operand.hbm [shape: bf16[128,256], index: 1, kind: input, shape index: {}]
  %s2 = inlined_call_operand.hbm [shape: f32[1,256], index: 2, kind: input, shape index: {}]
  %s3 = inlined_call_operand.hbm [shape: bf16[256,128], index: 3, kind: input, shape index: {}]
  %s4 = inlined_call_operand.vmem [shape: f32[1,128], index: 4, kind: input, shape index: {}]
  %s5 = inlined_call_operand.hbm [shape: f32[512,128], index: 5, kind: output, shape index: {}]
  %s6 = sld [smem:[#allocation0]]
  $region69: #{tpu_custom_call.1} parent=0
    _
  %s8 = ssub.s32 1, %s6
  %s9 = scalar_select 0, %s8, %s6
  $region1: #{tpu_custom_call.1} parent=0
    #allocation2 [shape = 'u8[262144]{0}', space=vmem, size = 0x40000, scoped, tag = 'input window, operand 0']
    #allocation3 [shape = 's32[2]{0}', space=sflag, size = 0x8, scoped, tag = 'scoped memory for tpu_custom_call.1']
    #allocation4 [shape = 's32[2]{0}', space=sflag, size = 0x8, scoped, tag = 'scoped memory for tpu_custom_call.1']
    #allocation5 [shape = 'u8[65536]{0}', space=vmem, size = 0x10000, scoped, tag = 'input window, operand 1, single buffered']
    #allocation6 [shape = 's32[1]{0}', space=sflag, size = 0x4, scoped, tag = 'scoped memory for tpu_custom_call.1']
    #allocation7 [shape = 'u8[1024]{0}', space=vmem, size = 0x400, scoped, tag = 'input window, operand 2, single buffered']
    #allocation8 [shape = 'u8[65536]{0}', space=vmem, size = 0x10000, scoped, tag = 'input window, operand 3, single buffered']
    #allocation9 [shape = 's32[1]{0}', space=sflag, size = 0x4, scoped, tag = 'scoped memory for tpu_custom_call.1']
    #allocation10 [shape = 'u8[262144]{0}', space=vmem, size = 0x40000, scoped, tag = 'output window, operand 0']
    %10 = vsyncpa [#allocation3], 0
    %s11 = scalar_lea.sflag [#allocation3], 1
    %12 = vsyncpa %s11, 0
    %13 = vsyncpa [#allocation6], 0
    %14 = vsyncpa [#allocation9], 0
    %15 = vsyncpa [#allocation4], 0
    %s16 = scalar_lea.sflag [#allocation4], 1
    %17 = vsyncpa %s16, 0
    loop: start=0, step=1, limit=4
    $region2: #{tpu_custom_call.1} parent=1 // loop_pre_header
      _
    $region3: #{tpu_custom_call.1} parent=1 // loop_header
      %s19 = sphi 0, %s23
      %p20 = scmp.ge.s32.totalorder %s19, 4
      %s29 = sphi 0, %s31
      %s32 = sphi 0, %s29
      %s33 = sphi 0, %s32
      %s49 = sphi 0, %s33
      %s53 = sphi 0, %s53
      %s55 = sphi 0, %s53
      %s56 = sphi 0, %s55
      %s70 = sphi 0, %s56
      %s74 = sphi 0, %s74
      %s76 = sphi 0, %s74
      %s77 = sphi 0, %s76
      %s91 = sphi 0, %s77
      %s95 = sphi 0, %s95
      %s97 = sphi 0, %s95
      %s98 = sphi 0, %s97
      %s112 = sphi 0, %s98
      %s116 = sphi 0, %s116
      %s118 = sphi 0, %s116
      %s119 = sphi 0, %s118
      %s133 = sphi 0, %s119
      %s139 = sphi 0, %s141
      %s142 = sphi 0, %s139
      %s143 = sphi 0, %s142
      %s159 = sphi 0, %s143
    $region4: #{tpu_custom_call.1} parent=1 // loop_header_branch
      %22 = sbr.rel (%p20) target = $region8
    $region5: #{tpu_custom_call.1} parent=1 // loop_body
      %s24 = ssub.s32 %s19, 1
      %s25 = ssub.s32 %s19, 2
      %s26 = sadd.s32 %s19, 1
      %s27 = ssub.s32 %s19, %s26
      %p28 = scmp.eq.s32.totalorder %s27, 0
      %s30 = sadd.s32 %s29, 1
      %s31 = scalar_select %p28, %s29, %s30
      %p34 = pneg %p28
      %p35 = scmp.eq.s32.totalorder %s19, 1
      %p36 = por %p34, %p35
      %p37 = scmp.ne.s32.totalorder %s29, %s32
      %p38 = scmp.eq.s32.totalorder %s19, 0
      %p39 = por %p37, %p38
      %p40 = scmp.ne.s32.totalorder %s29, %s32
      %p41 = scmp.eq.s32.totalorder %s24, 1
      %p42 = por %p40, %p41
      %p43 = scmp.ne.s32.totalorder %s32, %s33
      %p44 = scmp.eq.s32.totalorder %s24, 0
      %p45 = por %p43, %p44
      %p46 = scmp.ne.s32.totalorder %s32, %s33
      %p47 = scmp.eq.s32.totalorder %s25, 1
      %p48 = por %p46, %p47
      %p50 = scmp.ne.s32.totalorder %s33, %s49
      %p51 = scmp.eq.s32.totalorder %s25, 0
      %p52 = por %p50, %p51
      %s54 = sadd.s32 %s53, 1
      %p57 = scmp.eq.s32.totalorder %s19, 1
      %p58 = scmp.ne.s32.totalorder %s53, %s55
      %p59 = scmp.eq.s32.totalorder %s19, 0
      %p60 = por %p58, %p59
      %p61 = scmp.ne.s32.totalorder %s53, %s55
      %p62 = scmp.eq.s32.totalorder %s24, 1
      %p63 = por %p61, %p62
      %p64 = scmp.ne.s32.totalorder %s55, %s56
      %p65 = scmp.eq.s32.totalorder %s24, 0
      %p66 = por %p64, %p65
      %p67 = scmp.ne.s32.totalorder %s55, %s56
      %p68 = scmp.eq.s32.totalorder %s25, 1
      %p69 = por %p67, %p68
      %p71 = scmp.ne.s32.totalorder %s56, %s70
      %p72 = scmp.eq.s32.totalorder %s25, 0
      %p73 = por %p71, %p72
      %s75 = sadd.s32 %s74, 1
      %p78 = scmp.eq.s32.totalorder %s19, 1
      %p79 = scmp.ne.s32.totalorder %s74, %s76
      %p80 = scmp.eq.s32.totalorder %s19, 0
      %p81 = por %p79, %p80
      %p82 = scmp.ne.s32.totalorder %s74, %s76
      %p83 = scmp.eq.s32.totalorder %s24, 1
      %p84 = por %p82, %p83
      %p85 = scmp.ne.s32.totalorder %s76, %s77
      %p86 = scmp.eq.s32.totalorder %s24, 0
      %p87 = por %p85, %p86
      %p88 = scmp.ne.s32.totalorder %s76, %s77
      %p89 = scmp.eq.s32.totalorder %s25, 1
      %p90 = por %p88, %p89
      %p92 = scmp.ne.s32.totalorder %s77, %s91
      %p93 = scmp.eq.s32.totalorder %s25, 0
      %p94 = por %p92, %p93
      %s96 = sadd.s32 %s95, 1
      %p99 = scmp.eq.s32.totalorder %s19, 1
      %p100 = scmp.ne.s32.totalorder %s95, %s97
      %p101 = scmp.eq.s32.totalorder %s19, 0
      %p102 = por %p100, %p101
      %p103 = scmp.ne.s32.totalorder %s95, %s97
      %p104 = scmp.eq.s32.totalorder %s24, 1
      %p105 = por %p103, %p104
      %p106 = scmp.ne.s32.totalorder %s97, %s98
      %p107 = scmp.eq.s32.totalorder %s24, 0
      %p108 = por %p106, %p107
      %p109 = scmp.ne.s32.totalorder %s97, %s98
      %p110 = scmp.eq.s32.totalorder %s25, 1
      %p111 = por %p109, %p110
      %p113 = scmp.ne.s32.totalorder %s98, %s112
      %p114 = scmp.eq.s32.totalorder %s25, 0
      %p115 = por %p113, %p114
      %s117 = sadd.s32 %s116, 1
      %p120 = scmp.eq.s32.totalorder %s19, 1
      %p121 = scmp.ne.s32.totalorder %s116, %s118
      %p122 = scmp.eq.s32.totalorder %s19, 0
      %p123 = por %p121, %p122
      %p124 = scmp.ne.s32.totalorder %s116, %s118
      %p125 = scmp.eq.s32.totalorder %s24, 1
      %p126 = por %p124, %p125
      %p127 = scmp.ne.s32.totalorder %s118, %s119
      %p128 = scmp.eq.s32.totalorder %s24, 0
      %p129 = por %p127, %p128
      %p130 = scmp.ne.s32.totalorder %s118, %s119
      %p131 = scmp.eq.s32.totalorder %s25, 1
      %p132 = por %p130, %p131
      %p134 = scmp.ne.s32.totalorder %s119, %s133
      %p135 = scmp.eq.s32.totalorder %s25, 0
      %p136 = por %p134, %p135
      %s137 = ssub.s32 %s19, %s26
      %p138 = scmp.eq.s32.totalorder %s137, 0
      %s140 = sadd.s32 %s139, 1
      %s141 = scalar_select %p138, %s139, %s140
      %p144 = pneg %p138
      %p145 = scmp.eq.s32.totalorder %s19, 1
      %p146 = por %p144, %p145
      %p147 = scmp.ne.s32.totalorder %s139, %s142
      %p148 = scmp.eq.s32.totalorder %s19, 0
      %p149 = por %p147, %p148
      %p150 = scmp.ne.s32.totalorder %s139, %s142
      %p151 = scmp.eq.s32.totalorder %s24, 1
      %p152 = por %p150, %p151
      %p153 = scmp.ne.s32.totalorder %s142, %s143
      %p154 = scmp.eq.s32.totalorder %s24, 0
      %p155 = por %p153, %p154
      %p156 = scmp.ne.s32.totalorder %s142, %s143
      %p157 = scmp.eq.s32.totalorder %s25, 1
      %p158 = por %p156, %p157
      %p160 = scmp.ne.s32.totalorder %s143, %s159
      %p161 = scmp.eq.s32.totalorder %s25, 0
      %p162 = por %p160, %p161
      %p163 = scmp.le.s32.totalorder 1, %s19
      %p164 = scmp.lt.s32.totalorder %s19, 3
      %p165 = pnand %p163, %p164
      %p166 = pneg %p165
      // Predicated region
      $region9: #{tpu_custom_call.1} parent=5 // pred_check
        _
      $region10: #{tpu_custom_call.1} parent=5 // pred_check_branch
        %168 = sbr.rel (%p165) target = $region12
      $region11: #{tpu_custom_call.1} parent=5 // pred_region
        %s169 = ssub.s32 %s19, 1
        // Predicated region
        $region13: #{tpu_custom_call.1} parent=11 // pred_check
          %p170 = pneg %p66
        $region14: #{tpu_custom_call.1} parent=11 // pred_check_branch
          %172 = sbr.rel (%p170) target = $region16
        $region15: #{tpu_custom_call.1} parent=11 // pred_region
          %174 = vsyncadd [#allocation6], 0
          %s175 = sshll.u32 %s1, 4
          %s176 = int_to_ptr.hbm [resolvable:$true] %s175
          %s177 = sshll.u32 [#allocation5], 4
          %s178 = int_to_ptr.vmem [resolvable:$true] %s177
          %183 = dma.hbm_to_vmem [thread:$0]  %s176, 2048, %s178, [#allocation6], 128, 128, 8
        $region16: #{tpu_custom_call.1} parent=11 // pred_fallthru
          _
        // Predicated region
        $region17: #{tpu_custom_call.1} parent=11 // pred_check
          %p184 = pneg %p87
        $region18: #{tpu_custom_call.1} parent=11 // pred_check_branch
          %186 = sbr.rel (%p184) target = $region20
        $region19: #{tpu_custom_call.1} parent=11 // pred_region
          %188 = vsyncadd [#allocation6], 0
          %s190 = sshll.u32 %s2, 4
          %s191 = int_to_ptr.hbm [resolvable:$true] %s190
          %s192 = sshll.u32 [#allocation7], 4
          %s193 = int_to_ptr.vmem [resolvable:$true] %s192
          %195 = dma.hbm_to_vmem [thread:$0]  %s191, 32, %s193, [#allocation6]
        $region20: #{tpu_custom_call.1} parent=11 // pred_fallthru
          _
        // Predicated region
        $region21: #{tpu_custom_call.1} parent=11 // pred_check
          %p196 = pneg %p108
        $region22: #{tpu_custom_call.1} parent=11 // pred_check_branch
          %198 = sbr.rel (%p196) target = $region24
        $region23: #{tpu_custom_call.1} parent=11 // pred_region
          %200 = vsyncadd [#allocation9], 0
          %s201 = sshll.u32 %s3, 4
          %s202 = int_to_ptr.hbm [resolvable:$true] %s201
          %s203 = sshll.u32 [#allocation8], 4
          %s204 = int_to_ptr.vmem [resolvable:$true] %s203
          %209 = dma.hbm_to_vmem [thread:$0]  %s202, 2048, %s204, [#allocation9], 64, 64, 4
        $region24: #{tpu_custom_call.1} parent=11 // pred_fallthru
          _
        // Predicated region
        $region25: #{tpu_custom_call.1} parent=11 // pred_check
          %p210 = pneg %p129
        $region26: #{tpu_custom_call.1} parent=11 // pred_check_branch
          %212 = sbr.rel (%p210) target = $region28
        $region27: #{tpu_custom_call.1} parent=11 // pred_region
          _
        $region28: #{tpu_custom_call.1} parent=11 // pred_fallthru
          _
      $region12: #{tpu_custom_call.1} parent=5 // pred_fallthru
        _
      %p213 = scmp.lt.s32.totalorder %s19, 2
      // Predicated region
      $region29: #{tpu_custom_call.1} parent=5 // pred_check
        %p214 = pneg %p213
      $region30: #{tpu_custom_call.1} parent=5 // pred_check_branch
        %216 = sbr.rel (%p214) target = $region32
      $region31: #{tpu_custom_call.1} parent=5 // pred_region
        // Predicated region
        $region33: #{tpu_custom_call.1} parent=31 // pred_check
          %p217 = pneg %p39
        $region34: #{tpu_custom_call.1} parent=31 // pred_check_branch
          %219 = sbr.rel (%p217) target = $region36
        $region35: #{tpu_custom_call.1} parent=31 // pred_region
          %s220 = sand.u32 %s29, 1
          %s221 = scalar_lea.sflag [#allocation3], %s220
          %s222 = sand.u32 %s29, 1
          %s223 = smul.addr %s222, 256
          %s224 = scalar_lea.vmem [#allocation2], %s223
          %s225 = smul.u32 32, %s19
          %227 = vsyncadd %s221, 0
          %s228 = smul.addr %s225, 8
          %s229 = scalar_lea.hbm %s0, %s228
          %s230 = sshll.u32 %s229, 4
          %s231 = int_to_ptr.hbm [resolvable:$true] %s230
          %s232 = sshll.u32 %s224, 4
          %s233 = int_to_ptr.vmem [resolvable:$true] %s232
          %238 = dma.hbm_to_vmem [thread:$0]  %s231, 4096, %s233, %s221, 128, 128, 8
        $region36: #{tpu_custom_call.1} parent=31 // pred_fallthru
          _
      $region32: #{tpu_custom_call.1} parent=5 // pred_fallthru
        _
      %p239 = scmp.le.s32.totalorder 1, %s19
      %p240 = scmp.lt.s32.totalorder %s19, 3
      %p241 = pnand %p239, %p240
      %p242 = pneg %p241
      // Predicated region
      $region37: #{tpu_custom_call.1} parent=5 // pred_check
        _
      $region38: #{tpu_custom_call.1} parent=5 // pred_check_branch
        %244 = sbr.rel (%p241) target = $region40
      $region39: #{tpu_custom_call.1} parent=5 // pred_region
        %s245 = ssub.s32 %s19, 1
        %s246 = sand.u32 %s32, 1
        %s247 = scalar_lea.sflag [#allocation3], %s246
        %s248 = sand.u32 %s32, 1
        %s249 = smul.addr %s248, 256
        %s250 = scalar_lea.vmem [#allocation2], %s249
        // Predicated region
        $region41: #{tpu_custom_call.1} parent=39 // pred_check
          %p251 = pneg %p45
        $region42: #{tpu_custom_call.1} parent=39 // pred_check_branch
          %253 = sbr.rel (%p251) target = $region44
        $region43: #{tpu_custom_call.1} parent=39 // pred_region
          %255 = dma.done %s247, 4096
        $region44: #{tpu_custom_call.1} parent=39 // pred_fallthru
          _
        // Predicated region
        $region45: #{tpu_custom_call.1} parent=39 // pred_check
          %p256 = pneg %p66
        $region46: #{tpu_custom_call.1} parent=39 // pred_check_branch
          %258 = sbr.rel (%p256) target = $region48
        $region47: #{tpu_custom_call.1} parent=39 // pred_region
          %260 = dma.done [#allocation6], 2048
        $region48: #{tpu_custom_call.1} parent=39 // pred_fallthru
          _
        // Predicated region
        $region49: #{tpu_custom_call.1} parent=39 // pred_check
          %p261 = pneg %p87
        $region50: #{tpu_custom_call.1} parent=39 // pred_check_branch
          %263 = sbr.rel (%p261) target = $region52
        $region51: #{tpu_custom_call.1} parent=39 // pred_region
          %265 = dma.done [#allocation6], 32
        $region52: #{tpu_custom_call.1} parent=39 // pred_fallthru
          _
        // Predicated region
        $region53: #{tpu_custom_call.1} parent=39 // pred_check
          %p266 = pneg %p108
        $region54: #{tpu_custom_call.1} parent=39 // pred_check_branch
          %268 = sbr.rel (%p266) target = $region56
        $region55: #{tpu_custom_call.1} parent=39 // pred_region
          %270 = dma.done [#allocation9], 2048
        $region56: #{tpu_custom_call.1} parent=39 // pred_fallthru
          _
        %s271 = sand.u32 %s32, 1
        %s272 = scalar_lea.sflag [#allocation3], %s271
        %s273 = sand.u32 %s32, 1
        %s274 = smul.addr %s273, 256
        %s275 = scalar_lea.vmem [#allocation2], %s274
        %p276 = pneg %p45
        %p277 = pneg %p42
        %p278 = pneg %p66
        %p279 = pneg %p63
        %p280 = pneg %p87
        %p281 = pneg %p84
        %p282 = pneg %p108
        %p283 = pneg %p105
        %p284 = pneg %p129
        %p285 = pneg %p126
        %p286 = pneg %p155
        %p287 = pneg %p152
        %s288 = sand.u32 %s142, 1
        %s289 = scalar_lea.sflag [#allocation4], %s288
        %s290 = sand.u32 %s142, 1
        %s291 = smul.addr %s290, 256
        %s292 = scalar_lea.vmem [#allocation10], %s291
        %s293 = smul.u32 32, %s24
        %s294 = smul.u32 32, %s24
        %v295 = vld [vmem:[%s250] sm:$0xff]
        %v296 = vld [vmem:[%s250 + $0x8] sm:$0xff]
        %v297 = vld [vmem:[%s250 + $0x10] sm:$0xff]
        %v298 = vld [vmem:[%s250 + $0x18] sm:$0xff]
        %v299 = vld [vmem:[%s250 + $0x20] sm:$0xff]
        %v300 = vld [vmem:[%s250 + $0x28] sm:$0xff]
        %v301 = vld [vmem:[%s250 + $0x30] sm:$0xff]
        %v302 = vld [vmem:[%s250 + $0x38] sm:$0xff]
        %v303 = vld [vmem:[%s250 + $0x40] sm:$0xff]
        %v304 = vld [vmem:[%s250 + $0x48] sm:$0xff]
        %v305 = vld [vmem:[%s250 + $0x50] sm:$0xff]
        %v306 = vld [vmem:[%s250 + $0x58] sm:$0xff]
        %v307 = vld [vmem:[%s250 + $0x60] sm:$0xff]
        %v308 = vld [vmem:[%s250 + $0x68] sm:$0xff]
        %v309 = vld [vmem:[%s250 + $0x70] sm:$0xff]
        %v310 = vld [vmem:[%s250 + $0x78] sm:$0xff]
        %v311 = vld [vmem:[%s250 + $0x80] sm:$0xff]
        %v312 = vld [vmem:[%s250 + $0x88] sm:$0xff]
        %v313 = vld [vmem:[%s250 + $0x90] sm:$0xff]
        %v314 = vld [vmem:[%s250 + $0x98] sm:$0xff]
        %v315 = vld [vmem:[%s250 + $0xa0] sm:$0xff]
        %v316 = vld [vmem:[%s250 + $0xa8] sm:$0xff]
        %v317 = vld [vmem:[%s250 + $0xb0] sm:$0xff]
        %v318 = vld [vmem:[%s250 + $0xb8] sm:$0xff]
        %v319 = vld [vmem:[%s250 + $0xc0] sm:$0xff]
        %v320 = vld [vmem:[%s250 + $0xc8] sm:$0xff]
        %v321 = vld [vmem:[%s250 + $0xd0] sm:$0xff]
        %v322 = vld [vmem:[%s250 + $0xd8] sm:$0xff]
        %v323 = vld [vmem:[%s250 + $0xe0] sm:$0xff]
        %v324 = vld [vmem:[%s250 + $0xe8] sm:$0xff]
        %v325 = vld [vmem:[%s250 + $0xf0] sm:$0xff]
        %v326 = vld [vmem:[%s250 + $0xf8] sm:$0xff]
        %v327 = vpack.c.bf16 %v296, %v295
        %v328 = vpack.c.bf16 %v298, %v297
        %v329 = vpack.c.bf16 %v300, %v299
        %v330 = vpack.c.bf16 %v302, %v301
        %v331 = vpack.c.bf16 %v304, %v303
        %v332 = vpack.c.bf16 %v306, %v305
        %v333 = vpack.c.bf16 %v308, %v307
        %v334 = vpack.c.bf16 %v310, %v309
        %v335 = vpack.c.bf16 %v312, %v311
        %v336 = vpack.c.bf16 %v314, %v313
        %v337 = vpack.c.bf16 %v316, %v315
        %v338 = vpack.c.bf16 %v318, %v317
        %v339 = vpack.c.bf16 %v320, %v319
        %v340 = vpack.c.bf16 %v322, %v321
        %v341 = vpack.c.bf16 %v324, %v323
        %v342 = vpack.c.bf16 %v326, %v325
        %v343 = vld [vmem:[#allocation5] sm:$0xff]
        %v344 = vld [vmem:[#allocation5 + $0x8] sm:$0xff]
        %v345 = vld [vmem:[#allocation5 + $0x10] sm:$0xff]
        %v346 = vld [vmem:[#allocation5 + $0x18] sm:$0xff]
        %v347 = vld [vmem:[#allocation5 + $0x20] sm:$0xff]
        %v348 = vld [vmem:[#allocation5 + $0x28] sm:$0xff]
        %v349 = vld [vmem:[#allocation5 + $0x30] sm:$0xff]
        %v350 = vld [vmem:[#allocation5 + $0x38] sm:$0xff]
        %v351 = vld [vmem:[#allocation5 + $0x40] sm:$0xff]
        %v352 = vld [vmem:[#allocation5 + $0x48] sm:$0xff]
        %v353 = vld [vmem:[#allocation5 + $0x50] sm:$0xff]
        %v354 = vld [vmem:[#allocation5 + $0x58] sm:$0xff]
        %v355 = vld [vmem:[#allocation5 + $0x60] sm:$0xff]
        %v356 = vld [vmem:[#allocation5 + $0x68] sm:$0xff]
        %v357 = vld [vmem:[#allocation5 + $0x70] sm:$0xff]
        %v358 = vld [vmem:[#allocation5 + $0x78] sm:$0xff]
        %v359 = vld [vmem:[#allocation7] sm:$0x3]
        %v361 = vperm.slane %v359, 0
        %v362 = vperm.slane %v359, 1
        %v381 = vunpack.c.l.b16 %v343
        %v382 = vunpack.c.h.b16 %v343
        %v383 = vunpack.c.l.b16 %v344
        %v384 = vunpack.c.h.b16 %v344
        %v385 = vunpack.c.l.b16 %v345
        %v386 = vunpack.c.h.b16 %v345
        %v387 = vunpack.c.l.b16 %v346
        %v388 = vunpack.c.h.b16 %v346
        %v389 = vunpack.c.l.b16 %v347
        %v390 = vunpack.c.h.b16 %v347
        %v391 = vunpack.c.l.b16 %v348
        %v392 = vunpack.c.h.b16 %v348
        %v393 = vunpack.c.l.b16 %v349
        %v394 = vunpack.c.h.b16 %v349
        %v395 = vunpack.c.l.b16 %v350
        %v396 = vunpack.c.h.b16 %v350
        %v397 = vunpack.c.l.b16 %v351
        %v398 = vunpack.c.h.b16 %v351
        %v399 = vunpack.c.l.b16 %v352
        %v400 = vunpack.c.h.b16 %v352
        %v401 = vunpack.c.l.b16 %v353
        %v402 = vunpack.c.h.b16 %v353
        %v403 = vunpack.c.l.b16 %v354
        %v404 = vunpack.c.h.b16 %v354
        %v405 = vunpack.c.l.b16 %v355
        %v406 = vunpack.c.h.b16 %v355
        %v407 = vunpack.c.l.b16 %v356
        %v408 = vunpack.c.h.b16 %v356
        %v409 = vunpack.c.l.b16 %v357
        %v410 = vunpack.c.h.b16 %v357
        %v411 = vunpack.c.l.b16 %v358
        %v412 = vunpack.c.h.b16 %v358
        %v413 = vpack.c.b16 %v383, %v381
        %v414 = vpack.c.b16 %v384, %v382
        %v415 = vpack.c.b16 %v387, %v385
        %v416 = vpack.c.b16 %v388, %v386
        %v417 = vpack.c.b16 %v391, %v389
        %v418 = vpack.c.b16 %v392, %v390
        %v419 = vpack.c.b16 %v395, %v393
        %v420 = vpack.c.b16 %v396, %v394
        %v421 = vpack.c.b16 %v399, %v397
        %v422 = vpack.c.b16 %v400, %v398
        %v423 = vpack.c.b16 %v403, %v401
        %v424 = vpack.c.b16 %v404, %v402
        %v425 = vpack.c.b16 %v407, %v405
        %v426 = vpack.c.b16 %v408, %v406
        %v427 = vpack.c.b16 %v411, %v409
        %v428 = vpack.c.b16 %v412, %v410
        %445 = vmatpush.bf16.msra.mxu0 %v427
        %446 = vmatpush.bf16.msra.mxu0 %v425
        %447 = vmatpush.bf16.msra.mxu0 %v423
        %448 = vmatpush.bf16.msra.mxu0 %v421
        %449 = vmatpush.bf16.msra.mxu0 %v419
        %450 = vmatpush.bf16.msra.mxu0 %v417
        %451 = vmatpush.bf16.msra.mxu0 %v415
        %452 = vmatpush.bf16.msra.mxu0 %v413
        %453 = vmatmul.bf16.gmra.mxu0 %v327
        %v454 = vpop.f32.mrf.mxu0
        %v455 = vadd.f32 %v361, %v454
        %v456 = vpop.f32.mrf.mxu0
        %v457 = vadd.f32 %v361, %v456
        %458 = vmatmul.bf16.gmra.mxu0 %v328
        %v459 = vpop.f32.mrf.mxu0
        %v460 = vadd.f32 %v361, %v459
        %v461 = vpop.f32.mrf.mxu0
        %v462 = vadd.f32 %v361, %v461
        %463 = vmatmul.bf16.gmra.mxu0 %v329
        %v464 = vpop.f32.mrf.mxu0
        %v465 = vadd.f32 %v361, %v464
        %v466 = vpop.f32.mrf.mxu0
        %v467 = vadd.f32 %v361, %v466
        %468 = vmatmul.bf16.gmra.mxu0 %v330
        %v469 = vpop.f32.mrf.mxu0
        %v470 = vadd.f32 %v361, %v469
        %v471 = vpop.f32.mrf.mxu0
        %v472 = vadd.f32 %v361, %v471
        %473 = vmatmul.bf16.gmra.mxu0 %v331
        %v474 = vpop.f32.mrf.mxu0
        %v475 = vadd.f32 %v361, %v474
        %v476 = vpop.f32.mrf.mxu0
        %v477 = vadd.f32 %v361, %v476
        %478 = vmatmul.bf16.gmra.mxu0 %v332
        %v479 = vpop.f32.mrf.mxu0
        %v480 = vadd.f32 %v361, %v479
        %v481 = vpop.f32.mrf.mxu0
        %v482 = vadd.f32 %v361, %v481
        %483 = vmatmul.bf16.gmra.mxu0 %v333
        %v484 = vpop.f32.mrf.mxu0
        %v485 = vadd.f32 %v361, %v484
        %v486 = vpop.f32.mrf.mxu0
        %v487 = vadd.f32 %v361, %v486
        %488 = vmatmul.bf16.gmra.mxu0 %v334
        %v489 = vpop.f32.mrf.mxu0
        %v490 = vadd.f32 %v361, %v489
        %v491 = vpop.f32.mrf.mxu0
        %v492 = vadd.f32 %v361, %v491
        %493 = vmatmul.bf16.gmra.mxu0 %v335
        %v494 = vpop.f32.mrf.mxu0
        %v495 = vadd.f32 %v361, %v494
        %v496 = vpop.f32.mrf.mxu0
        %v497 = vadd.f32 %v361, %v496
        %498 = vmatmul.bf16.gmra.mxu0 %v336
        %v499 = vpop.f32.mrf.mxu0
        %v500 = vadd.f32 %v361, %v499
        %v501 = vpop.f32.mrf.mxu0
        %v502 = vadd.f32 %v361, %v501
        %503 = vmatmul.bf16.gmra.mxu0 %v337
        %v504 = vpop.f32.mrf.mxu0
        %v505 = vadd.f32 %v361, %v504
        %v506 = vpop.f32.mrf.mxu0
        %v507 = vadd.f32 %v361, %v506
        %508 = vmatmul.bf16.gmra.mxu0 %v338
        %v509 = vpop.f32.mrf.mxu0
        %v510 = vadd.f32 %v361, %v509
        %v511 = vpop.f32.mrf.mxu0
        %v512 = vadd.f32 %v361, %v511
        %513 = vmatmul.bf16.gmra.mxu0 %v339
        %v514 = vpop.f32.mrf.mxu0
        %v515 = vadd.f32 %v361, %v514
        %v516 = vpop.f32.mrf.mxu0
        %v517 = vadd.f32 %v361, %v516
        %518 = vmatmul.bf16.gmra.mxu0 %v340
        %v519 = vpop.f32.mrf.mxu0
        %v520 = vadd.f32 %v361, %v519
        %v521 = vpop.f32.mrf.mxu0
        %v522 = vadd.f32 %v361, %v521
        %523 = vmatmul.bf16.gmra.mxu0 %v341
        %v524 = vpop.f32.mrf.mxu0
        %v525 = vadd.f32 %v361, %v524
        %v526 = vpop.f32.mrf.mxu0
        %v527 = vadd.f32 %v361, %v526
        %528 = vmatmul.bf16.gmra.mxu0 %v342
        %v529 = vpop.f32.mrf.mxu0
        %v530 = vadd.f32 %v361, %v529
        %v531 = vpop.f32.mrf.mxu0
        %v532 = vadd.f32 %v361, %v531
        %533 = vdwg.mxu0
        %534 = vmatpush.bf16.msra.mxu0 %v428
        %535 = vmatpush.bf16.msra.mxu0 %v426
        %536 = vmatpush.bf16.msra.mxu0 %v424
        %537 = vmatpush.bf16.msra.mxu0 %v422
        %538 = vmatpush.bf16.msra.mxu0 %v420
        %539 = vmatpush.bf16.msra.mxu0 %v418
        %540 = vmatpush.bf16.msra.mxu0 %v416
        %541 = vmatpush.bf16.msra.mxu0 %v414
        %542 = vmatmul.bf16.gmra.mxu0 %v327
        %v543 = vpop.f32.mrf.mxu0
        %v544 = vadd.f32 %v362, %v543
        %v545 = vpop.f32.mrf.mxu0
        %v546 = vadd.f32 %v362, %v545
        %547 = vmatmul.bf16.gmra.mxu0 %v328
        %v548 = vpop.f32.mrf.mxu0
        %v549 = vadd.f32 %v362, %v548
        %v550 = vpop.f32.mrf.mxu0
        %v551 = vadd.f32 %v362, %v550
        %552 = vmatmul.bf16.gmra.mxu0 %v329
        %v553 = vpop.f32.mrf.mxu0
        %v554 = vadd.f32 %v362, %v553
        %v555 = vpop.f32.mrf.mxu0
        %v556 = vadd.f32 %v362, %v555
        %557 = vmatmul.bf16.gmra.mxu0 %v330
        %v558 = vpop.f32.mrf.mxu0
        %v559 = vadd.f32 %v362, %v558
        %v560 = vpop.f32.mrf.mxu0
        %v561 = vadd.f32 %v362, %v560
        %562 = vmatmul.bf16.gmra.mxu0 %v331
        %v563 = vpop.f32.mrf.mxu0
        %v564 = vadd.f32 %v362, %v563
        %v565 = vpop.f32.mrf.mxu0
        %v566 = vadd.f32 %v362, %v565
        %567 = vmatmul.bf16.gmra.mxu0 %v332
        %v568 = vpop.f32.mrf.mxu0
        %v569 = vadd.f32 %v362, %v568
        %v570 = vpop.f32.mrf.mxu0
        %v571 = vadd.f32 %v362, %v570
        %572 = vmatmul.bf16.gmra.mxu0 %v333
        %v573 = vpop.f32.mrf.mxu0
        %v574 = vadd.f32 %v362, %v573
        %v575 = vpop.f32.mrf.mxu0
        %v576 = vadd.f32 %v362, %v575
        %577 = vmatmul.bf16.gmra.mxu0 %v334
        %v578 = vpop.f32.mrf.mxu0
        %v579 = vadd.f32 %v362, %v578
        %v580 = vpop.f32.mrf.mxu0
        %v581 = vadd.f32 %v362, %v580
        %582 = vmatmul.bf16.gmra.mxu0 %v335
        %v583 = vpop.f32.mrf.mxu0
        %v584 = vadd.f32 %v362, %v583
        %v585 = vpop.f32.mrf.mxu0
        %v586 = vadd.f32 %v362, %v585
        %587 = vmatmul.bf16.gmra.mxu0 %v336
        %v588 = vpop.f32.mrf.mxu0
        %v589 = vadd.f32 %v362, %v588
        %v590 = vpop.f32.mrf.mxu0
        %v591 = vadd.f32 %v362, %v590
        %592 = vmatmul.bf16.gmra.mxu0 %v337
        %v593 = vpop.f32.mrf.mxu0
        %v594 = vadd.f32 %v362, %v593
        %v595 = vpop.f32.mrf.mxu0
        %v596 = vadd.f32 %v362, %v595
        %597 = vmatmul.bf16.gmra.mxu0 %v338
        %v598 = vpop.f32.mrf.mxu0
        %v599 = vadd.f32 %v362, %v598
        %v600 = vpop.f32.mrf.mxu0
        %v601 = vadd.f32 %v362, %v600
        %602 = vmatmul.bf16.gmra.mxu0 %v339
        %v603 = vpop.f32.mrf.mxu0
        %v604 = vadd.f32 %v362, %v603
        %v605 = vpop.f32.mrf.mxu0
        %v606 = vadd.f32 %v362, %v605
        %607 = vmatmul.bf16.gmra.mxu0 %v340
        %v608 = vpop.f32.mrf.mxu0
        %v609 = vadd.f32 %v362, %v608
        %v610 = vpop.f32.mrf.mxu0
        %v611 = vadd.f32 %v362, %v610
        %612 = vmatmul.bf16.gmra.mxu0 %v341
        %v613 = vpop.f32.mrf.mxu0
        %v614 = vadd.f32 %v362, %v613
        %v615 = vpop.f32.mrf.mxu0
        %v616 = vadd.f32 %v362, %v615
        %617 = vmatmul.bf16.gmra.mxu0 %v342
        %v618 = vpop.f32.mrf.mxu0
        %v619 = vadd.f32 %v362, %v618
        %v620 = vpop.f32.mrf.mxu0
        %v621 = vadd.f32 %v362, %v620
        %622 = vdwg.mxu0
        %v623 = vmul.f32 %v455, 0.5
        %v624 = vmul.f32 %v544, 0.5
        %v625 = vmul.f32 %v457, 0.5
        %v626 = vmul.f32 %v546, 0.5
        %v627 = vmul.f32 %v460, 0.5
        %v628 = vmul.f32 %v549, 0.5
        %v629 = vmul.f32 %v462, 0.5
        %v630 = vmul.f32 %v551, 0.5
        %v631 = vmul.f32 %v465, 0.5
        %v632 = vmul.f32 %v554, 0.5
        %v633 = vmul.f32 %v467, 0.5
        %v634 = vmul.f32 %v556, 0.5
        %v635 = vmul.f32 %v470, 0.5
        %v636 = vmul.f32 %v559, 0.5
        %v637 = vmul.f32 %v472, 0.5
        %v638 = vmul.f32 %v561, 0.5
        %v639 = vmul.f32 %v475, 0.5
        %v640 = vmul.f32 %v564, 0.5
        %v641 = vmul.f32 %v477, 0.5
        %v642 = vmul.f32 %v566, 0.5
        %v643 = vmul.f32 %v480, 0.5
        %v644 = vmul.f32 %v569, 0.5
        %v645 = vmul.f32 %v482, 0.5
        %v646 = vmul.f32 %v571, 0.5
        %v647 = vmul.f32 %v485, 0.5
        %v648 = vmul.f32 %v574, 0.5
        %v649 = vmul.f32 %v487, 0.5
        %v650 = vmul.f32 %v576, 0.5
        %v651 = vmul.f32 %v490, 0.5
        %v652 = vmul.f32 %v579, 0.5
        %v653 = vmul.f32 %v492, 0.5
        %v654 = vmul.f32 %v581, 0.5
        %v655 = vmul.f32 %v495, 0.5
        %v656 = vmul.f32 %v584, 0.5
        %v657 = vmul.f32 %v497, 0.5
        %v658 = vmul.f32 %v586, 0.5
        %v659 = vmul.f32 %v500, 0.5
        %v660 = vmul.f32 %v589, 0.5
        %v661 = vmul.f32 %v502, 0.5
        %v662 = vmul.f32 %v591, 0.5
        %v663 = vmul.f32 %v505, 0.5
        %v664 = vmul.f32 %v594, 0.5
        %v665 = vmul.f32 %v507, 0.5
        %v666 = vmul.f32 %v596, 0.5
        %v667 = vmul.f32 %v510, 0.5
        %v668 = vmul.f32 %v599, 0.5
        %v669 = vmul.f32 %v512, 0.5
        %v670 = vmul.f32 %v601, 0.5
        %v671 = vmul.f32 %v515, 0.5
        %v672 = vmul.f32 %v604, 0.5
        %v673 = vmul.f32 %v517, 0.5
        %v674 = vmul.f32 %v606, 0.5
        %v675 = vmul.f32 %v520, 0.5
        %v676 = vmul.f32 %v609, 0.5
        %v677 = vmul.f32 %v522, 0.5
        %v678 = vmul.f32 %v611, 0.5
        %v679 = vmul.f32 %v525, 0.5
        %v680 = vmul.f32 %v614, 0.5
        %v681 = vmul.f32 %v527, 0.5
        %v682 = vmul.f32 %v616, 0.5
        %v683 = vmul.f32 %v530, 0.5
        %v684 = vmul.f32 %v619, 0.5
        %v685 = vmul.f32 %v532, 0.5
        %v686 = vmul.f32 %v621, 0.5
        %v687 = vmul.f32 %v455, 0.70710677
        %v688 = vmul.f32 %v544, 0.70710677
        %v689 = vmul.f32 %v457, 0.70710677
        %v690 = vmul.f32 %v546, 0.70710677
        %v691 = vmul.f32 %v460, 0.70710677
        %v692 = vmul.f32 %v549, 0.70710677
        %v693 = vmul.f32 %v462, 0.70710677
        %v694 = vmul.f32 %v551, 0.70710677
        %v695 = vmul.f32 %v465, 0.70710677
        %v696 = vmul.f32 %v554, 0.70710677
        %v697 = vmul.f32 %v467, 0.70710677
        %v698 = vmul.f32 %v556, 0.70710677
        %v699 = vmul.f32 %v470, 0.70710677
        %v700 = vmul.f32 %v559, 0.70710677
        %v701 = vmul.f32 %v472, 0.70710677
        %v702 = vmul.f32 %v561, 0.70710677
        %v703 = vmul.f32 %v475, 0.70710677
        %v704 = vmul.f32 %v564, 0.70710677
        %v705 = vmul.f32 %v477, 0.70710677
        %v706 = vmul.f32 %v566, 0.70710677
        %v707 = vmul.f32 %v480, 0.70710677
        %v708 = vmul.f32 %v569, 0.70710677
        %v709 = vmul.f32 %v482, 0.70710677
        %v710 = vmul.f32 %v571, 0.70710677
        %v711 = vmul.f32 %v485, 0.70710677
        %v712 = vmul.f32 %v574, 0.70710677
        %v713 = vmul.f32 %v487, 0.70710677
        %v714 = vmul.f32 %v576, 0.70710677
        %v715 = vmul.f32 %v490, 0.70710677
        %v716 = vmul.f32 %v579, 0.70710677
        %v717 = vmul.f32 %v492, 0.70710677
        %v718 = vmul.f32 %v581, 0.70710677
        %v719 = vmul.f32 %v495, 0.70710677
        %v720 = vmul.f32 %v584, 0.70710677
        %v721 = vmul.f32 %v497, 0.70710677
        %v722 = vmul.f32 %v586, 0.70710677
        %v723 = vmul.f32 %v500, 0.70710677
        %v724 = vmul.f32 %v589, 0.70710677
        %v725 = vmul.f32 %v502, 0.70710677
        %v726 = vmul.f32 %v591, 0.70710677
        %v727 = vmul.f32 %v505, 0.70710677
        %v728 = vmul.f32 %v594, 0.70710677
        %v729 = vmul.f32 %v507, 0.70710677
        %v730 = vmul.f32 %v596, 0.70710677
        %v731 = vmul.f32 %v510, 0.70710677
        %v732 = vmul.f32 %v599, 0.70710677
        %v733 = vmul.f32 %v512, 0.70710677
        %v734 = vmul.f32 %v601, 0.70710677
        %v735 = vmul.f32 %v515, 0.70710677
        %v736 = vmul.f32 %v604, 0.70710677
        %v737 = vmul.f32 %v517, 0.70710677
        %v738 = vmul.f32 %v606, 0.70710677
        %v739 = vmul.f32 %v520, 0.70710677
        %v740 = vmul.f32 %v609, 0.70710677
        %v741 = vmul.f32 %v522, 0.70710677
        %v742 = vmul.f32 %v611, 0.70710677
        %v743 = vmul.f32 %v525, 0.70710677
        %v744 = vmul.f32 %v614, 0.70710677
        %v745 = vmul.f32 %v527, 0.70710677
        %v746 = vmul.f32 %v616, 0.70710677
        %v747 = vmul.f32 %v530, 0.70710677
        %v748 = vmul.f32 %v619, 0.70710677
        %v749 = vmul.f32 %v532, 0.70710677
        %v750 = vmul.f32 %v621, 0.70710677
        %v751 = vmul.f32 %v687, %v687
        %v752 = vmin.f32 16.0, %v751
        %v753 = vmul.f32 %v752, 2.1237322e-06
        %v754 = vadd.f32 %v753, 0.00028619796
        %v755 = vmul.f32 %v752, %v754
        %v756 = vadd.f32 %v755, 0.0036580483
        %v757 = vmul.f32 %v752, %v756
        %v758 = vadd.f32 %v757, 0.05243302
        %v759 = vmul.f32 %v752, %v758
        %v760 = vadd.f32 %v759, 0.18741608
        %v761 = vmul.f32 %v752, %v760
        %v762 = vadd.f32 %v761, 1.1283791
        %v763 = vmul.f32 %v687, %v762
        %v764 = vmul.f32 %v752, 3.8918573e-05
        %v765 = vadd.f32 %v764, 0.001143296
        %v766 = vmul.f32 %v752, %v765
        %v767 = vadd.f32 %v766, 0.014752088
        %v768 = vmul.f32 %v752, %v767
        %v769 = vadd.f32 %v768, 0.112945676
        %v770 = vmul.f32 %v752, %v769
        %v771 = vadd.f32 %v770, 0.4994258
        %v772 = vmul.f32 %v752, %v771
        %v773 = vadd.f32 %v772, 1.0
        %v774 = vrcp.pop %v773
        %v775 = vmul.f32 %v773, %v774
        %v776 = vsub.f32 1.0, %v775
        %v777 = vmul.f32 %v774, %v776
        %v778 = vadd.f32 %v774, %v777
        %vm779 = vweird.f32 %v773
        %vm780 = vweird.f32 %v774
        %vm781 = vmor %vm779, %vm780
        %v782 = vsel %vm781, %v774, %v778
        %v783 = vand.u32 2147483647, %v773
        %vm784 = vcmp.eq.f32.partialorder %v783, 8.507059e+37
        %v785 = vand.u32 %v773, 2147483648
        %v786 = vor.u32 1.1754944e-38, %v785
        %v787 = vsel %vm784, %v786, %v782
        %v788 = vmul.f32 %v763, %v787
        %v789 = vmin.f32 %v788, 1.0
        %v790 = vmax.f32 %v789, -1.0
        %v791 = vmul.f32 %v688, %v688
        %v792 = vmin.f32 16.0, %v791
        %v793 = vmul.f32 %v792, 2.1237322e-06
        %v794 = vadd.f32 %v793, 0.00028619796
        %v795 = vmul.f32 %v792, %v794
        %v796 = vadd.f32 %v795, 0.0036580483
        %v797 = vmul.f32 %v792, %v796
        %v798 = vadd.f32 %v797, 0.05243302
        %v799 = vmul.f32 %v792, %v798
        %v800 = vadd.f32 %v799, 0.18741608
        %v801 = vmul.f32 %v792, %v800
        %v802 = vadd.f32 %v801, 1.1283791
        %v803 = vmul.f32 %v688, %v802
        %v804 = vmul.f32 %v792, 3.8918573e-05
        %v805 = vadd.f32 %v804, 0.001143296
        %v806 = vmul.f32 %v792, %v805
        %v807 = vadd.f32 %v806, 0.014752088
        %v808 = vmul.f32 %v792, %v807
        %v809 = vadd.f32 %v808, 0.112945676
        %v810 = vmul.f32 %v792, %v809
        %v811 = vadd.f32 %v810, 0.4994258
        %v812 = vmul.f32 %v792, %v811
        %v813 = vadd.f32 %v812, 1.0
        %v814 = vrcp.pop %v813
        %v815 = vmul.f32 %v813, %v814
        %v816 = vsub.f32 1.0, %v815
        %v817 = vmul.f32 %v814, %v816
        %v818 = vadd.f32 %v814, %v817
        %vm819 = vweird.f32 %v813
        %vm820 = vweird.f32 %v814
        %vm821 = vmor %vm819, %vm820
        %v822 = vsel %vm821, %v814, %v818
        %v823 = vand.u32 2147483647, %v813
        %vm824 = vcmp.eq.f32.partialorder %v823, 8.507059e+37
        %v825 = vand.u32 %v813, 2147483648
        %v826 = vor.u32 1.1754944e-38, %v825
        %v827 = vsel %vm824, %v826, %v822
        %v828 = vmul.f32 %v803, %v827
        %v829 = vmin.f32 %v828, 1.0
        %v830 = vmax.f32 %v829, -1.0
        %v831 = vmul.f32 %v689, %v689
        %v832 = vmin.f32 16.0, %v831
        %v833 = vmul.f32 %v832, 2.1237322e-06
        %v834 = vadd.f32 %v833, 0.00028619796
        %v835 = vmul.f32 %v832, %v834
        %v836 = vadd.f32 %v835, 0.0036580483
        %v837 = vmul.f32 %v832, %v836
        %v838 = vadd.f32 %v837, 0.05243302
        %v839 = vmul.f32 %v832, %v838
        %v840 = vadd.f32 %v839, 0.18741608
        %v841 = vmul.f32 %v832, %v840
        %v842 = vadd.f32 %v841, 1.1283791
        %v843 = vmul.f32 %v689, %v842
        %v844 = vmul.f32 %v832, 3.8918573e-05
        %v845 = vadd.f32 %v844, 0.001143296
        %v846 = vmul.f32 %v832, %v845
        %v847 = vadd.f32 %v846, 0.014752088
        %v848 = vmul.f32 %v832, %v847
        %v849 = vadd.f32 %v848, 0.112945676
        %v850 = vmul.f32 %v832, %v849
        %v851 = vadd.f32 %v850, 0.4994258
        %v852 = vmul.f32 %v832, %v851
        %v853 = vadd.f32 %v852, 1.0
        %v854 = vrcp.pop %v853
        %v855 = vmul.f32 %v853, %v854
        %v856 = vsub.f32 1.0, %v855
        %v857 = vmul.f32 %v854, %v856
        %v858 = vadd.f32 %v854, %v857
        %vm859 = vweird.f32 %v853
        %vm860 = vweird.f32 %v854
        %vm861 = vmor %vm859, %vm860
        %v862 = vsel %vm861, %v854, %v858
        %v863 = vand.u32 2147483647, %v853
        %vm864 = vcmp.eq.f32.partialorder %v863, 8.507059e+37
        %v865 = vand.u32 %v853, 2147483648
        %v866 = vor.u32 1.1754944e-38, %v865
        %v867 = vsel %vm864, %v866, %v862
        %v868 = vmul.f32 %v843, %v867
        %v869 = vmin.f32 %v868, 1.0
        %v870 = vmax.f32 %v869, -1.0
        %v871 = vmul.f32 %v690, %v690
        %v872 = vmin.f32 16.0, %v871
        %v873 = vmul.f32 %v872, 2.1237322e-06
        %v874 = vadd.f32 %v873, 0.00028619796
        %v875 = vmul.f32 %v872, %v874
        %v876 = vadd.f32 %v875, 0.0036580483
        %v877 = vmul.f32 %v872, %v876
        %v878 = vadd.f32 %v877, 0.05243302
        %v879 = vmul.f32 %v872, %v878
        %v880 = vadd.f32 %v879, 0.18741608
        %v881 = vmul.f32 %v872, %v880
        %v882 = vadd.f32 %v881, 1.1283791
        %v883 = vmul.f32 %v690, %v882
        %v884 = vmul.f32 %v872, 3.8918573e-05
        %v885 = vadd.f32 %v884, 0.001143296
        %v886 = vmul.f32 %v872, %v885
        %v887 = vadd.f32 %v886, 0.014752088
        %v888 = vmul.f32 %v872, %v887
        %v889 = vadd.f32 %v888, 0.112945676
        %v890 = vmul.f32 %v872, %v889
        %v891 = vadd.f32 %v890, 0.4994258
        %v892 = vmul.f32 %v872, %v891
        %v893 = vadd.f32 %v892, 1.0
        %v894 = vrcp.pop %v893
        %v895 = vmul.f32 %v893, %v894
        %v896 = vsub.f32 1.0, %v895
        %v897 = vmul.f32 %v894, %v896
        %v898 = vadd.f32 %v894, %v897
        %vm899 = vweird.f32 %v893
        %vm900 = vweird.f32 %v894
        %vm901 = vmor %vm899, %vm900
        %v902 = vsel %vm901, %v894, %v898
        %v903 = vand.u32 2147483647, %v893
        %vm904 = vcmp.eq.f32.partialorder %v903, 8.507059e+37
        %v905 = vand.u32 %v893, 2147483648
        %v906 = vor.u32 1.1754944e-38, %v905
        %v907 = vsel %vm904, %v906, %v902
        %v908 = vmul.f32 %v883, %v907
        %v909 = vmin.f32 %v908, 1.0
        %v910 = vmax.f32 %v909, -1.0
        %v911 = vmul.f32 %v691, %v691
        %v912 = vmin.f32 16.0, %v911
        %v913 = vmul.f32 %v912, 2.1237322e-06
        %v914 = vadd.f32 %v913, 0.00028619796
        %v915 = vmul.f32 %v912, %v914
        %v916 = vadd.f32 %v915, 0.0036580483
        %v917 = vmul.f32 %v912, %v916
        %v918 = vadd.f32 %v917, 0.05243302
        %v919 = vmul.f32 %v912, %v918
        %v920 = vadd.f32 %v919, 0.18741608
        %v921 = vmul.f32 %v912, %v920
        %v922 = vadd.f32 %v921, 1.1283791
        %v923 = vmul.f32 %v691, %v922
        %v924 = vmul.f32 %v912, 3.8918573e-05
        %v925 = vadd.f32 %v924, 0.001143296
        %v926 = vmul.f32 %v912, %v925
        %v927 = vadd.f32 %v926, 0.014752088
        %v928 = vmul.f32 %v912, %v927
        %v929 = vadd.f32 %v928, 0.112945676
        %v930 = vmul.f32 %v912, %v929
        %v931 = vadd.f32 %v930, 0.4994258
        %v932 = vmul.f32 %v912, %v931
        %v933 = vadd.f32 %v932, 1.0
        %v934 = vrcp.pop %v933
        %v935 = vmul.f32 %v933, %v934
        %v936 = vsub.f32 1.0, %v935
        %v937 = vmul.f32 %v934, %v936
        %v938 = vadd.f32 %v934, %v937
        %vm939 = vweird.f32 %v933
        %vm940 = vweird.f32 %v934
        %vm941 = vmor %vm939, %vm940
        %v942 = vsel %vm941, %v934, %v938
        %v943 = vand.u32 2147483647, %v933
        %vm944 = vcmp.eq.f32.partialorder %v943, 8.507059e+37
        %v945 = vand.u32 %v933, 2147483648
        %v946 = vor.u32 1.1754944e-38, %v945
        %v947 = vsel %vm944, %v946, %v942
        %v948 = vmul.f32 %v923, %v947
        %v949 = vmin.f32 %v948, 1.0
        %v950 = vmax.f32 %v949, -1.0
        %v951 = vmul.f32 %v692, %v692
        %v952 = vmin.f32 16.0, %v951
        %v953 = vmul.f32 %v952, 2.1237322e-06
        %v954 = vadd.f32 %v953, 0.00028619796
        %v955 = vmul.f32 %v952, %v954
        %v956 = vadd.f32 %v955, 0.0036580483
        %v957 = vmul.f32 %v952, %v956
        %v958 = vadd.f32 %v957, 0.05243302
        %v959 = vmul.f32 %v952, %v958
        %v960 = vadd.f32 %v959, 0.18741608
        %v961 = vmul.f32 %v952, %v960
        %v962 = vadd.f32 %v961, 1.1283791
        %v963 = vmul.f32 %v692, %v962
        %v964 = vmul.f32 %v952, 3.8918573e-05
        %v965 = vadd.f32 %v964, 0.001143296
        %v966 = vmul.f32 %v952, %v965
        %v967 = vadd.f32 %v966, 0.014752088
        %v968 = vmul.f32 %v952, %v967
        %v969 = vadd.f32 %v968, 0.112945676
        %v970 = vmul.f32 %v952, %v969
        %v971 = vadd.f32 %v970, 0.4994258
        %v972 = vmul.f32 %v952, %v971
        %v973 = vadd.f32 %v972, 1.0
        %v974 = vrcp.pop %v973
        %v975 = vmul.f32 %v973, %v974
        %v976 = vsub.f32 1.0, %v975
        %v977 = vmul.f32 %v974, %v976
        %v978 = vadd.f32 %v974, %v977
        %vm979 = vweird.f32 %v973
        %vm980 = vweird.f32 %v974
        %vm981 = vmor %vm979, %vm980
        %v982 = vsel %vm981, %v974, %v978
        %v983 = vand.u32 2147483647, %v973
        %vm984 = vcmp.eq.f32.partialorder %v983, 8.507059e+37
        %v985 = vand.u32 %v973, 2147483648
        %v986 = vor.u32 1.1754944e-38, %v985
        %v987 = vsel %vm984, %v986, %v982
        %v988 = vmul.f32 %v963, %v987
        %v989 = vmin.f32 %v988, 1.0
        %v990 = vmax.f32 %v989, -1.0
        %v991 = vmul.f32 %v693, %v693
        %v992 = vmin.f32 16.0, %v991
        %v993 = vmul.f32 %v992, 2.1237322e-06
        %v994 = vadd.f32 %v993, 0.00028619796
        %v995 = vmul.f32 %v992, %v994
        %v996 = vadd.f32 %v995, 0.0036580483
        %v997 = vmul.f32 %v992, %v996
        %v998 = vadd.f32 %v997, 0.05243302
        %v999 = vmul.f32 %v992, %v998
        %v1000 = vadd.f32 %v999, 0.18741608
        %v1001 = vmul.f32 %v992, %v1000
        %v1002 = vadd.f32 %v1001, 1.1283791
        %v1003 = vmul.f32 %v693, %v1002
        %v1004 = vmul.f32 %v992, 3.8918573e-05
        %v1005 = vadd.f32 %v1004, 0.001143296
        %v1006 = vmul.f32 %v992, %v1005
        %v1007 = vadd.f32 %v1006, 0.014752088
        %v1008 = vmul.f32 %v992, %v1007
        %v1009 = vadd.f32 %v1008, 0.112945676
        %v1010 = vmul.f32 %v992, %v1009
        %v1011 = vadd.f32 %v1010, 0.4994258
        %v1012 = vmul.f32 %v992, %v1011
        %v1013 = vadd.f32 %v1012, 1.0
        %v1014 = vrcp.pop %v1013
        %v1015 = vmul.f32 %v1013, %v1014
        %v1016 = vsub.f32 1.0, %v1015
        %v1017 = vmul.f32 %v1014, %v1016
        %v1018 = vadd.f32 %v1014, %v1017
        %vm1019 = vweird.f32 %v1013
        %vm1020 = vweird.f32 %v1014
        %vm1021 = vmor %vm1019, %vm1020
        %v1022 = vsel %vm1021, %v1014, %v1018
        %v1023 = vand.u32 2147483647, %v1013
        %vm1024 = vcmp.eq.f32.partialorder %v1023, 8.507059e+37
        %v1025 = vand.u32 %v1013, 2147483648
        %v1026 = vor.u32 1.1754944e-38, %v1025
        %v1027 = vsel %vm1024, %v1026, %v1022
        %v1028 = vmul.f32 %v1003, %v1027
        %v1029 = vmin.f32 %v1028, 1.0
        %v1030 = vmax.f32 %v1029, -1.0
        %v1031 = vmul.f32 %v694, %v694
        %v1032 = vmin.f32 16.0, %v1031
        %v1033 = vmul.f32 %v1032, 2.1237322e-06
        %v1034 = vadd.f32 %v1033, 0.00028619796
        %v1035 = vmul.f32 %v1032, %v1034
        %v1036 = vadd.f32 %v1035, 0.0036580483
        %v1037 = vmul.f32 %v1032, %v1036
        %v1038 = vadd.f32 %v1037, 0.05243302
        %v1039 = vmul.f32 %v1032, %v1038
        %v1040 = vadd.f32 %v1039, 0.18741608
        %v1041 = vmul.f32 %v1032, %v1040
        %v1042 = vadd.f32 %v1041, 1.1283791
        %v1043 = vmul.f32 %v694, %v1042
        %v1044 = vmul.f32 %v1032, 3.8918573e-05
        %v1045 = vadd.f32 %v1044, 0.001143296
        %v1046 = vmul.f32 %v1032, %v1045
        %v1047 = vadd.f32 %v1046, 0.014752088
        %v1048 = vmul.f32 %v1032, %v1047
        %v1049 = vadd.f32 %v1048, 0.112945676
        %v1050 = vmul.f32 %v1032, %v1049
        %v1051 = vadd.f32 %v1050, 0.4994258
        %v1052 = vmul.f32 %v1032, %v1051
        %v1053 = vadd.f32 %v1052, 1.0
        %v1054 = vrcp.pop %v1053
        %v1055 = vmul.f32 %v1053, %v1054
        %v1056 = vsub.f32 1.0, %v1055
        %v1057 = vmul.f32 %v1054, %v1056
        %v1058 = vadd.f32 %v1054, %v1057
        %vm1059 = vweird.f32 %v1053
        %vm1060 = vweird.f32 %v1054
        %vm1061 = vmor %vm1059, %vm1060
        %v1062 = vsel %vm1061, %v1054, %v1058
        %v1063 = vand.u32 2147483647, %v1053
        %vm1064 = vcmp.eq.f32.partialorder %v1063, 8.507059e+37
        %v1065 = vand.u32 %v1053, 2147483648
        %v1066 = vor.u32 1.1754944e-38, %v1065
        %v1067 = vsel %vm1064, %v1066, %v1062
        %v1068 = vmul.f32 %v1043, %v1067
        %v1069 = vmin.f32 %v1068, 1.0
        %v1070 = vmax.f32 %v1069, -1.0
        %v1071 = vmul.f32 %v695, %v695
        %v1072 = vmin.f32 16.0, %v1071
        %v1073 = vmul.f32 %v1072, 2.1237322e-06
        %v1074 = vadd.f32 %v1073, 0.00028619796
        %v1075 = vmul.f32 %v1072, %v1074
        %v1076 = vadd.f32 %v1075, 0.0036580483
        %v1077 = vmul.f32 %v1072, %v1076
        %v1078 = vadd.f32 %v1077, 0.05243302
        %v1079 = vmul.f32 %v1072, %v1078
        %v1080 = vadd.f32 %v1079, 0.18741608
        %v1081 = vmul.f32 %v1072, %v1080
        %v1082 = vadd.f32 %v1081, 1.1283791
        %v1083 = vmul.f32 %v695, %v1082
        %v1084 = vmul.f32 %v1072, 3.8918573e-05
        %v1085 = vadd.f32 %v1084, 0.001143296
        %v1086 = vmul.f32 %v1072, %v1085
        %v1087 = vadd.f32 %v1086, 0.014752088
        %v1088 = vmul.f32 %v1072, %v1087
        %v1089 = vadd.f32 %v1088, 0.112945676
        %v1090 = vmul.f32 %v1072, %v1089
        %v1091 = vadd.f32 %v1090, 0.4994258
        %v1092 = vmul.f32 %v1072, %v1091
        %v1093 = vadd.f32 %v1092, 1.0
        %v1094 = vrcp.pop %v1093
        %v1095 = vmul.f32 %v1093, %v1094
        %v1096 = vsub.f32 1.0, %v1095
        %v1097 = vmul.f32 %v1094, %v1096
        %v1098 = vadd.f32 %v1094, %v1097
        %vm1099 = vweird.f32 %v1093
        %vm1100 = vweird.f32 %v1094
        %vm1101 = vmor %vm1099, %vm1100
        %v1102 = vsel %vm1101, %v1094, %v1098
        %v1103 = vand.u32 2147483647, %v1093
        %vm1104 = vcmp.eq.f32.partialorder %v1103, 8.507059e+37
        %v1105 = vand.u32 %v1093, 2147483648
        %v1106 = vor.u32 1.1754944e-38, %v1105
        %v1107 = vsel %vm1104, %v1106, %v1102
        %v1108 = vmul.f32 %v1083, %v1107
        %v1109 = vmin.f32 %v1108, 1.0
        %v1110 = vmax.f32 %v1109, -1.0
        %v1111 = vmul.f32 %v696, %v696
        %v1112 = vmin.f32 16.0, %v1111
        %v1113 = vmul.f32 %v1112, 2.1237322e-06
        %v1114 = vadd.f32 %v1113, 0.00028619796
        %v1115 = vmul.f32 %v1112, %v1114
        %v1116 = vadd.f32 %v1115, 0.0036580483
        %v1117 = vmul.f32 %v1112, %v1116
        %v1118 = vadd.f32 %v1117, 0.05243302
        %v1119 = vmul.f32 %v1112, %v1118
        %v1120 = vadd.f32 %v1119, 0.18741608
        %v1121 = vmul.f32 %v1112, %v1120
        %v1122 = vadd.f32 %v1121, 1.1283791
        %v1123 = vmul.f32 %v696, %v1122
        %v1124 = vmul.f32 %v1112, 3.8918573e-05
        %v1125 = vadd.f32 %v1124, 0.001143296
        %v1126 = vmul.f32 %v1112, %v1125
        %v1127 = vadd.f32 %v1126, 0.014752088
        %v1128 = vmul.f32 %v1112, %v1127
        %v1129 = vadd.f32 %v1128, 0.112945676
        %v1130 = vmul.f32 %v1112, %v1129
        %v1131 = vadd.f32 %v1130, 0.4994258
        %v1132 = vmul.f32 %v1112, %v1131
        %v1133 = vadd.f32 %v1132, 1.0
        %v1134 = vrcp.pop %v1133
        %v1135 = vmul.f32 %v1133, %v1134
        %v1136 = vsub.f32 1.0, %v1135
        %v1137 = vmul.f32 %v1134, %v1136
        %v1138 = vadd.f32 %v1134, %v1137
        %vm1139 = vweird.f32 %v1133
        %vm1140 = vweird.f32 %v1134
        %vm1141 = vmor %vm1139, %vm1140
        %v1142 = vsel %vm1141, %v1134, %v1138
        %v1143 = vand.u32 2147483647, %v1133
        %vm1144 = vcmp.eq.f32.partialorder %v1143, 8.507059e+37
        %v1145 = vand.u32 %v1133, 2147483648
        %v1146 = vor.u32 1.1754944e-38, %v1145
        %v1147 = vsel %vm1144, %v1146, %v1142
        %v1148 = vmul.f32 %v1123, %v1147
        %v1149 = vmin.f32 %v1148, 1.0
        %v1150 = vmax.f32 %v1149, -1.0
        %v1151 = vmul.f32 %v697, %v697
        %v1152 = vmin.f32 16.0, %v1151
        %v1153 = vmul.f32 %v1152, 2.1237322e-06
        %v1154 = vadd.f32 %v1153, 0.00028619796
        %v1155 = vmul.f32 %v1152, %v1154
        %v1156 = vadd.f32 %v1155, 0.0036580483
        %v1157 = vmul.f32 %v1152, %v1156
        %v1158 = vadd.f32 %v1157, 0.05243302
        %v1159 = vmul.f32 %v1152, %v1158
        %v1160 = vadd.f32 %v1159, 0.18741608
        %v1161 = vmul.f32 %v1152, %v1160
        %v1162 = vadd.f32 %v1161, 1.1283791
        %v1163 = vmul.f32 %v697, %v1162
        %v1164 = vmul.f32 %v1152, 3.8918573e-05
        %v1165 = vadd.f32 %v1164, 0.001143296
        %v1166 = vmul.f32 %v1152, %v1165
        %v1167 = vadd.f32 %v1166, 0.014752088
        %v1168 = vmul.f32 %v1152, %v1167
        %v1169 = vadd.f32 %v1168, 0.112945676
        %v1170 = vmul.f32 %v1152, %v1169
        %v1171 = vadd.f32 %v1170, 0.4994258
        %v1172 = vmul.f32 %v1152, %v1171
        %v1173 = vadd.f32 %v1172, 1.0
        %v1174 = vrcp.pop %v1173
        %v1175 = vmul.f32 %v1173, %v1174
        %v1176 = vsub.f32 1.0, %v1175
        %v1177 = vmul.f32 %v1174, %v1176
        %v1178 = vadd.f32 %v1174, %v1177
        %vm1179 = vweird.f32 %v1173
        %vm1180 = vweird.f32 %v1174
        %vm1181 = vmor %vm1179, %vm1180
        %v1182 = vsel %vm1181, %v1174, %v1178
        %v1183 = vand.u32 2147483647, %v1173
        %vm1184 = vcmp.eq.f32.partialorder %v1183, 8.507059e+37
        %v1185 = vand.u32 %v1173, 2147483648
        %v1186 = vor.u32 1.1754944e-38, %v1185
        %v1187 = vsel %vm1184, %v1186, %v1182
        %v1188 = vmul.f32 %v1163, %v1187
        %v1189 = vmin.f32 %v1188, 1.0
        %v1190 = vmax.f32 %v1189, -1.0
        %v1191 = vmul.f32 %v698, %v698
        %v1192 = vmin.f32 16.0, %v1191
        %v1193 = vmul.f32 %v1192, 2.1237322e-06
        %v1194 = vadd.f32 %v1193, 0.00028619796
        %v1195 = vmul.f32 %v1192, %v1194
        %v1196 = vadd.f32 %v1195, 0.0036580483
        %v1197 = vmul.f32 %v1192, %v1196
        %v1198 = vadd.f32 %v1197, 0.05243302
        %v1199 = vmul.f32 %v1192, %v1198
        %v1200 = vadd.f32 %v1199, 0.18741608
        %v1201 = vmul.f32 %v1192, %v1200
        %v1202 = vadd.f32 %v1201, 1.1283791
        %v1203 = vmul.f32 %v698, %v1202
        %v1204 = vmul.f32 %v1192, 3.8918573e-05
        %v1205 = vadd.f32 %v1204, 0.001143296
        %v1206 = vmul.f32 %v1192, %v1205
        %v1207 = vadd.f32 %v1206, 0.014752088
        %v1208 = vmul.f32 %v1192, %v1207
        %v1209 = vadd.f32 %v1208, 0.112945676
        %v1210 = vmul.f32 %v1192, %v1209
        %v1211 = vadd.f32 %v1210, 0.4994258
        %v1212 = vmul.f32 %v1192, %v1211
        %v1213 = vadd.f32 %v1212, 1.0
        %v1214 = vrcp.pop %v1213
        %v1215 = vmul.f32 %v1213, %v1214
        %v1216 = vsub.f32 1.0, %v1215
        %v1217 = vmul.f32 %v1214, %v1216
        %v1218 = vadd.f32 %v1214, %v1217
        %vm1219 = vweird.f32 %v1213
        %vm1220 = vweird.f32 %v1214
        %vm1221 = vmor %vm1219, %vm1220
        %v1222 = vsel %vm1221, %v1214, %v1218
        %v1223 = vand.u32 2147483647, %v1213
        %vm1224 = vcmp.eq.f32.partialorder %v1223, 8.507059e+37
        %v1225 = vand.u32 %v1213, 2147483648
        %v1226 = vor.u32 1.1754944e-38, %v1225
        %v1227 = vsel %vm1224, %v1226, %v1222
        %v1228 = vmul.f32 %v1203, %v1227
        %v1229 = vmin.f32 %v1228, 1.0
        %v1230 = vmax.f32 %v1229, -1.0
        %v1231 = vmul.f32 %v699, %v699
        %v1232 = vmin.f32 16.0, %v1231
        %v1233 = vmul.f32 %v1232, 2.1237322e-06
        %v1234 = vadd.f32 %v1233, 0.00028619796
        %v1235 = vmul.f32 %v1232, %v1234
        %v1236 = vadd.f32 %v1235, 0.0036580483
        %v1237 = vmul.f32 %v1232, %v1236
        %v1238 = vadd.f32 %v1237, 0.05243302
        %v1239 = vmul.f32 %v1232, %v1238
        %v1240 = vadd.f32 %v1239, 0.18741608
        %v1241 = vmul.f32 %v1232, %v1240
        %v1242 = vadd.f32 %v1241, 1.1283791
        %v1243 = vmul.f32 %v699, %v1242
        %v1244 = vmul.f32 %v1232, 3.8918573e-05
        %v1245 = vadd.f32 %v1244, 0.001143296
        %v1246 = vmul.f32 %v1232, %v1245
        %v1247 = vadd.f32 %v1246, 0.014752088
        %v1248 = vmul.f32 %v1232, %v1247
        %v1249 = vadd.f32 %v1248, 0.112945676
        %v1250 = vmul.f32 %v1232, %v1249
        %v1251 = vadd.f32 %v1250, 0.4994258
        %v1252 = vmul.f32 %v1232, %v1251
        %v1253 = vadd.f32 %v1252, 1.0
        %v1254 = vrcp.pop %v1253
        %v1255 = vmul.f32 %v1253, %v1254
        %v1256 = vsub.f32 1.0, %v1255
        %v1257 = vmul.f32 %v1254, %v1256
        %v1258 = vadd.f32 %v1254, %v1257
        %vm1259 = vweird.f32 %v1253
        %vm1260 = vweird.f32 %v1254
        %vm1261 = vmor %vm1259, %vm1260
        %v1262 = vsel %vm1261, %v1254, %v1258
        %v1263 = vand.u32 2147483647, %v1253
        %vm1264 = vcmp.eq.f32.partialorder %v1263, 8.507059e+37
        %v1265 = vand.u32 %v1253, 2147483648
        %v1266 = vor.u32 1.1754944e-38, %v1265
        %v1267 = vsel %vm1264, %v1266, %v1262
        %v1268 = vmul.f32 %v1243, %v1267
        %v1269 = vmin.f32 %v1268, 1.0
        %v1270 = vmax.f32 %v1269, -1.0
        %v1271 = vmul.f32 %v700, %v700
        %v1272 = vmin.f32 16.0, %v1271
        %v1273 = vmul.f32 %v1272, 2.1237322e-06
        %v1274 = vadd.f32 %v1273, 0.00028619796
        %v1275 = vmul.f32 %v1272, %v1274
        %v1276 = vadd.f32 %v1275, 0.0036580483
        %v1277 = vmul.f32 %v1272, %v1276
        %v1278 = vadd.f32 %v1277, 0.05243302
        %v1279 = vmul.f32 %v1272, %v1278
        %v1280 = vadd.f32 %v1279, 0.18741608
        %v1281 = vmul.f32 %v1272, %v1280
        %v1282 = vadd.f32 %v1281, 1.1283791
        %v1283 = vmul.f32 %v700, %v1282
        %v1284 = vmul.f32 %v1272, 3.8918573e-05
        %v1285 = vadd.f32 %v1284, 0.001143296
        %v1286 = vmul.f32 %v1272, %v1285
        %v1287 = vadd.f32 %v1286, 0.014752088
        %v1288 = vmul.f32 %v1272, %v1287
        %v1289 = vadd.f32 %v1288, 0.112945676
        %v1290 = vmul.f32 %v1272, %v1289
        %v1291 = vadd.f32 %v1290, 0.4994258
        %v1292 = vmul.f32 %v1272, %v1291
        %v1293 = vadd.f32 %v1292, 1.0
        %v1294 = vrcp.pop %v1293
        %v1295 = vmul.f32 %v1293, %v1294
        %v1296 = vsub.f32 1.0, %v1295
        %v1297 = vmul.f32 %v1294, %v1296
        %v1298 = vadd.f32 %v1294, %v1297
        %vm1299 = vweird.f32 %v1293
        %vm1300 = vweird.f32 %v1294
        %vm1301 = vmor %vm1299, %vm1300
        %v1302 = vsel %vm1301, %v1294, %v1298
        %v1303 = vand.u32 2147483647, %v1293
        %vm1304 = vcmp.eq.f32.partialorder %v1303, 8.507059e+37
        %v1305 = vand.u32 %v1293, 2147483648
        %v1306 = vor.u32 1.1754944e-38, %v1305
        %v1307 = vsel %vm1304, %v1306, %v1302
        %v1308 = vmul.f32 %v1283, %v1307
        %v1309 = vmin.f32 %v1308, 1.0
        %v1310 = vmax.f32 %v1309, -1.0
        %v1311 = vmul.f32 %v701, %v701
        %v1312 = vmin.f32 16.0, %v1311
        %v1313 = vmul.f32 %v1312, 2.1237322e-06
        %v1314 = vadd.f32 %v1313, 0.00028619796
        %v1315 = vmul.f32 %v1312, %v1314
        %v1316 = vadd.f32 %v1315, 0.0036580483
        %v1317 = vmul.f32 %v1312, %v1316
        %v1318 = vadd.f32 %v1317, 0.05243302
        %v1319 = vmul.f32 %v1312, %v1318
        %v1320 = vadd.f32 %v1319, 0.18741608
        %v1321 = vmul.f32 %v1312, %v1320
        %v1322 = vadd.f32 %v1321, 1.1283791
        %v1323 = vmul.f32 %v701, %v1322
        %v1324 = vmul.f32 %v1312, 3.8918573e-05
        %v1325 = vadd.f32 %v1324, 0.001143296
        %v1326 = vmul.f32 %v1312, %v1325
        %v1327 = vadd.f32 %v1326, 0.014752088
        %v1328 = vmul.f32 %v1312, %v1327
        %v1329 = vadd.f32 %v1328, 0.112945676
        %v1330 = vmul.f32 %v1312, %v1329
        %v1331 = vadd.f32 %v1330, 0.4994258
        %v1332 = vmul.f32 %v1312, %v1331
        %v1333 = vadd.f32 %v1332, 1.0
        %v1334 = vrcp.pop %v1333
        %v1335 = vmul.f32 %v1333, %v1334
        %v1336 = vsub.f32 1.0, %v1335
        %v1337 = vmul.f32 %v1334, %v1336
        %v1338 = vadd.f32 %v1334, %v1337
        %vm1339 = vweird.f32 %v1333
        %vm1340 = vweird.f32 %v1334
        %vm1341 = vmor %vm1339, %vm1340
        %v1342 = vsel %vm1341, %v1334, %v1338
        %v1343 = vand.u32 2147483647, %v1333
        %vm1344 = vcmp.eq.f32.partialorder %v1343, 8.507059e+37
        %v1345 = vand.u32 %v1333, 2147483648
        %v1346 = vor.u32 1.1754944e-38, %v1345
        %v1347 = vsel %vm1344, %v1346, %v1342
        %v1348 = vmul.f32 %v1323, %v1347
        %v1349 = vmin.f32 %v1348, 1.0
        %v1350 = vmax.f32 %v1349, -1.0
        %v1351 = vmul.f32 %v702, %v702
        %v1352 = vmin.f32 16.0, %v1351
        %v1353 = vmul.f32 %v1352, 2.1237322e-06
        %v1354 = vadd.f32 %v1353, 0.00028619796
        %v1355 = vmul.f32 %v1352, %v1354
        %v1356 = vadd.f32 %v1355, 0.0036580483
        %v1357 = vmul.f32 %v1352, %v1356
        %v1358 = vadd.f32 %v1357, 0.05243302
        %v1359 = vmul.f32 %v1352, %v1358
        %v1360 = vadd.f32 %v1359, 0.18741608
        %v1361 = vmul.f32 %v1352, %v1360
        %v1362 = vadd.f32 %v1361, 1.1283791
        %v1363 = vmul.f32 %v702, %v1362
        %v1364 = vmul.f32 %v1352, 3.8918573e-05
        %v1365 = vadd.f32 %v1364, 0.001143296
        %v1366 = vmul.f32 %v1352, %v1365
        %v1367 = vadd.f32 %v1366, 0.014752088
        %v1368 = vmul.f32 %v1352, %v1367
        %v1369 = vadd.f32 %v1368, 0.112945676
        %v1370 = vmul.f32 %v1352, %v1369
        %v1371 = vadd.f32 %v1370, 0.4994258
        %v1372 = vmul.f32 %v1352, %v1371
        %v1373 = vadd.f32 %v1372, 1.0
        %v1374 = vrcp.pop %v1373
        %v1375 = vmul.f32 %v1373, %v1374
        %v1376 = vsub.f32 1.0, %v1375
        %v1377 = vmul.f32 %v1374, %v1376
        %v1378 = vadd.f32 %v1374, %v1377
        %vm1379 = vweird.f32 %v1373
        %vm1380 = vweird.f32 %v1374
        %vm1381 = vmor %vm1379, %vm1380
        %v1382 = vsel %vm1381, %v1374, %v1378
        %v1383 = vand.u32 2147483647, %v1373
        %vm1384 = vcmp.eq.f32.partialorder %v1383, 8.507059e+37
        %v1385 = vand.u32 %v1373, 2147483648
        %v1386 = vor.u32 1.1754944e-38, %v1385
        %v1387 = vsel %vm1384, %v1386, %v1382
        %v1388 = vmul.f32 %v1363, %v1387
        %v1389 = vmin.f32 %v1388, 1.0
        %v1390 = vmax.f32 %v1389, -1.0
        %v1391 = vmul.f32 %v703, %v703
        %v1392 = vmin.f32 16.0, %v1391
        %v1393 = vmul.f32 %v1392, 2.1237322e-06
        %v1394 = vadd.f32 %v1393, 0.00028619796
        %v1395 = vmul.f32 %v1392, %v1394
        %v1396 = vadd.f32 %v1395, 0.0036580483
        %v1397 = vmul.f32 %v1392, %v1396
        %v1398 = vadd.f32 %v1397, 0.05243302
        %v1399 = vmul.f32 %v1392, %v1398
        %v1400 = vadd.f32 %v1399, 0.18741608
        %v1401 = vmul.f32 %v1392, %v1400
        %v1402 = vadd.f32 %v1401, 1.1283791
        %v1403 = vmul.f32 %v703, %v1402
        %v1404 = vmul.f32 %v1392, 3.8918573e-05
        %v1405 = vadd.f32 %v1404, 0.001143296
        %v1406 = vmul.f32 %v1392, %v1405
        %v1407 = vadd.f32 %v1406, 0.014752088
        %v1408 = vmul.f32 %v1392, %v1407
        %v1409 = vadd.f32 %v1408, 0.112945676
        %v1410 = vmul.f32 %v1392, %v1409
        %v1411 = vadd.f32 %v1410, 0.4994258
        %v1412 = vmul.f32 %v1392, %v1411
        %v1413 = vadd.f32 %v1412, 1.0
        %v1414 = vrcp.pop %v1413
        %v1415 = vmul.f32 %v1413, %v1414
        %v1416 = vsub.f32 1.0, %v1415
        %v1417 = vmul.f32 %v1414, %v1416
        %v1418 = vadd.f32 %v1414, %v1417
        %vm1419 = vweird.f32 %v1413
        %vm1420 = vweird.f32 %v1414
        %vm1421 = vmor %vm1419, %vm1420
        %v1422 = vsel %vm1421, %v1414, %v1418
        %v1423 = vand.u32 2147483647, %v1413
        %vm1424 = vcmp.eq.f32.partialorder %v1423, 8.507059e+37
        %v1425 = vand.u32 %v1413, 2147483648
        %v1426 = vor.u32 1.1754944e-38, %v1425
        %v1427 = vsel %vm1424, %v1426, %v1422
        %v1428 = vmul.f32 %v1403, %v1427
        %v1429 = vmin.f32 %v1428, 1.0
        %v1430 = vmax.f32 %v1429, -1.0
        %v1431 = vmul.f32 %v704, %v704
        %v1432 = vmin.f32 16.0, %v1431
        %v1433 = vmul.f32 %v1432, 2.1237322e-06
        %v1434 = vadd.f32 %v1433, 0.00028619796
        %v1435 = vmul.f32 %v1432, %v1434
        %v1436 = vadd.f32 %v1435, 0.0036580483
        %v1437 = vmul.f32 %v1432, %v1436
        %v1438 = vadd.f32 %v1437, 0.05243302
        %v1439 = vmul.f32 %v1432, %v1438
        %v1440 = vadd.f32 %v1439, 0.18741608
        %v1441 = vmul.f32 %v1432, %v1440
        %v1442 = vadd.f32 %v1441, 1.1283791
        %v1443 = vmul.f32 %v704, %v1442
        %v1444 = vmul.f32 %v1432, 3.8918573e-05
        %v1445 = vadd.f32 %v1444, 0.001143296
        %v1446 = vmul.f32 %v1432, %v1445
        %v1447 = vadd.f32 %v1446, 0.014752088
        %v1448 = vmul.f32 %v1432, %v1447
        %v1449 = vadd.f32 %v1448, 0.112945676
        %v1450 = vmul.f32 %v1432, %v1449
        %v1451 = vadd.f32 %v1450, 0.4994258
        %v1452 = vmul.f32 %v1432, %v1451
        %v1453 = vadd.f32 %v1452, 1.0
        %v1454 = vrcp.pop %v1453
        %v1455 = vmul.f32 %v1453, %v1454
        %v1456 = vsub.f32 1.0, %v1455
        %v1457 = vmul.f32 %v1454, %v1456
        %v1458 = vadd.f32 %v1454, %v1457
        %vm1459 = vweird.f32 %v1453
        %vm1460 = vweird.f32 %v1454
        %vm1461 = vmor %vm1459, %vm1460
        %v1462 = vsel %vm1461, %v1454, %v1458
        %v1463 = vand.u32 2147483647, %v1453
        %vm1464 = vcmp.eq.f32.partialorder %v1463, 8.507059e+37
        %v1465 = vand.u32 %v1453, 2147483648
        %v1466 = vor.u32 1.1754944e-38, %v1465
        %v1467 = vsel %vm1464, %v1466, %v1462
        %v1468 = vmul.f32 %v1443, %v1467
        %v1469 = vmin.f32 %v1468, 1.0
        %v1470 = vmax.f32 %v1469, -1.0
        %v1471 = vmul.f32 %v705, %v705
        %v1472 = vmin.f32 16.0, %v1471
        %v1473 = vmul.f32 %v1472, 2.1237322e-06
        %v1474 = vadd.f32 %v1473, 0.00028619796
        %v1475 = vmul.f32 %v1472, %v1474
        %v1476 = vadd.f32 %v1475, 0.0036580483
        %v1477 = vmul.f32 %v1472, %v1476
        %v1478 = vadd.f32 %v1477, 0.05243302
        %v1479 = vmul.f32 %v1472, %v1478
        %v1480 = vadd.f32 %v1479, 0.18741608
        %v1481 = vmul.f32 %v1472, %v1480
        %v1482 = vadd.f32 %v1481, 1.1283791
        %v1483 = vmul.f32 %v705, %v1482
        %v1484 = vmul.f32 %v1472, 3.8918573e-05
        %v1485 = vadd.f32 %v1484, 0.001143296
        %v1486 = vmul.f32 %v1472, %v1485
        %v1487 = vadd.f32 %v1486, 0.014752088
        %v1488 = vmul.f32 %v1472, %v1487
        %v1489 = vadd.f32 %v1488, 0.112945676
        %v1490 = vmul.f32 %v1472, %v1489
        %v1491 = vadd.f32 %v1490, 0.4994258
        %v1492 = vmul.f32 %v1472, %v1491
        %v1493 = vadd.f32 %v1492, 1.0
        %v1494 = vrcp.pop %v1493
        %v1495 = vmul.f32 %v1493, %v1494
        %v1496 = vsub.f32 1.0, %v1495
        %v1497 = vmul.f32 %v1494, %v1496
        %v1498 = vadd.f32 %v1494, %v1497
        %vm1499 = vweird.f32 %v1493
        %vm1500 = vweird.f32 %v1494
        %vm1501 = vmor %vm1499, %vm1500
        %v1502 = vsel %vm1501, %v1494, %v1498
        %v1503 = vand.u32 2147483647, %v1493
        %vm1504 = vcmp.eq.f32.partialorder %v1503, 8.507059e+37
        %v1505 = vand.u32 %v1493, 2147483648
        %v1506 = vor.u32 1.1754944e-38, %v1505
        %v1507 = vsel %vm1504, %v1506, %v1502
        %v1508 = vmul.f32 %v1483, %v1507
        %v1509 = vmin.f32 %v1508, 1.0
        %v1510 = vmax.f32 %v1509, -1.0
        %v1511 = vmul.f32 %v706, %v706
        %v1512 = vmin.f32 16.0, %v1511
        %v1513 = vmul.f32 %v1512, 2.1237322e-06
        %v1514 = vadd.f32 %v1513, 0.00028619796
        %v1515 = vmul.f32 %v1512, %v1514
        %v1516 = vadd.f32 %v1515, 0.0036580483
        %v1517 = vmul.f32 %v1512, %v1516
        %v1518 = vadd.f32 %v1517, 0.05243302
        %v1519 = vmul.f32 %v1512, %v1518
        %v1520 = vadd.f32 %v1519, 0.18741608
        %v1521 = vmul.f32 %v1512, %v1520
        %v1522 = vadd.f32 %v1521, 1.1283791
        %v1523 = vmul.f32 %v706, %v1522
        %v1524 = vmul.f32 %v1512, 3.8918573e-05
        %v1525 = vadd.f32 %v1524, 0.001143296
        %v1526 = vmul.f32 %v1512, %v1525
        %v1527 = vadd.f32 %v1526, 0.014752088
        %v1528 = vmul.f32 %v1512, %v1527
        %v1529 = vadd.f32 %v1528, 0.112945676
        %v1530 = vmul.f32 %v1512, %v1529
        %v1531 = vadd.f32 %v1530, 0.4994258
        %v1532 = vmul.f32 %v1512, %v1531
        %v1533 = vadd.f32 %v1532, 1.0
        %v1534 = vrcp.pop %v1533
        %v1535 = vmul.f32 %v1533, %v1534
        %v1536 = vsub.f32 1.0, %v1535
        %v1537 = vmul.f32 %v1534, %v1536
        %v1538 = vadd.f32 %v1534, %v1537
        %vm1539 = vweird.f32 %v1533
        %vm1540 = vweird.f32 %v1534
        %vm1541 = vmor %vm1539, %vm1540
        %v1542 = vsel %vm1541, %v1534, %v1538
        %v1543 = vand.u32 2147483647, %v1533
        %vm1544 = vcmp.eq.f32.partialorder %v1543, 8.507059e+37
        %v1545 = vand.u32 %v1533, 2147483648
        %v1546 = vor.u32 1.1754944e-38, %v1545
        %v1547 = vsel %vm1544, %v1546, %v1542
        %v1548 = vmul.f32 %v1523, %v1547
        %v1549 = vmin.f32 %v1548, 1.0
        %v1550 = vmax.f32 %v1549, -1.0
        %v1551 = vmul.f32 %v707, %v707
        %v1552 = vmin.f32 16.0, %v1551
        %v1553 = vmul.f32 %v1552, 2.1237322e-06
        %v1554 = vadd.f32 %v1553, 0.00028619796
        %v1555 = vmul.f32 %v1552, %v1554
        %v1556 = vadd.f32 %v1555, 0.0036580483
        %v1557 = vmul.f32 %v1552, %v1556
        %v1558 = vadd.f32 %v1557, 0.05243302
        %v1559 = vmul.f32 %v1552, %v1558
        %v1560 = vadd.f32 %v1559, 0.18741608
        %v1561 = vmul.f32 %v1552, %v1560
        %v1562 = vadd.f32 %v1561, 1.1283791
        %v1563 = vmul.f32 %v707, %v1562
        %v1564 = vmul.f32 %v1552, 3.8918573e-05
        %v1565 = vadd.f32 %v1564, 0.001143296
        %v1566 = vmul.f32 %v1552, %v1565
        %v1567 = vadd.f32 %v1566, 0.014752088
        %v1568 = vmul.f32 %v1552, %v1567
        %v1569 = vadd.f32 %v1568, 0.112945676
        %v1570 = vmul.f32 %v1552, %v1569
        %v1571 = vadd.f32 %v1570, 0.4994258
        %v1572 = vmul.f32 %v1552, %v1571
        %v1573 = vadd.f32 %v1572, 1.0
        %v1574 = vrcp.pop %v1573
        %v1575 = vmul.f32 %v1573, %v1574
        %v1576 = vsub.f32 1.0, %v1575
        %v1577 = vmul.f32 %v1574, %v1576
        %v1578 = vadd.f32 %v1574, %v1577
        %vm1579 = vweird.f32 %v1573
        %vm1580 = vweird.f32 %v1574
        %vm1581 = vmor %vm1579, %vm1580
        %v1582 = vsel %vm1581, %v1574, %v1578
        %v1583 = vand.u32 2147483647, %v1573
        %vm1584 = vcmp.eq.f32.partialorder %v1583, 8.507059e+37
        %v1585 = vand.u32 %v1573, 2147483648
        %v1586 = vor.u32 1.1754944e-38, %v1585
        %v1587 = vsel %vm1584, %v1586, %v1582
        %v1588 = vmul.f32 %v1563, %v1587
        %v1589 = vmin.f32 %v1588, 1.0
        %v1590 = vmax.f32 %v1589, -1.0
        %v1591 = vmul.f32 %v708, %v708
        %v1592 = vmin.f32 16.0, %v1591
        %v1593 = vmul.f32 %v1592, 2.1237322e-06
        %v1594 = vadd.f32 %v1593, 0.00028619796
        %v1595 = vmul.f32 %v1592, %v1594
        %v1596 = vadd.f32 %v1595, 0.0036580483
        %v1597 = vmul.f32 %v1592, %v1596
        %v1598 = vadd.f32 %v1597, 0.05243302
        %v1599 = vmul.f32 %v1592, %v1598
        %v1600 = vadd.f32 %v1599, 0.18741608
        %v1601 = vmul.f32 %v1592, %v1600
        %v1602 = vadd.f32 %v1601, 1.1283791
        %v1603 = vmul.f32 %v708, %v1602
        %v1604 = vmul.f32 %v1592, 3.8918573e-05
        %v1605 = vadd.f32 %v1604, 0.001143296
        %v1606 = vmul.f32 %v1592, %v1605
        %v1607 = vadd.f32 %v1606, 0.014752088
        %v1608 = vmul.f32 %v1592, %v1607
        %v1609 = vadd.f32 %v1608, 0.112945676
        %v1610 = vmul.f32 %v1592, %v1609
        %v1611 = vadd.f32 %v1610, 0.4994258
        %v1612 = vmul.f32 %v1592, %v1611
        %v1613 = vadd.f32 %v1612, 1.0
        %v1614 = vrcp.pop %v1613
        %v1615 = vmul.f32 %v1613, %v1614
        %v1616 = vsub.f32 1.0, %v1615
        %v1617 = vmul.f32 %v1614, %v1616
        %v1618 = vadd.f32 %v1614, %v1617
        %vm1619 = vweird.f32 %v1613
        %vm1620 = vweird.f32 %v1614
        %vm1621 = vmor %vm1619, %vm1620
        %v1622 = vsel %vm1621, %v1614, %v1618
        %v1623 = vand.u32 2147483647, %v1613
        %vm1624 = vcmp.eq.f32.partialorder %v1623, 8.507059e+37
        %v1625 = vand.u32 %v1613, 2147483648
        %v1626 = vor.u32 1.1754944e-38, %v1625
        %v1627 = vsel %vm1624, %v1626, %v1622
        %v1628 = vmul.f32 %v1603, %v1627
        %v1629 = vmin.f32 %v1628, 1.0
        %v1630 = vmax.f32 %v1629, -1.0
        %v1631 = vmul.f32 %v709, %v709
        %v1632 = vmin.f32 16.0, %v1631
        %v1633 = vmul.f32 %v1632, 2.1237322e-06
        %v1634 = vadd.f32 %v1633, 0.00028619796
        %v1635 = vmul.f32 %v1632, %v1634
        %v1636 = vadd.f32 %v1635, 0.0036580483
        %v1637 = vmul.f32 %v1632, %v1636
        %v1638 = vadd.f32 %v1637, 0.05243302
        %v1639 = vmul.f32 %v1632, %v1638
        %v1640 = vadd.f32 %v1639, 0.18741608
        %v1641 = vmul.f32 %v1632, %v1640
        %v1642 = vadd.f32 %v1641, 1.1283791
        %v1643 = vmul.f32 %v709, %v1642
        %v1644 = vmul.f32 %v1632, 3.8918573e-05
        %v1645 = vadd.f32 %v1644, 0.001143296
        %v1646 = vmul.f32 %v1632, %v1645
        %v1647 = vadd.f32 %v1646, 0.014752088
        %v1648 = vmul.f32 %v1632, %v1647
        %v1649 = vadd.f32 %v1648, 0.112945676
        %v1650 = vmul.f32 %v1632, %v1649
        %v1651 = vadd.f32 %v1650, 0.4994258
        %v1652 = vmul.f32 %v1632, %v1651
        %v1653 = vadd.f32 %v1652, 1.0
        %v1654 = vrcp.pop %v1653
        %v1655 = vmul.f32 %v1653, %v1654
        %v1656 = vsub.f32 1.0, %v1655
        %v1657 = vmul.f32 %v1654, %v1656
        %v1658 = vadd.f32 %v1654, %v1657
        %vm1659 = vweird.f32 %v1653
        %vm1660 = vweird.f32 %v1654
        %vm1661 = vmor %vm1659, %vm1660
        %v1662 = vsel %vm1661, %v1654, %v1658
        %v1663 = vand.u32 2147483647, %v1653
        %vm1664 = vcmp.eq.f32.partialorder %v1663, 8.507059e+37
        %v1665 = vand.u32 %v1653, 2147483648
        %v1666 = vor.u32 1.1754944e-38, %v1665
        %v1667 = vsel %vm1664, %v1666, %v1662
        %v1668 = vmul.f32 %v1643, %v1667
        %v1669 = vmin.f32 %v1668, 1.0
        %v1670 = vmax.f32 %v1669, -1.0
        %v1671 = vmul.f32 %v710, %v710
        %v1672 = vmin.f32 16.0, %v1671
        %v1673 = vmul.f32 %v1672, 2.1237322e-06
        %v1674 = vadd.f32 %v1673, 0.00028619796
        %v1675 = vmul.f32 %v1672, %v1674
        %v1676 = vadd.f32 %v1675, 0.0036580483
        %v1677 = vmul.f32 %v1672, %v1676
        %v1678 = vadd.f32 %v1677, 0.05243302
        %v1679 = vmul.f32 %v1672, %v1678
        %v1680 = vadd.f32 %v1679, 0.18741608
        %v1681 = vmul.f32 %v1672, %v1680
        %v1682 = vadd.f32 %v1681, 1.1283791
        %v1683 = vmul.f32 %v710, %v1682
        %v1684 = vmul.f32 %v1672, 3.8918573e-05
        %v1685 = vadd.f32 %v1684, 0.001143296
        %v1686 = vmul.f32 %v1672, %v1685
        %v1687 = vadd.f32 %v1686, 0.014752088
        %v1688 = vmul.f32 %v1672, %v1687
        %v1689 = vadd.f32 %v1688, 0.112945676
        %v1690 = vmul.f32 %v1672, %v1689
        %v1691 = vadd.f32 %v1690, 0.4994258
        %v1692 = vmul.f32 %v1672, %v1691
        %v1693 = vadd.f32 %v1692, 1.0
        %v1694 = vrcp.pop %v1693
        %v1695 = vmul.f32 %v1693, %v1694
        %v1696 = vsub.f32 1.0, %v1695
        %v1697 = vmul.f32 %v1694, %v1696
        %v1698 = vadd.f32 %v1694, %v1697
        %vm1699 = vweird.f32 %v1693
        %vm1700 = vweird.f32 %v1694
        %vm1701 = vmor %vm1699, %vm1700
        %v1702 = vsel %vm1701, %v1694, %v1698
        %v1703 = vand.u32 2147483647, %v1693
        %vm1704 = vcmp.eq.f32.partialorder %v1703, 8.507059e+37
        %v1705 = vand.u32 %v1693, 2147483648
        %v1706 = vor.u32 1.1754944e-38, %v1705
        %v1707 = vsel %vm1704, %v1706, %v1702
        %v1708 = vmul.f32 %v1683, %v1707
        %v1709 = vmin.f32 %v1708, 1.0
        %v1710 = vmax.f32 %v1709, -1.0
        %v1711 = vmul.f32 %v711, %v711
        %v1712 = vmin.f32 16.0, %v1711
        %v1713 = vmul.f32 %v1712, 2.1237322e-06
        %v1714 = vadd.f32 %v1713, 0.00028619796
        %v1715 = vmul.f32 %v1712, %v1714
        %v1716 = vadd.f32 %v1715, 0.0036580483
        %v1717 = vmul.f32 %v1712, %v1716
        %v1718 = vadd.f32 %v1717, 0.05243302
        %v1719 = vmul.f32 %v1712, %v1718
        %v1720 = vadd.f32 %v1719, 0.18741608
        %v1721 = vmul.f32 %v1712, %v1720
        %v1722 = vadd.f32 %v1721, 1.1283791
        %v1723 = vmul.f32 %v711, %v1722
        %v1724 = vmul.f32 %v1712, 3.8918573e-05
        %v1725 = vadd.f32 %v1724, 0.001143296
        %v1726 = vmul.f32 %v1712, %v1725
        %v1727 = vadd.f32 %v1726, 0.014752088
        %v1728 = vmul.f32 %v1712, %v1727
        %v1729 = vadd.f32 %v1728, 0.112945676
        %v1730 = vmul.f32 %v1712, %v1729
        %v1731 = vadd.f32 %v1730, 0.4994258
        %v1732 = vmul.f32 %v1712, %v1731
        %v1733 = vadd.f32 %v1732, 1.0
        %v1734 = vrcp.pop %v1733
        %v1735 = vmul.f32 %v1733, %v1734
        %v1736 = vsub.f32 1.0, %v1735
        %v1737 = vmul.f32 %v1734, %v1736
        %v1738 = vadd.f32 %v1734, %v1737
        %vm1739 = vweird.f32 %v1733
        %vm1740 = vweird.f32 %v1734
        %vm1741 = vmor %vm1739, %vm1740
        %v1742 = vsel %vm1741, %v1734, %v1738
        %v1743 = vand.u32 2147483647, %v1733
        %vm1744 = vcmp.eq.f32.partialorder %v1743, 8.507059e+37
        %v1745 = vand.u32 %v1733, 2147483648
        %v1746 = vor.u32 1.1754944e-38, %v1745
        %v1747 = vsel %vm1744, %v1746, %v1742
        %v1748 = vmul.f32 %v1723, %v1747
        %v1749 = vmin.f32 %v1748, 1.0
        %v1750 = vmax.f32 %v1749, -1.0
        %v1751 = vmul.f32 %v712, %v712
        %v1752 = vmin.f32 16.0, %v1751
        %v1753 = vmul.f32 %v1752, 2.1237322e-06
        %v1754 = vadd.f32 %v1753, 0.00028619796
        %v1755 = vmul.f32 %v1752, %v1754
        %v1756 = vadd.f32 %v1755, 0.0036580483
        %v1757 = vmul.f32 %v1752, %v1756
        %v1758 = vadd.f32 %v1757, 0.05243302
        %v1759 = vmul.f32 %v1752, %v1758
        %v1760 = vadd.f32 %v1759, 0.18741608
        %v1761 = vmul.f32 %v1752, %v1760
        %v1762 = vadd.f32 %v1761, 1.1283791
        %v1763 = vmul.f32 %v712, %v1762
        %v1764 = vmul.f32 %v1752, 3.8918573e-05
        %v1765 = vadd.f32 %v1764, 0.001143296
        %v1766 = vmul.f32 %v1752, %v1765
        %v1767 = vadd.f32 %v1766, 0.014752088
        %v1768 = vmul.f32 %v1752, %v1767
        %v1769 = vadd.f32 %v1768, 0.112945676
        %v1770 = vmul.f32 %v1752, %v1769
        %v1771 = vadd.f32 %v1770, 0.4994258
        %v1772 = vmul.f32 %v1752, %v1771
        %v1773 = vadd.f32 %v1772, 1.0
        %v1774 = vrcp.pop %v1773
        %v1775 = vmul.f32 %v1773, %v1774
        %v1776 = vsub.f32 1.0, %v1775
        %v1777 = vmul.f32 %v1774, %v1776
        %v1778 = vadd.f32 %v1774, %v1777
        %vm1779 = vweird.f32 %v1773
        %vm1780 = vweird.f32 %v1774
        %vm1781 = vmor %vm1779, %vm1780
        %v1782 = vsel %vm1781, %v1774, %v1778
        %v1783 = vand.u32 2147483647, %v1773
        %vm1784 = vcmp.eq.f32.partialorder %v1783, 8.507059e+37
        %v1785 = vand.u32 %v1773, 2147483648
        %v1786 = vor.u32 1.1754944e-38, %v1785
        %v1787 = vsel %vm1784, %v1786, %v1782
        %v1788 = vmul.f32 %v1763, %v1787
        %v1789 = vmin.f32 %v1788, 1.0
        %v1790 = vmax.f32 %v1789, -1.0
        %v1791 = vmul.f32 %v713, %v713
        %v1792 = vmin.f32 16.0, %v1791
        %v1793 = vmul.f32 %v1792, 2.1237322e-06
        %v1794 = vadd.f32 %v1793, 0.00028619796
        %v1795 = vmul.f32 %v1792, %v1794
        %v1796 = vadd.f32 %v1795, 0.0036580483
        %v1797 = vmul.f32 %v1792, %v1796
        %v1798 = vadd.f32 %v1797, 0.05243302
        %v1799 = vmul.f32 %v1792, %v1798
        %v1800 = vadd.f32 %v1799, 0.18741608
        %v1801 = vmul.f32 %v1792, %v1800
        %v1802 = vadd.f32 %v1801, 1.1283791
        %v1803 = vmul.f32 %v713, %v1802
        %v1804 = vmul.f32 %v1792, 3.8918573e-05
        %v1805 = vadd.f32 %v1804, 0.001143296
        %v1806 = vmul.f32 %v1792, %v1805
        %v1807 = vadd.f32 %v1806, 0.014752088
        %v1808 = vmul.f32 %v1792, %v1807
        %v1809 = vadd.f32 %v1808, 0.112945676
        %v1810 = vmul.f32 %v1792, %v1809
        %v1811 = vadd.f32 %v1810, 0.4994258
        %v1812 = vmul.f32 %v1792, %v1811
        %v1813 = vadd.f32 %v1812, 1.0
        %v1814 = vrcp.pop %v1813
        %v1815 = vmul.f32 %v1813, %v1814
        %v1816 = vsub.f32 1.0, %v1815
        %v1817 = vmul.f32 %v1814, %v1816
        %v1818 = vadd.f32 %v1814, %v1817
        %vm1819 = vweird.f32 %v1813
        %vm1820 = vweird.f32 %v1814
        %vm1821 = vmor %vm1819, %vm1820
        %v1822 = vsel %vm1821, %v1814, %v1818
        %v1823 = vand.u32 2147483647, %v1813
        %vm1824 = vcmp.eq.f32.partialorder %v1823, 8.507059e+37
        %v1825 = vand.u32 %v1813, 2147483648
        %v1826 = vor.u32 1.1754944e-38, %v1825
        %v1827 = vsel %vm1824, %v1826, %v1822
        %v1828 = vmul.f32 %v1803, %v1827
        %v1829 = vmin.f32 %v1828, 1.0
        %v1830 = vmax.f32 %v1829, -1.0
        %v1831 = vmul.f32 %v714, %v714
        %v1832 = vmin.f32 16.0, %v1831
        %v1833 = vmul.f32 %v1832, 2.1237322e-06
        %v1834 = vadd.f32 %v1833, 0.00028619796
        %v1835 = vmul.f32 %v1832, %v1834
        %v1836 = vadd.f32 %v1835, 0.0036580483
        %v1837 = vmul.f32 %v1832, %v1836
        %v1838 = vadd.f32 %v1837, 0.05243302
        %v1839 = vmul.f32 %v1832, %v1838
        %v1840 = vadd.f32 %v1839, 0.18741608
        %v1841 = vmul.f32 %v1832, %v1840
        %v1842 = vadd.f32 %v1841, 1.1283791
        %v1843 = vmul.f32 %v714, %v1842
        %v1844 = vmul.f32 %v1832, 3.8918573e-05
        %v1845 = vadd.f32 %v1844, 0.001143296
        %v1846 = vmul.f32 %v1832, %v1845
        %v1847 = vadd.f32 %v1846, 0.014752088
        %v1848 = vmul.f32 %v1832, %v1847
        %v1849 = vadd.f32 %v1848, 0.112945676
        %v1850 = vmul.f32 %v1832, %v1849
        %v1851 = vadd.f32 %v1850, 0.4994258
        %v1852 = vmul.f32 %v1832, %v1851
        %v1853 = vadd.f32 %v1852, 1.0
        %v1854 = vrcp.pop %v1853
        %v1855 = vmul.f32 %v1853, %v1854
        %v1856 = vsub.f32 1.0, %v1855
        %v1857 = vmul.f32 %v1854, %v1856
        %v1858 = vadd.f32 %v1854, %v1857
        %vm1859 = vweird.f32 %v1853
        %vm1860 = vweird.f32 %v1854
        %vm1861 = vmor %vm1859, %vm1860
        %v1862 = vsel %vm1861, %v1854, %v1858
        %v1863 = vand.u32 2147483647, %v1853
        %vm1864 = vcmp.eq.f32.partialorder %v1863, 8.507059e+37
        %v1865 = vand.u32 %v1853, 2147483648
        %v1866 = vor.u32 1.1754944e-38, %v1865
        %v1867 = vsel %vm1864, %v1866, %v1862
        %v1868 = vmul.f32 %v1843, %v1867
        %v1869 = vmin.f32 %v1868, 1.0
        %v1870 = vmax.f32 %v1869, -1.0
        %v1871 = vmul.f32 %v715, %v715
        %v1872 = vmin.f32 16.0, %v1871
        %v1873 = vmul.f32 %v1872, 2.1237322e-06
        %v1874 = vadd.f32 %v1873, 0.00028619796
        %v1875 = vmul.f32 %v1872, %v1874
        %v1876 = vadd.f32 %v1875, 0.0036580483
        %v1877 = vmul.f32 %v1872, %v1876
        %v1878 = vadd.f32 %v1877, 0.05243302
        %v1879 = vmul.f32 %v1872, %v1878
        %v1880 = vadd.f32 %v1879, 0.18741608
        %v1881 = vmul.f32 %v1872, %v1880
        %v1882 = vadd.f32 %v1881, 1.1283791
        %v1883 = vmul.f32 %v715, %v1882
        %v1884 = vmul.f32 %v1872, 3.8918573e-05
        %v1885 = vadd.f32 %v1884, 0.001143296
        %v1886 = vmul.f32 %v1872, %v1885
        %v1887 = vadd.f32 %v1886, 0.014752088
        %v1888 = vmul.f32 %v1872, %v1887
        %v1889 = vadd.f32 %v1888, 0.112945676
        %v1890 = vmul.f32 %v1872, %v1889
        %v1891 = vadd.f32 %v1890, 0.4994258
        %v1892 = vmul.f32 %v1872, %v1891
        %v1893 = vadd.f32 %v1892, 1.0
        %v1894 = vrcp.pop %v1893
        %v1895 = vmul.f32 %v1893, %v1894
        %v1896 = vsub.f32 1.0, %v1895
        %v1897 = vmul.f32 %v1894, %v1896
        %v1898 = vadd.f32 %v1894, %v1897
        %vm1899 = vweird.f32 %v1893
        %vm1900 = vweird.f32 %v1894
        %vm1901 = vmor %vm1899, %vm1900
        %v1902 = vsel %vm1901, %v1894, %v1898
        %v1903 = vand.u32 2147483647, %v1893
        %vm1904 = vcmp.eq.f32.partialorder %v1903, 8.507059e+37
        %v1905 = vand.u32 %v1893, 2147483648
        %v1906 = vor.u32 1.1754944e-38, %v1905
        %v1907 = vsel %vm1904, %v1906, %v1902
        %v1908 = vmul.f32 %v1883, %v1907
        %v1909 = vmin.f32 %v1908, 1.0
        %v1910 = vmax.f32 %v1909, -1.0
        %v1911 = vmul.f32 %v716, %v716
        %v1912 = vmin.f32 16.0, %v1911
        %v1913 = vmul.f32 %v1912, 2.1237322e-06
        %v1914 = vadd.f32 %v1913, 0.00028619796
        %v1915 = vmul.f32 %v1912, %v1914
        %v1916 = vadd.f32 %v1915, 0.0036580483
        %v1917 = vmul.f32 %v1912, %v1916
        %v1918 = vadd.f32 %v1917, 0.05243302
        %v1919 = vmul.f32 %v1912, %v1918
        %v1920 = vadd.f32 %v1919, 0.18741608
        %v1921 = vmul.f32 %v1912, %v1920
        %v1922 = vadd.f32 %v1921, 1.1283791
        %v1923 = vmul.f32 %v716, %v1922
        %v1924 = vmul.f32 %v1912, 3.8918573e-05
        %v1925 = vadd.f32 %v1924, 0.001143296
        %v1926 = vmul.f32 %v1912, %v1925
        %v1927 = vadd.f32 %v1926, 0.014752088
        %v1928 = vmul.f32 %v1912, %v1927
        %v1929 = vadd.f32 %v1928, 0.112945676
        %v1930 = vmul.f32 %v1912, %v1929
        %v1931 = vadd.f32 %v1930, 0.4994258
        %v1932 = vmul.f32 %v1912, %v1931
        %v1933 = vadd.f32 %v1932, 1.0
        %v1934 = vrcp.pop %v1933
        %v1935 = vmul.f32 %v1933, %v1934
        %v1936 = vsub.f32 1.0, %v1935
        %v1937 = vmul.f32 %v1934, %v1936
        %v1938 = vadd.f32 %v1934, %v1937
        %vm1939 = vweird.f32 %v1933
        %vm1940 = vweird.f32 %v1934
        %vm1941 = vmor %vm1939, %vm1940
        %v1942 = vsel %vm1941, %v1934, %v1938
        %v1943 = vand.u32 2147483647, %v1933
        %vm1944 = vcmp.eq.f32.partialorder %v1943, 8.507059e+37
        %v1945 = vand.u32 %v1933, 2147483648
        %v1946 = vor.u32 1.1754944e-38, %v1945
        %v1947 = vsel %vm1944, %v1946, %v1942
        %v1948 = vmul.f32 %v1923, %v1947
        %v1949 = vmin.f32 %v1948, 1.0
        %v1950 = vmax.f32 %v1949, -1.0
        %v1951 = vmul.f32 %v717, %v717
        %v1952 = vmin.f32 16.0, %v1951
        %v1953 = vmul.f32 %v1952, 2.1237322e-06
        %v1954 = vadd.f32 %v1953, 0.00028619796
        %v1955 = vmul.f32 %v1952, %v1954
        %v1956 = vadd.f32 %v1955, 0.0036580483
        %v1957 = vmul.f32 %v1952, %v1956
        %v1958 = vadd.f32 %v1957, 0.05243302
        %v1959 = vmul.f32 %v1952, %v1958
        %v1960 = vadd.f32 %v1959, 0.18741608
        %v1961 = vmul.f32 %v1952, %v1960
        %v1962 = vadd.f32 %v1961, 1.1283791
        %v1963 = vmul.f32 %v717, %v1962
        %v1964 = vmul.f32 %v1952, 3.8918573e-05
        %v1965 = vadd.f32 %v1964, 0.001143296
        %v1966 = vmul.f32 %v1952, %v1965
        %v1967 = vadd.f32 %v1966, 0.014752088
        %v1968 = vmul.f32 %v1952, %v1967
        %v1969 = vadd.f32 %v1968, 0.112945676
        %v1970 = vmul.f32 %v1952, %v1969
        %v1971 = vadd.f32 %v1970, 0.4994258
        %v1972 = vmul.f32 %v1952, %v1971
        %v1973 = vadd.f32 %v1972, 1.0
        %v1974 = vrcp.pop %v1973
        %v1975 = vmul.f32 %v1973, %v1974
        %v1976 = vsub.f32 1.0, %v1975
        %v1977 = vmul.f32 %v1974, %v1976
        %v1978 = vadd.f32 %v1974, %v1977
        %vm1979 = vweird.f32 %v1973
        %vm1980 = vweird.f32 %v1974
        %vm1981 = vmor %vm1979, %vm1980
        %v1982 = vsel %vm1981, %v1974, %v1978
        %v1983 = vand.u32 2147483647, %v1973
        %vm1984 = vcmp.eq.f32.partialorder %v1983, 8.507059e+37
        %v1985 = vand.u32 %v1973, 2147483648
        %v1986 = vor.u32 1.1754944e-38, %v1985
        %v1987 = vsel %vm1984, %v1986, %v1982
        %v1988 = vmul.f32 %v1963, %v1987
        %v1989 = vmin.f32 %v1988, 1.0
        %v1990 = vmax.f32 %v1989, -1.0
        %v1991 = vmul.f32 %v718, %v718
        %v1992 = vmin.f32 16.0, %v1991
        %v1993 = vmul.f32 %v1992, 2.1237322e-06
        %v1994 = vadd.f32 %v1993, 0.00028619796
        %v1995 = vmul.f32 %v1992, %v1994
        %v1996 = vadd.f32 %v1995, 0.0036580483
        %v1997 = vmul.f32 %v1992, %v1996
        %v1998 = vadd.f32 %v1997, 0.05243302
        %v1999 = vmul.f32 %v1992, %v1998
        %v2000 = vadd.f32 %v1999, 0.18741608
        %v2001 = vmul.f32 %v1992, %v2000
        %v2002 = vadd.f32 %v2001, 1.1283791
        %v2003 = vmul.f32 %v718, %v2002
        %v2004 = vmul.f32 %v1992, 3.8918573e-05
        %v2005 = vadd.f32 %v2004, 0.001143296
        %v2006 = vmul.f32 %v1992, %v2005
        %v2007 = vadd.f32 %v2006, 0.014752088
        %v2008 = vmul.f32 %v1992, %v2007
        %v2009 = vadd.f32 %v2008, 0.112945676
        %v2010 = vmul.f32 %v1992, %v2009
        %v2011 = vadd.f32 %v2010, 0.4994258
        %v2012 = vmul.f32 %v1992, %v2011
        %v2013 = vadd.f32 %v2012, 1.0
        %v2014 = vrcp.pop %v2013
        %v2015 = vmul.f32 %v2013, %v2014
        %v2016 = vsub.f32 1.0, %v2015
        %v2017 = vmul.f32 %v2014, %v2016
        %v2018 = vadd.f32 %v2014, %v2017
        %vm2019 = vweird.f32 %v2013
        %vm2020 = vweird.f32 %v2014
        %vm2021 = vmor %vm2019, %vm2020
        %v2022 = vsel %vm2021, %v2014, %v2018
        %v2023 = vand.u32 2147483647, %v2013
        %vm2024 = vcmp.eq.f32.partialorder %v2023, 8.507059e+37
        %v2025 = vand.u32 %v2013, 2147483648
        %v2026 = vor.u32 1.1754944e-38, %v2025
        %v2027 = vsel %vm2024, %v2026, %v2022
        %v2028 = vmul.f32 %v2003, %v2027
        %v2029 = vmin.f32 %v2028, 1.0
        %v2030 = vmax.f32 %v2029, -1.0
        %v2031 = vmul.f32 %v719, %v719
        %v2032 = vmin.f32 16.0, %v2031
        %v2033 = vmul.f32 %v2032, 2.1237322e-06
        %v2034 = vadd.f32 %v2033, 0.00028619796
        %v2035 = vmul.f32 %v2032, %v2034
        %v2036 = vadd.f32 %v2035, 0.0036580483
        %v2037 = vmul.f32 %v2032, %v2036
        %v2038 = vadd.f32 %v2037, 0.05243302
        %v2039 = vmul.f32 %v2032, %v2038
        %v2040 = vadd.f32 %v2039, 0.18741608
        %v2041 = vmul.f32 %v2032, %v2040
        %v2042 = vadd.f32 %v2041, 1.1283791
        %v2043 = vmul.f32 %v719, %v2042
        %v2044 = vmul.f32 %v2032, 3.8918573e-05
        %v2045 = vadd.f32 %v2044, 0.001143296
        %v2046 = vmul.f32 %v2032, %v2045
        %v2047 = vadd.f32 %v2046, 0.014752088
        %v2048 = vmul.f32 %v2032, %v2047
        %v2049 = vadd.f32 %v2048, 0.112945676
        %v2050 = vmul.f32 %v2032, %v2049
        %v2051 = vadd.f32 %v2050, 0.4994258
        %v2052 = vmul.f32 %v2032, %v2051
        %v2053 = vadd.f32 %v2052, 1.0
        %v2054 = vrcp.pop %v2053
        %v2055 = vmul.f32 %v2053, %v2054
        %v2056 = vsub.f32 1.0, %v2055
        %v2057 = vmul.f32 %v2054, %v2056
        %v2058 = vadd.f32 %v2054, %v2057
        %vm2059 = vweird.f32 %v2053
        %vm2060 = vweird.f32 %v2054
        %vm2061 = vmor %vm2059, %vm2060
        %v2062 = vsel %vm2061, %v2054, %v2058
        %v2063 = vand.u32 2147483647, %v2053
        %vm2064 = vcmp.eq.f32.partialorder %v2063, 8.507059e+37
        %v2065 = vand.u32 %v2053, 2147483648
        %v2066 = vor.u32 1.1754944e-38, %v2065
        %v2067 = vsel %vm2064, %v2066, %v2062
        %v2068 = vmul.f32 %v2043, %v2067
        %v2069 = vmin.f32 %v2068, 1.0
        %v2070 = vmax.f32 %v2069, -1.0
        %v2071 = vmul.f32 %v720, %v720
        %v2072 = vmin.f32 16.0, %v2071
        %v2073 = vmul.f32 %v2072, 2.1237322e-06
        %v2074 = vadd.f32 %v2073, 0.00028619796
        %v2075 = vmul.f32 %v2072, %v2074
        %v2076 = vadd.f32 %v2075, 0.0036580483
        %v2077 = vmul.f32 %v2072, %v2076
        %v2078 = vadd.f32 %v2077, 0.05243302
        %v2079 = vmul.f32 %v2072, %v2078
        %v2080 = vadd.f32 %v2079, 0.18741608
        %v2081 = vmul.f32 %v2072, %v2080
        %v2082 = vadd.f32 %v2081, 1.1283791
        %v2083 = vmul.f32 %v720, %v2082
        %v2084 = vmul.f32 %v2072, 3.8918573e-05
        %v2085 = vadd.f32 %v2084, 0.001143296
        %v2086 = vmul.f32 %v2072, %v2085
        %v2087 = vadd.f32 %v2086, 0.014752088
        %v2088 = vmul.f32 %v2072, %v2087
        %v2089 = vadd.f32 %v2088, 0.112945676
        %v2090 = vmul.f32 %v2072, %v2089
        %v2091 = vadd.f32 %v2090, 0.4994258
        %v2092 = vmul.f32 %v2072, %v2091
        %v2093 = vadd.f32 %v2092, 1.0
        %v2094 = vrcp.pop %v2093
        %v2095 = vmul.f32 %v2093, %v2094
        %v2096 = vsub.f32 1.0, %v2095
        %v2097 = vmul.f32 %v2094, %v2096
        %v2098 = vadd.f32 %v2094, %v2097
        %vm2099 = vweird.f32 %v2093
        %vm2100 = vweird.f32 %v2094
        %vm2101 = vmor %vm2099, %vm2100
        %v2102 = vsel %vm2101, %v2094, %v2098
        %v2103 = vand.u32 2147483647, %v2093
        %vm2104 = vcmp.eq.f32.partialorder %v2103, 8.507059e+37
        %v2105 = vand.u32 %v2093, 2147483648
        %v2106 = vor.u32 1.1754944e-38, %v2105
        %v2107 = vsel %vm2104, %v2106, %v2102
        %v2108 = vmul.f32 %v2083, %v2107
        %v2109 = vmin.f32 %v2108, 1.0
        %v2110 = vmax.f32 %v2109, -1.0
        %v2111 = vmul.f32 %v721, %v721
        %v2112 = vmin.f32 16.0, %v2111
        %v2113 = vmul.f32 %v2112, 2.1237322e-06
        %v2114 = vadd.f32 %v2113, 0.00028619796
        %v2115 = vmul.f32 %v2112, %v2114
        %v2116 = vadd.f32 %v2115, 0.0036580483
        %v2117 = vmul.f32 %v2112, %v2116
        %v2118 = vadd.f32 %v2117, 0.05243302
        %v2119 = vmul.f32 %v2112, %v2118
        %v2120 = vadd.f32 %v2119, 0.18741608
        %v2121 = vmul.f32 %v2112, %v2120
        %v2122 = vadd.f32 %v2121, 1.1283791
        %v2123 = vmul.f32 %v721, %v2122
        %v2124 = vmul.f32 %v2112, 3.8918573e-05
        %v2125 = vadd.f32 %v2124, 0.001143296
        %v2126 = vmul.f32 %v2112, %v2125
        %v2127 = vadd.f32 %v2126, 0.014752088
        %v2128 = vmul.f32 %v2112, %v2127
        %v2129 = vadd.f32 %v2128, 0.112945676
        %v2130 = vmul.f32 %v2112, %v2129
        %v2131 = vadd.f32 %v2130, 0.4994258
        %v2132 = vmul.f32 %v2112, %v2131
        %v2133 = vadd.f32 %v2132, 1.0
        %v2134 = vrcp.pop %v2133
        %v2135 = vmul.f32 %v2133, %v2134
        %v2136 = vsub.f32 1.0, %v2135
        %v2137 = vmul.f32 %v2134, %v2136
        %v2138 = vadd.f32 %v2134, %v2137
        %vm2139 = vweird.f32 %v2133
        %vm2140 = vweird.f32 %v2134
        %vm2141 = vmor %vm2139, %vm2140
        %v2142 = vsel %vm2141, %v2134, %v2138
        %v2143 = vand.u32 2147483647, %v2133
        %vm2144 = vcmp.eq.f32.partialorder %v2143, 8.507059e+37
        %v2145 = vand.u32 %v2133, 2147483648
        %v2146 = vor.u32 1.1754944e-38, %v2145
        %v2147 = vsel %vm2144, %v2146, %v2142
        %v2148 = vmul.f32 %v2123, %v2147
        %v2149 = vmin.f32 %v2148, 1.0
        %v2150 = vmax.f32 %v2149, -1.0
        %v2151 = vmul.f32 %v722, %v722
        %v2152 = vmin.f32 16.0, %v2151
        %v2153 = vmul.f32 %v2152, 2.1237322e-06
        %v2154 = vadd.f32 %v2153, 0.00028619796
        %v2155 = vmul.f32 %v2152, %v2154
        %v2156 = vadd.f32 %v2155, 0.0036580483
        %v2157 = vmul.f32 %v2152, %v2156
        %v2158 = vadd.f32 %v2157, 0.05243302
        %v2159 = vmul.f32 %v2152, %v2158
        %v2160 = vadd.f32 %v2159, 0.18741608
        %v2161 = vmul.f32 %v2152, %v2160
        %v2162 = vadd.f32 %v2161, 1.1283791
        %v2163 = vmul.f32 %v722, %v2162
        %v2164 = vmul.f32 %v2152, 3.8918573e-05
        %v2165 = vadd.f32 %v2164, 0.001143296
        %v2166 = vmul.f32 %v2152, %v2165
        %v2167 = vadd.f32 %v2166, 0.014752088
        %v2168 = vmul.f32 %v2152, %v2167
        %v2169 = vadd.f32 %v2168, 0.112945676
        %v2170 = vmul.f32 %v2152, %v2169
        %v2171 = vadd.f32 %v2170, 0.4994258
        %v2172 = vmul.f32 %v2152, %v2171
        %v2173 = vadd.f32 %v2172, 1.0
        %v2174 = vrcp.pop %v2173
        %v2175 = vmul.f32 %v2173, %v2174
        %v2176 = vsub.f32 1.0, %v2175
        %v2177 = vmul.f32 %v2174, %v2176
        %v2178 = vadd.f32 %v2174, %v2177
        %vm2179 = vweird.f32 %v2173
        %vm2180 = vweird.f32 %v2174
        %vm2181 = vmor %vm2179, %vm2180
        %v2182 = vsel %vm2181, %v2174, %v2178
        %v2183 = vand.u32 2147483647, %v2173
        %vm2184 = vcmp.eq.f32.partialorder %v2183, 8.507059e+37
        %v2185 = vand.u32 %v2173, 2147483648
        %v2186 = vor.u32 1.1754944e-38, %v2185
        %v2187 = vsel %vm2184, %v2186, %v2182
        %v2188 = vmul.f32 %v2163, %v2187
        %v2189 = vmin.f32 %v2188, 1.0
        %v2190 = vmax.f32 %v2189, -1.0
        %v2191 = vmul.f32 %v723, %v723
        %v2192 = vmin.f32 16.0, %v2191
        %v2193 = vmul.f32 %v2192, 2.1237322e-06
        %v2194 = vadd.f32 %v2193, 0.00028619796
        %v2195 = vmul.f32 %v2192, %v2194
        %v2196 = vadd.f32 %v2195, 0.0036580483
        %v2197 = vmul.f32 %v2192, %v2196
        %v2198 = vadd.f32 %v2197, 0.05243302
        %v2199 = vmul.f32 %v2192, %v2198
        %v2200 = vadd.f32 %v2199, 0.18741608
        %v2201 = vmul.f32 %v2192, %v2200
        %v2202 = vadd.f32 %v2201, 1.1283791
        %v2203 = vmul.f32 %v723, %v2202
        %v2204 = vmul.f32 %v2192, 3.8918573e-05
        %v2205 = vadd.f32 %v2204, 0.001143296
        %v2206 = vmul.f32 %v2192, %v2205
        %v2207 = vadd.f32 %v2206, 0.014752088
        %v2208 = vmul.f32 %v2192, %v2207
        %v2209 = vadd.f32 %v2208, 0.112945676
        %v2210 = vmul.f32 %v2192, %v2209
        %v2211 = vadd.f32 %v2210, 0.4994258
        %v2212 = vmul.f32 %v2192, %v2211
        %v2213 = vadd.f32 %v2212, 1.0
        %v2214 = vrcp.pop %v2213
        %v2215 = vmul.f32 %v2213, %v2214
        %v2216 = vsub.f32 1.0, %v2215
        %v2217 = vmul.f32 %v2214, %v2216
        %v2218 = vadd.f32 %v2214, %v2217
        %vm2219 = vweird.f32 %v2213
        %vm2220 = vweird.f32 %v2214
        %vm2221 = vmor %vm2219, %vm2220
        %v2222 = vsel %vm2221, %v2214, %v2218
        %v2223 = vand.u32 2147483647, %v2213
        %vm2224 = vcmp.eq.f32.partialorder %v2223, 8.507059e+37
        %v2225 = vand.u32 %v2213, 2147483648
        %v2226 = vor.u32 1.1754944e-38, %v2225
        %v2227 = vsel %vm2224, %v2226, %v2222
        %v2228 = vmul.f32 %v2203, %v2227
        %v2229 = vmin.f32 %v2228, 1.0
        %v2230 = vmax.f32 %v2229, -1.0
        %v2231 = vmul.f32 %v724, %v724
        %v2232 = vmin.f32 16.0, %v2231
        %v2233 = vmul.f32 %v2232, 2.1237322e-06
        %v2234 = vadd.f32 %v2233, 0.00028619796
        %v2235 = vmul.f32 %v2232, %v2234
        %v2236 = vadd.f32 %v2235, 0.0036580483
        %v2237 = vmul.f32 %v2232, %v2236
        %v2238 = vadd.f32 %v2237, 0.05243302
        %v2239 = vmul.f32 %v2232, %v2238
        %v2240 = vadd.f32 %v2239, 0.18741608
        %v2241 = vmul.f32 %v2232, %v2240
        %v2242 = vadd.f32 %v2241, 1.1283791
        %v2243 = vmul.f32 %v724, %v2242
        %v2244 = vmul.f32 %v2232, 3.8918573e-05
        %v2245 = vadd.f32 %v2244, 0.001143296
        %v2246 = vmul.f32 %v2232, %v2245
        %v2247 = vadd.f32 %v2246, 0.014752088
        %v2248 = vmul.f32 %v2232, %v2247
        %v2249 = vadd.f32 %v2248, 0.112945676
        %v2250 = vmul.f32 %v2232, %v2249
        %v2251 = vadd.f32 %v2250, 0.4994258
        %v2252 = vmul.f32 %v2232, %v2251
        %v2253 = vadd.f32 %v2252, 1.0
        %v2254 = vrcp.pop %v2253
        %v2255 = vmul.f32 %v2253, %v2254
        %v2256 = vsub.f32 1.0, %v2255
        %v2257 = vmul.f32 %v2254, %v2256
        %v2258 = vadd.f32 %v2254, %v2257
        %vm2259 = vweird.f32 %v2253
        %vm2260 = vweird.f32 %v2254
        %vm2261 = vmor %vm2259, %vm2260
        %v2262 = vsel %vm2261, %v2254, %v2258
        %v2263 = vand.u32 2147483647, %v2253
        %vm2264 = vcmp.eq.f32.partialorder %v2263, 8.507059e+37
        %v2265 = vand.u32 %v2253, 2147483648
        %v2266 = vor.u32 1.1754944e-38, %v2265
        %v2267 = vsel %vm2264, %v2266, %v2262
        %v2268 = vmul.f32 %v2243, %v2267
        %v2269 = vmin.f32 %v2268, 1.0
        %v2270 = vmax.f32 %v2269, -1.0
        %v2271 = vmul.f32 %v725, %v725
        %v2272 = vmin.f32 16.0, %v2271
        %v2273 = vmul.f32 %v2272, 2.1237322e-06
        %v2274 = vadd.f32 %v2273, 0.00028619796
        %v2275 = vmul.f32 %v2272, %v2274
        %v2276 = vadd.f32 %v2275, 0.0036580483
        %v2277 = vmul.f32 %v2272, %v2276
        %v2278 = vadd.f32 %v2277, 0.05243302
        %v2279 = vmul.f32 %v2272, %v2278
        %v2280 = vadd.f32 %v2279, 0.18741608
        %v2281 = vmul.f32 %v2272, %v2280
        %v2282 = vadd.f32 %v2281, 1.1283791
        %v2283 = vmul.f32 %v725, %v2282
        %v2284 = vmul.f32 %v2272, 3.8918573e-05
        %v2285 = vadd.f32 %v2284, 0.001143296
        %v2286 = vmul.f32 %v2272, %v2285
        %v2287 = vadd.f32 %v2286, 0.014752088
        %v2288 = vmul.f32 %v2272, %v2287
        %v2289 = vadd.f32 %v2288, 0.112945676
        %v2290 = vmul.f32 %v2272, %v2289
        %v2291 = vadd.f32 %v2290, 0.4994258
        %v2292 = vmul.f32 %v2272, %v2291
        %v2293 = vadd.f32 %v2292, 1.0
        %v2294 = vrcp.pop %v2293
        %v2295 = vmul.f32 %v2293, %v2294
        %v2296 = vsub.f32 1.0, %v2295
        %v2297 = vmul.f32 %v2294, %v2296
        %v2298 = vadd.f32 %v2294, %v2297
        %vm2299 = vweird.f32 %v2293
        %vm2300 = vweird.f32 %v2294
        %vm2301 = vmor %vm2299, %vm2300
        %v2302 = vsel %vm2301, %v2294, %v2298
        %v2303 = vand.u32 2147483647, %v2293
        %vm2304 = vcmp.eq.f32.partialorder %v2303, 8.507059e+37
        %v2305 = vand.u32 %v2293, 2147483648
        %v2306 = vor.u32 1.1754944e-38, %v2305
        %v2307 = vsel %vm2304, %v2306, %v2302
        %v2308 = vmul.f32 %v2283, %v2307
        %v2309 = vmin.f32 %v2308, 1.0
        %v2310 = vmax.f32 %v2309, -1.0
        %v2311 = vmul.f32 %v726, %v726
        %v2312 = vmin.f32 16.0, %v2311
        %v2313 = vmul.f32 %v2312, 2.1237322e-06
        %v2314 = vadd.f32 %v2313, 0.00028619796
        %v2315 = vmul.f32 %v2312, %v2314
        %v2316 = vadd.f32 %v2315, 0.0036580483
        %v2317 = vmul.f32 %v2312, %v2316
        %v2318 = vadd.f32 %v2317, 0.05243302
        %v2319 = vmul.f32 %v2312, %v2318
        %v2320 = vadd.f32 %v2319, 0.18741608
        %v2321 = vmul.f32 %v2312, %v2320
        %v2322 = vadd.f32 %v2321, 1.1283791
        %v2323 = vmul.f32 %v726, %v2322
        %v2324 = vmul.f32 %v2312, 3.8918573e-05
        %v2325 = vadd.f32 %v2324, 0.001143296
        %v2326 = vmul.f32 %v2312, %v2325
        %v2327 = vadd.f32 %v2326, 0.014752088
        %v2328 = vmul.f32 %v2312, %v2327
        %v2329 = vadd.f32 %v2328, 0.112945676
        %v2330 = vmul.f32 %v2312, %v2329
        %v2331 = vadd.f32 %v2330, 0.4994258
        %v2332 = vmul.f32 %v2312, %v2331
        %v2333 = vadd.f32 %v2332, 1.0
        %v2334 = vrcp.pop %v2333
        %v2335 = vmul.f32 %v2333, %v2334
        %v2336 = vsub.f32 1.0, %v2335
        %v2337 = vmul.f32 %v2334, %v2336
        %v2338 = vadd.f32 %v2334, %v2337
        %vm2339 = vweird.f32 %v2333
        %vm2340 = vweird.f32 %v2334
        %vm2341 = vmor %vm2339, %vm2340
        %v2342 = vsel %vm2341, %v2334, %v2338
        %v2343 = vand.u32 2147483647, %v2333
        %vm2344 = vcmp.eq.f32.partialorder %v2343, 8.507059e+37
        %v2345 = vand.u32 %v2333, 2147483648
        %v2346 = vor.u32 1.1754944e-38, %v2345
        %v2347 = vsel %vm2344, %v2346, %v2342
        %v2348 = vmul.f32 %v2323, %v2347
        %v2349 = vmin.f32 %v2348, 1.0
        %v2350 = vmax.f32 %v2349, -1.0
        %v2351 = vmul.f32 %v727, %v727
        %v2352 = vmin.f32 16.0, %v2351
        %v2353 = vmul.f32 %v2352, 2.1237322e-06
        %v2354 = vadd.f32 %v2353, 0.00028619796
        %v2355 = vmul.f32 %v2352, %v2354
        %v2356 = vadd.f32 %v2355, 0.0036580483
        %v2357 = vmul.f32 %v2352, %v2356
        %v2358 = vadd.f32 %v2357, 0.05243302
        %v2359 = vmul.f32 %v2352, %v2358
        %v2360 = vadd.f32 %v2359, 0.18741608
        %v2361 = vmul.f32 %v2352, %v2360
        %v2362 = vadd.f32 %v2361, 1.1283791
        %v2363 = vmul.f32 %v727, %v2362
        %v2364 = vmul.f32 %v2352, 3.8918573e-05
        %v2365 = vadd.f32 %v2364, 0.001143296
        %v2366 = vmul.f32 %v2352, %v2365
        %v2367 = vadd.f32 %v2366, 0.014752088
        %v2368 = vmul.f32 %v2352, %v2367
        %v2369 = vadd.f32 %v2368, 0.112945676
        %v2370 = vmul.f32 %v2352, %v2369
        %v2371 = vadd.f32 %v2370, 0.4994258
        %v2372 = vmul.f32 %v2352, %v2371
        %v2373 = vadd.f32 %v2372, 1.0
        %v2374 = vrcp.pop %v2373
        %v2375 = vmul.f32 %v2373, %v2374
        %v2376 = vsub.f32 1.0, %v2375
        %v2377 = vmul.f32 %v2374, %v2376
        %v2378 = vadd.f32 %v2374, %v2377
        %vm2379 = vweird.f32 %v2373
        %vm2380 = vweird.f32 %v2374
        %vm2381 = vmor %vm2379, %vm2380
        %v2382 = vsel %vm2381, %v2374, %v2378
        %v2383 = vand.u32 2147483647, %v2373
        %vm2384 = vcmp.eq.f32.partialorder %v2383, 8.507059e+37
        %v2385 = vand.u32 %v2373, 2147483648
        %v2386 = vor.u32 1.1754944e-38, %v2385
        %v2387 = vsel %vm2384, %v2386, %v2382
        %v2388 = vmul.f32 %v2363, %v2387
        %v2389 = vmin.f32 %v2388, 1.0
        %v2390 = vmax.f32 %v2389, -1.0
        %v2391 = vmul.f32 %v728, %v728
        %v2392 = vmin.f32 16.0, %v2391
        %v2393 = vmul.f32 %v2392, 2.1237322e-06
        %v2394 = vadd.f32 %v2393, 0.00028619796
        %v2395 = vmul.f32 %v2392, %v2394
        %v2396 = vadd.f32 %v2395, 0.0036580483
        %v2397 = vmul.f32 %v2392, %v2396
        %v2398 = vadd.f32 %v2397, 0.05243302
        %v2399 = vmul.f32 %v2392, %v2398
        %v2400 = vadd.f32 %v2399, 0.18741608
        %v2401 = vmul.f32 %v2392, %v2400
        %v2402 = vadd.f32 %v2401, 1.1283791
        %v2403 = vmul.f32 %v728, %v2402
        %v2404 = vmul.f32 %v2392, 3.8918573e-05
        %v2405 = vadd.f32 %v2404, 0.001143296
        %v2406 = vmul.f32 %v2392, %v2405
        %v2407 = vadd.f32 %v2406, 0.014752088
        %v2408 = vmul.f32 %v2392, %v2407
        %v2409 = vadd.f32 %v2408, 0.112945676
        %v2410 = vmul.f32 %v2392, %v2409
        %v2411 = vadd.f32 %v2410, 0.4994258
        %v2412 = vmul.f32 %v2392, %v2411
        %v2413 = vadd.f32 %v2412, 1.0
        %v2414 = vrcp.pop %v2413
        %v2415 = vmul.f32 %v2413, %v2414
        %v2416 = vsub.f32 1.0, %v2415
        %v2417 = vmul.f32 %v2414, %v2416
        %v2418 = vadd.f32 %v2414, %v2417
        %vm2419 = vweird.f32 %v2413
        %vm2420 = vweird.f32 %v2414
        %vm2421 = vmor %vm2419, %vm2420
        %v2422 = vsel %vm2421, %v2414, %v2418
        %v2423 = vand.u32 2147483647, %v2413
        %vm2424 = vcmp.eq.f32.partialorder %v2423, 8.507059e+37
        %v2425 = vand.u32 %v2413, 2147483648
        %v2426 = vor.u32 1.1754944e-38, %v2425
        %v2427 = vsel %vm2424, %v2426, %v2422
        %v2428 = vmul.f32 %v2403, %v2427
        %v2429 = vmin.f32 %v2428, 1.0
        %v2430 = vmax.f32 %v2429, -1.0
        %v2431 = vmul.f32 %v729, %v729
        %v2432 = vmin.f32 16.0, %v2431
        %v2433 = vmul.f32 %v2432, 2.1237322e-06
        %v2434 = vadd.f32 %v2433, 0.00028619796
        %v2435 = vmul.f32 %v2432, %v2434
        %v2436 = vadd.f32 %v2435, 0.0036580483
        %v2437 = vmul.f32 %v2432, %v2436
        %v2438 = vadd.f32 %v2437, 0.05243302
        %v2439 = vmul.f32 %v2432, %v2438
        %v2440 = vadd.f32 %v2439, 0.18741608
        %v2441 = vmul.f32 %v2432, %v2440
        %v2442 = vadd.f32 %v2441, 1.1283791
        %v2443 = vmul.f32 %v729, %v2442
        %v2444 = vmul.f32 %v2432, 3.8918573e-05
        %v2445 = vadd.f32 %v2444, 0.001143296
        %v2446 = vmul.f32 %v2432, %v2445
        %v2447 = vadd.f32 %v2446, 0.014752088
        %v2448 = vmul.f32 %v2432, %v2447
        %v2449 = vadd.f32 %v2448, 0.112945676
        %v2450 = vmul.f32 %v2432, %v2449
        %v2451 = vadd.f32 %v2450, 0.4994258
        %v2452 = vmul.f32 %v2432, %v2451
        %v2453 = vadd.f32 %v2452, 1.0
        %v2454 = vrcp.pop %v2453
        %v2455 = vmul.f32 %v2453, %v2454
        %v2456 = vsub.f32 1.0, %v2455
        %v2457 = vmul.f32 %v2454, %v2456
        %v2458 = vadd.f32 %v2454, %v2457
        %vm2459 = vweird.f32 %v2453
        %vm2460 = vweird.f32 %v2454
        %vm2461 = vmor %vm2459, %vm2460
        %v2462 = vsel %vm2461, %v2454, %v2458
        %v2463 = vand.u32 2147483647, %v2453
        %vm2464 = vcmp.eq.f32.partialorder %v2463, 8.507059e+37
        %v2465 = vand.u32 %v2453, 2147483648
        %v2466 = vor.u32 1.1754944e-38, %v2465
        %v2467 = vsel %vm2464, %v2466, %v2462
        %v2468 = vmul.f32 %v2443, %v2467
        %v2469 = vmin.f32 %v2468, 1.0
        %v2470 = vmax.f32 %v2469, -1.0
        %v2471 = vmul.f32 %v730, %v730
        %v2472 = vmin.f32 16.0, %v2471
        %v2473 = vmul.f32 %v2472, 2.1237322e-06
        %v2474 = vadd.f32 %v2473, 0.00028619796
        %v2475 = vmul.f32 %v2472, %v2474
        %v2476 = vadd.f32 %v2475, 0.0036580483
        %v2477 = vmul.f32 %v2472, %v2476
        %v2478 = vadd.f32 %v2477, 0.05243302
        %v2479 = vmul.f32 %v2472, %v2478
        %v2480 = vadd.f32 %v2479, 0.18741608
        %v2481 = vmul.f32 %v2472, %v2480
        %v2482 = vadd.f32 %v2481, 1.1283791
        %v2483 = vmul.f32 %v730, %v2482
        %v2484 = vmul.f32 %v2472, 3.8918573e-05
        %v2485 = vadd.f32 %v2484, 0.001143296
        %v2486 = vmul.f32 %v2472, %v2485
        %v2487 = vadd.f32 %v2486, 0.014752088
        %v2488 = vmul.f32 %v2472, %v2487
        %v2489 = vadd.f32 %v2488, 0.112945676
        %v2490 = vmul.f32 %v2472, %v2489
        %v2491 = vadd.f32 %v2490, 0.4994258
        %v2492 = vmul.f32 %v2472, %v2491
        %v2493 = vadd.f32 %v2492, 1.0
        %v2494 = vrcp.pop %v2493
        %v2495 = vmul.f32 %v2493, %v2494
        %v2496 = vsub.f32 1.0, %v2495
        %v2497 = vmul.f32 %v2494, %v2496
        %v2498 = vadd.f32 %v2494, %v2497
        %vm2499 = vweird.f32 %v2493
        %vm2500 = vweird.f32 %v2494
        %vm2501 = vmor %vm2499, %vm2500
        %v2502 = vsel %vm2501, %v2494, %v2498
        %v2503 = vand.u32 2147483647, %v2493
        %vm2504 = vcmp.eq.f32.partialorder %v2503, 8.507059e+37
        %v2505 = vand.u32 %v2493, 2147483648
        %v2506 = vor.u32 1.1754944e-38, %v2505
        %v2507 = vsel %vm2504, %v2506, %v2502
        %v2508 = vmul.f32 %v2483, %v2507
        %v2509 = vmin.f32 %v2508, 1.0
        %v2510 = vmax.f32 %v2509, -1.0
        %v2511 = vmul.f32 %v731, %v731
        %v2512 = vmin.f32 16.0, %v2511
        %v2513 = vmul.f32 %v2512, 2.1237322e-06
        %v2514 = vadd.f32 %v2513, 0.00028619796
        %v2515 = vmul.f32 %v2512, %v2514
        %v2516 = vadd.f32 %v2515, 0.0036580483
        %v2517 = vmul.f32 %v2512, %v2516
        %v2518 = vadd.f32 %v2517, 0.05243302
        %v2519 = vmul.f32 %v2512, %v2518
        %v2520 = vadd.f32 %v2519, 0.18741608
        %v2521 = vmul.f32 %v2512, %v2520
        %v2522 = vadd.f32 %v2521, 1.1283791
        %v2523 = vmul.f32 %v731, %v2522
        %v2524 = vmul.f32 %v2512, 3.8918573e-05
        %v2525 = vadd.f32 %v2524, 0.001143296
        %v2526 = vmul.f32 %v2512, %v2525
        %v2527 = vadd.f32 %v2526, 0.014752088
        %v2528 = vmul.f32 %v2512, %v2527
        %v2529 = vadd.f32 %v2528, 0.112945676
        %v2530 = vmul.f32 %v2512, %v2529
        %v2531 = vadd.f32 %v2530, 0.4994258
        %v2532 = vmul.f32 %v2512, %v2531
        %v2533 = vadd.f32 %v2532, 1.0
        %v2534 = vrcp.pop %v2533
        %v2535 = vmul.f32 %v2533, %v2534
        %v2536 = vsub.f32 1.0, %v2535
        %v2537 = vmul.f32 %v2534, %v2536
        %v2538 = vadd.f32 %v2534, %v2537
        %vm2539 = vweird.f32 %v2533
        %vm2540 = vweird.f32 %v2534
        %vm2541 = vmor %vm2539, %vm2540
        %v2542 = vsel %vm2541, %v2534, %v2538
        %v2543 = vand.u32 2147483647, %v2533
        %vm2544 = vcmp.eq.f32.partialorder %v2543, 8.507059e+37
        %v2545 = vand.u32 %v2533, 2147483648
        %v2546 = vor.u32 1.1754944e-38, %v2545
        %v2547 = vsel %vm2544, %v2546, %v2542
        %v2548 = vmul.f32 %v2523, %v2547
        %v2549 = vmin.f32 %v2548, 1.0
        %v2550 = vmax.f32 %v2549, -1.0
        %v2551 = vmul.f32 %v732, %v732
        %v2552 = vmin.f32 16.0, %v2551
        %v2553 = vmul.f32 %v2552, 2.1237322e-06
        %v2554 = vadd.f32 %v2553, 0.00028619796
        %v2555 = vmul.f32 %v2552, %v2554
        %v2556 = vadd.f32 %v2555, 0.0036580483
        %v2557 = vmul.f32 %v2552, %v2556
        %v2558 = vadd.f32 %v2557, 0.05243302
        %v2559 = vmul.f32 %v2552, %v2558
        %v2560 = vadd.f32 %v2559, 0.18741608
        %v2561 = vmul.f32 %v2552, %v2560
        %v2562 = vadd.f32 %v2561, 1.1283791
        %v2563 = vmul.f32 %v732, %v2562
        %v2564 = vmul.f32 %v2552, 3.8918573e-05
        %v2565 = vadd.f32 %v2564, 0.001143296
        %v2566 = vmul.f32 %v2552, %v2565
        %v2567 = vadd.f32 %v2566, 0.014752088
        %v2568 = vmul.f32 %v2552, %v2567
        %v2569 = vadd.f32 %v2568, 0.112945676
        %v2570 = vmul.f32 %v2552, %v2569
        %v2571 = vadd.f32 %v2570, 0.4994258
        %v2572 = vmul.f32 %v2552, %v2571
        %v2573 = vadd.f32 %v2572, 1.0
        %v2574 = vrcp.pop %v2573
        %v2575 = vmul.f32 %v2573, %v2574
        %v2576 = vsub.f32 1.0, %v2575
        %v2577 = vmul.f32 %v2574, %v2576
        %v2578 = vadd.f32 %v2574, %v2577
        %vm2579 = vweird.f32 %v2573
        %vm2580 = vweird.f32 %v2574
        %vm2581 = vmor %vm2579, %vm2580
        %v2582 = vsel %vm2581, %v2574, %v2578
        %v2583 = vand.u32 2147483647, %v2573
        %vm2584 = vcmp.eq.f32.partialorder %v2583, 8.507059e+37
        %v2585 = vand.u32 %v2573, 2147483648
        %v2586 = vor.u32 1.1754944e-38, %v2585
        %v2587 = vsel %vm2584, %v2586, %v2582
        %v2588 = vmul.f32 %v2563, %v2587
        %v2589 = vmin.f32 %v2588, 1.0
        %v2590 = vmax.f32 %v2589, -1.0
        %v2591 = vmul.f32 %v733, %v733
        %v2592 = vmin.f32 16.0, %v2591
        %v2593 = vmul.f32 %v2592, 2.1237322e-06
        %v2594 = vadd.f32 %v2593, 0.00028619796
        %v2595 = vmul.f32 %v2592, %v2594
        %v2596 = vadd.f32 %v2595, 0.0036580483
        %v2597 = vmul.f32 %v2592, %v2596
        %v2598 = vadd.f32 %v2597, 0.05243302
        %v2599 = vmul.f32 %v2592, %v2598
        %v2600 = vadd.f32 %v2599, 0.18741608
        %v2601 = vmul.f32 %v2592, %v2600
        %v2602 = vadd.f32 %v2601, 1.1283791
        %v2603 = vmul.f32 %v733, %v2602
        %v2604 = vmul.f32 %v2592, 3.8918573e-05
        %v2605 = vadd.f32 %v2604, 0.001143296
        %v2606 = vmul.f32 %v2592, %v2605
        %v2607 = vadd.f32 %v2606, 0.014752088
        %v2608 = vmul.f32 %v2592, %v2607
        %v2609 = vadd.f32 %v2608, 0.112945676
        %v2610 = vmul.f32 %v2592, %v2609
        %v2611 = vadd.f32 %v2610, 0.4994258
        %v2612 = vmul.f32 %v2592, %v2611
        %v2613 = vadd.f32 %v2612, 1.0
        %v2614 = vrcp.pop %v2613
        %v2615 = vmul.f32 %v2613, %v2614
        %v2616 = vsub.f32 1.0, %v2615
        %v2617 = vmul.f32 %v2614, %v2616
        %v2618 = vadd.f32 %v2614, %v2617
        %vm2619 = vweird.f32 %v2613
        %vm2620 = vweird.f32 %v2614
        %vm2621 = vmor %vm2619, %vm2620
        %v2622 = vsel %vm2621, %v2614, %v2618
        %v2623 = vand.u32 2147483647, %v2613
        %vm2624 = vcmp.eq.f32.partialorder %v2623, 8.507059e+37
        %v2625 = vand.u32 %v2613, 2147483648
        %v2626 = vor.u32 1.1754944e-38, %v2625
        %v2627 = vsel %vm2624, %v2626, %v2622
        %v2628 = vmul.f32 %v2603, %v2627
        %v2629 = vmin.f32 %v2628, 1.0
        %v2630 = vmax.f32 %v2629, -1.0
        %v2631 = vmul.f32 %v734, %v734
        %v2632 = vmin.f32 16.0, %v2631
        %v2633 = vmul.f32 %v2632, 2.1237322e-06
        %v2634 = vadd.f32 %v2633, 0.00028619796
        %v2635 = vmul.f32 %v2632, %v2634
        %v2636 = vadd.f32 %v2635, 0.0036580483
        %v2637 = vmul.f32 %v2632, %v2636
        %v2638 = vadd.f32 %v2637, 0.05243302
        %v2639 = vmul.f32 %v2632, %v2638
        %v2640 = vadd.f32 %v2639, 0.18741608
        %v2641 = vmul.f32 %v2632, %v2640
        %v2642 = vadd.f32 %v2641, 1.1283791
        %v2643 = vmul.f32 %v734, %v2642
        %v2644 = vmul.f32 %v2632, 3.8918573e-05
        %v2645 = vadd.f32 %v2644, 0.001143296
        %v2646 = vmul.f32 %v2632, %v2645
        %v2647 = vadd.f32 %v2646, 0.014752088
        %v2648 = vmul.f32 %v2632, %v2647
        %v2649 = vadd.f32 %v2648, 0.112945676
        %v2650 = vmul.f32 %v2632, %v2649
        %v2651 = vadd.f32 %v2650, 0.4994258
        %v2652 = vmul.f32 %v2632, %v2651
        %v2653 = vadd.f32 %v2652, 1.0
        %v2654 = vrcp.pop %v2653
        %v2655 = vmul.f32 %v2653, %v2654
        %v2656 = vsub.f32 1.0, %v2655
        %v2657 = vmul.f32 %v2654, %v2656
        %v2658 = vadd.f32 %v2654, %v2657
        %vm2659 = vweird.f32 %v2653
        %vm2660 = vweird.f32 %v2654
        %vm2661 = vmor %vm2659, %vm2660
        %v2662 = vsel %vm2661, %v2654, %v2658
        %v2663 = vand.u32 2147483647, %v2653
        %vm2664 = vcmp.eq.f32.partialorder %v2663, 8.507059e+37
        %v2665 = vand.u32 %v2653, 2147483648
        %v2666 = vor.u32 1.1754944e-38, %v2665
        %v2667 = vsel %vm2664, %v2666, %v2662
        %v2668 = vmul.f32 %v2643, %v2667
        %v2669 = vmin.f32 %v2668, 1.0
        %v2670 = vmax.f32 %v2669, -1.0
        %v2671 = vmul.f32 %v735, %v735
        %v2672 = vmin.f32 16.0, %v2671
        %v2673 = vmul.f32 %v2672, 2.1237322e-06
        %v2674 = vadd.f32 %v2673, 0.00028619796
        %v2675 = vmul.f32 %v2672, %v2674
        %v2676 = vadd.f32 %v2675, 0.0036580483
        %v2677 = vmul.f32 %v2672, %v2676
        %v2678 = vadd.f32 %v2677, 0.05243302
        %v2679 = vmul.f32 %v2672, %v2678
        %v2680 = vadd.f32 %v2679, 0.18741608
        %v2681 = vmul.f32 %v2672, %v2680
        %v2682 = vadd.f32 %v2681, 1.1283791
        %v2683 = vmul.f32 %v735, %v2682
        %v2684 = vmul.f32 %v2672, 3.8918573e-05
        %v2685 = vadd.f32 %v2684, 0.001143296
        %v2686 = vmul.f32 %v2672, %v2685
        %v2687 = vadd.f32 %v2686, 0.014752088
        %v2688 = vmul.f32 %v2672, %v2687
        %v2689 = vadd.f32 %v2688, 0.112945676
        %v2690 = vmul.f32 %v2672, %v2689
        %v2691 = vadd.f32 %v2690, 0.4994258
        %v2692 = vmul.f32 %v2672, %v2691
        %v2693 = vadd.f32 %v2692, 1.0
        %v2694 = vrcp.pop %v2693
        %v2695 = vmul.f32 %v2693, %v2694
        %v2696 = vsub.f32 1.0, %v2695
        %v2697 = vmul.f32 %v2694, %v2696
        %v2698 = vadd.f32 %v2694, %v2697
        %vm2699 = vweird.f32 %v2693
        %vm2700 = vweird.f32 %v2694
        %vm2701 = vmor %vm2699, %vm2700
        %v2702 = vsel %vm2701, %v2694, %v2698
        %v2703 = vand.u32 2147483647, %v2693
        %vm2704 = vcmp.eq.f32.partialorder %v2703, 8.507059e+37
        %v2705 = vand.u32 %v2693, 2147483648
        %v2706 = vor.u32 1.1754944e-38, %v2705
        %v2707 = vsel %vm2704, %v2706, %v2702
        %v2708 = vmul.f32 %v2683, %v2707
        %v2709 = vmin.f32 %v2708, 1.0
        %v2710 = vmax.f32 %v2709, -1.0
        %v2711 = vmul.f32 %v736, %v736
        %v2712 = vmin.f32 16.0, %v2711
        %v2713 = vmul.f32 %v2712, 2.1237322e-06
        %v2714 = vadd.f32 %v2713, 0.00028619796
        %v2715 = vmul.f32 %v2712, %v2714
        %v2716 = vadd.f32 %v2715, 0.0036580483
        %v2717 = vmul.f32 %v2712, %v2716
        %v2718 = vadd.f32 %v2717, 0.05243302
        %v2719 = vmul.f32 %v2712, %v2718
        %v2720 = vadd.f32 %v2719, 0.18741608
        %v2721 = vmul.f32 %v2712, %v2720
        %v2722 = vadd.f32 %v2721, 1.1283791
        %v2723 = vmul.f32 %v736, %v2722
        %v2724 = vmul.f32 %v2712, 3.8918573e-05
        %v2725 = vadd.f32 %v2724, 0.001143296
        %v2726 = vmul.f32 %v2712, %v2725
        %v2727 = vadd.f32 %v2726, 0.014752088
        %v2728 = vmul.f32 %v2712, %v2727
        %v2729 = vadd.f32 %v2728, 0.112945676
        %v2730 = vmul.f32 %v2712, %v2729
        %v2731 = vadd.f32 %v2730, 0.4994258
        %v2732 = vmul.f32 %v2712, %v2731
        %v2733 = vadd.f32 %v2732, 1.0
        %v2734 = vrcp.pop %v2733
        %v2735 = vmul.f32 %v2733, %v2734
        %v2736 = vsub.f32 1.0, %v2735
        %v2737 = vmul.f32 %v2734, %v2736
        %v2738 = vadd.f32 %v2734, %v2737
        %vm2739 = vweird.f32 %v2733
        %vm2740 = vweird.f32 %v2734
        %vm2741 = vmor %vm2739, %vm2740
        %v2742 = vsel %vm2741, %v2734, %v2738
        %v2743 = vand.u32 2147483647, %v2733
        %vm2744 = vcmp.eq.f32.partialorder %v2743, 8.507059e+37
        %v2745 = vand.u32 %v2733, 2147483648
        %v2746 = vor.u32 1.1754944e-38, %v2745
        %v2747 = vsel %vm2744, %v2746, %v2742
        %v2748 = vmul.f32 %v2723, %v2747
        %v2749 = vmin.f32 %v2748, 1.0
        %v2750 = vmax.f32 %v2749, -1.0
        %v2751 = vmul.f32 %v737, %v737
        %v2752 = vmin.f32 16.0, %v2751
        %v2753 = vmul.f32 %v2752, 2.1237322e-06
        %v2754 = vadd.f32 %v2753, 0.00028619796
        %v2755 = vmul.f32 %v2752, %v2754
        %v2756 = vadd.f32 %v2755, 0.0036580483
        %v2757 = vmul.f32 %v2752, %v2756
        %v2758 = vadd.f32 %v2757, 0.05243302
        %v2759 = vmul.f32 %v2752, %v2758
        %v2760 = vadd.f32 %v2759, 0.18741608
        %v2761 = vmul.f32 %v2752, %v2760
        %v2762 = vadd.f32 %v2761, 1.1283791
        %v2763 = vmul.f32 %v737, %v2762
        %v2764 = vmul.f32 %v2752, 3.8918573e-05
        %v2765 = vadd.f32 %v2764, 0.001143296
        %v2766 = vmul.f32 %v2752, %v2765
        %v2767 = vadd.f32 %v2766, 0.014752088
        %v2768 = vmul.f32 %v2752, %v2767
        %v2769 = vadd.f32 %v2768, 0.112945676
        %v2770 = vmul.f32 %v2752, %v2769
        %v2771 = vadd.f32 %v2770, 0.4994258
        %v2772 = vmul.f32 %v2752, %v2771
        %v2773 = vadd.f32 %v2772, 1.0
        %v2774 = vrcp.pop %v2773
        %v2775 = vmul.f32 %v2773, %v2774
        %v2776 = vsub.f32 1.0, %v2775
        %v2777 = vmul.f32 %v2774, %v2776
        %v2778 = vadd.f32 %v2774, %v2777
        %vm2779 = vweird.f32 %v2773
        %vm2780 = vweird.f32 %v2774
        %vm2781 = vmor %vm2779, %vm2780
        %v2782 = vsel %vm2781, %v2774, %v2778
        %v2783 = vand.u32 2147483647, %v2773
        %vm2784 = vcmp.eq.f32.partialorder %v2783, 8.507059e+37
        %v2785 = vand.u32 %v2773, 2147483648
        %v2786 = vor.u32 1.1754944e-38, %v2785
        %v2787 = vsel %vm2784, %v2786, %v2782
        %v2788 = vmul.f32 %v2763, %v2787
        %v2789 = vmin.f32 %v2788, 1.0
        %v2790 = vmax.f32 %v2789, -1.0
        %v2791 = vmul.f32 %v738, %v738
        %v2792 = vmin.f32 16.0, %v2791
        %v2793 = vmul.f32 %v2792, 2.1237322e-06
        %v2794 = vadd.f32 %v2793, 0.00028619796
        %v2795 = vmul.f32 %v2792, %v2794
        %v2796 = vadd.f32 %v2795, 0.0036580483
        %v2797 = vmul.f32 %v2792, %v2796
        %v2798 = vadd.f32 %v2797, 0.05243302
        %v2799 = vmul.f32 %v2792, %v2798
        %v2800 = vadd.f32 %v2799, 0.18741608
        %v2801 = vmul.f32 %v2792, %v2800
        %v2802 = vadd.f32 %v2801, 1.1283791
        %v2803 = vmul.f32 %v738, %v2802
        %v2804 = vmul.f32 %v2792, 3.8918573e-05
        %v2805 = vadd.f32 %v2804, 0.001143296
        %v2806 = vmul.f32 %v2792, %v2805
        %v2807 = vadd.f32 %v2806, 0.014752088
        %v2808 = vmul.f32 %v2792, %v2807
        %v2809 = vadd.f32 %v2808, 0.112945676
        %v2810 = vmul.f32 %v2792, %v2809
        %v2811 = vadd.f32 %v2810, 0.4994258
        %v2812 = vmul.f32 %v2792, %v2811
        %v2813 = vadd.f32 %v2812, 1.0
        %v2814 = vrcp.pop %v2813
        %v2815 = vmul.f32 %v2813, %v2814
        %v2816 = vsub.f32 1.0, %v2815
        %v2817 = vmul.f32 %v2814, %v2816
        %v2818 = vadd.f32 %v2814, %v2817
        %vm2819 = vweird.f32 %v2813
        %vm2820 = vweird.f32 %v2814
        %vm2821 = vmor %vm2819, %vm2820
        %v2822 = vsel %vm2821, %v2814, %v2818
        %v2823 = vand.u32 2147483647, %v2813
        %vm2824 = vcmp.eq.f32.partialorder %v2823, 8.507059e+37
        %v2825 = vand.u32 %v2813, 2147483648
        %v2826 = vor.u32 1.1754944e-38, %v2825
        %v2827 = vsel %vm2824, %v2826, %v2822
        %v2828 = vmul.f32 %v2803, %v2827
        %v2829 = vmin.f32 %v2828, 1.0
        %v2830 = vmax.f32 %v2829, -1.0
        %v2831 = vmul.f32 %v739, %v739
        %v2832 = vmin.f32 16.0, %v2831
        %v2833 = vmul.f32 %v2832, 2.1237322e-06
        %v2834 = vadd.f32 %v2833, 0.00028619796
        %v2835 = vmul.f32 %v2832, %v2834
        %v2836 = vadd.f32 %v2835, 0.0036580483
        %v2837 = vmul.f32 %v2832, %v2836
        %v2838 = vadd.f32 %v2837, 0.05243302
        %v2839 = vmul.f32 %v2832, %v2838
        %v2840 = vadd.f32 %v2839, 0.18741608
        %v2841 = vmul.f32 %v2832, %v2840
        %v2842 = vadd.f32 %v2841, 1.1283791
        %v2843 = vmul.f32 %v739, %v2842
        %v2844 = vmul.f32 %v2832, 3.8918573e-05
        %v2845 = vadd.f32 %v2844, 0.001143296
        %v2846 = vmul.f32 %v2832, %v2845
        %v2847 = vadd.f32 %v2846, 0.014752088
        %v2848 = vmul.f32 %v2832, %v2847
        %v2849 = vadd.f32 %v2848, 0.112945676
        %v2850 = vmul.f32 %v2832, %v2849
        %v2851 = vadd.f32 %v2850, 0.4994258
        %v2852 = vmul.f32 %v2832, %v2851
        %v2853 = vadd.f32 %v2852, 1.0
        %v2854 = vrcp.pop %v2853
        %v2855 = vmul.f32 %v2853, %v2854
        %v2856 = vsub.f32 1.0, %v2855
        %v2857 = vmul.f32 %v2854, %v2856
        %v2858 = vadd.f32 %v2854, %v2857
        %vm2859 = vweird.f32 %v2853
        %vm2860 = vweird.f32 %v2854
        %vm2861 = vmor %vm2859, %vm2860
        %v2862 = vsel %vm2861, %v2854, %v2858
        %v2863 = vand.u32 2147483647, %v2853
        %vm2864 = vcmp.eq.f32.partialorder %v2863, 8.507059e+37
        %v2865 = vand.u32 %v2853, 2147483648
        %v2866 = vor.u32 1.1754944e-38, %v2865
        %v2867 = vsel %vm2864, %v2866, %v2862
        %v2868 = vmul.f32 %v2843, %v2867
        %v2869 = vmin.f32 %v2868, 1.0
        %v2870 = vmax.f32 %v2869, -1.0
        %v2871 = vmul.f32 %v740, %v740
        %v2872 = vmin.f32 16.0, %v2871
        %v2873 = vmul.f32 %v2872, 2.1237322e-06
        %v2874 = vadd.f32 %v2873, 0.00028619796
        %v2875 = vmul.f32 %v2872, %v2874
        %v2876 = vadd.f32 %v2875, 0.0036580483
        %v2877 = vmul.f32 %v2872, %v2876
        %v2878 = vadd.f32 %v2877, 0.05243302
        %v2879 = vmul.f32 %v2872, %v2878
        %v2880 = vadd.f32 %v2879, 0.18741608
        %v2881 = vmul.f32 %v2872, %v2880
        %v2882 = vadd.f32 %v2881, 1.1283791
        %v2883 = vmul.f32 %v740, %v2882
        %v2884 = vmul.f32 %v2872, 3.8918573e-05
        %v2885 = vadd.f32 %v2884, 0.001143296
        %v2886 = vmul.f32 %v2872, %v2885
        %v2887 = vadd.f32 %v2886, 0.014752088
        %v2888 = vmul.f32 %v2872, %v2887
        %v2889 = vadd.f32 %v2888, 0.112945676
        %v2890 = vmul.f32 %v2872, %v2889
        %v2891 = vadd.f32 %v2890, 0.4994258
        %v2892 = vmul.f32 %v2872, %v2891
        %v2893 = vadd.f32 %v2892, 1.0
        %v2894 = vrcp.pop %v2893
        %v2895 = vmul.f32 %v2893, %v2894
        %v2896 = vsub.f32 1.0, %v2895
        %v2897 = vmul.f32 %v2894, %v2896
        %v2898 = vadd.f32 %v2894, %v2897
        %vm2899 = vweird.f32 %v2893
        %vm2900 = vweird.f32 %v2894
        %vm2901 = vmor %vm2899, %vm2900
        %v2902 = vsel %vm2901, %v2894, %v2898
        %v2903 = vand.u32 2147483647, %v2893
        %vm2904 = vcmp.eq.f32.partialorder %v2903, 8.507059e+37
        %v2905 = vand.u32 %v2893, 2147483648
        %v2906 = vor.u32 1.1754944e-38, %v2905
        %v2907 = vsel %vm2904, %v2906, %v2902
        %v2908 = vmul.f32 %v2883, %v2907
        %v2909 = vmin.f32 %v2908, 1.0
        %v2910 = vmax.f32 %v2909, -1.0
        %v2911 = vmul.f32 %v741, %v741
        %v2912 = vmin.f32 16.0, %v2911
        %v2913 = vmul.f32 %v2912, 2.1237322e-06
        %v2914 = vadd.f32 %v2913, 0.00028619796
        %v2915 = vmul.f32 %v2912, %v2914
        %v2916 = vadd.f32 %v2915, 0.0036580483
        %v2917 = vmul.f32 %v2912, %v2916
        %v2918 = vadd.f32 %v2917, 0.05243302
        %v2919 = vmul.f32 %v2912, %v2918
        %v2920 = vadd.f32 %v2919, 0.18741608
        %v2921 = vmul.f32 %v2912, %v2920
        %v2922 = vadd.f32 %v2921, 1.1283791
        %v2923 = vmul.f32 %v741, %v2922
        %v2924 = vmul.f32 %v2912, 3.8918573e-05
        %v2925 = vadd.f32 %v2924, 0.001143296
        %v2926 = vmul.f32 %v2912, %v2925
        %v2927 = vadd.f32 %v2926, 0.014752088
        %v2928 = vmul.f32 %v2912, %v2927
        %v2929 = vadd.f32 %v2928, 0.112945676
        %v2930 = vmul.f32 %v2912, %v2929
        %v2931 = vadd.f32 %v2930, 0.4994258
        %v2932 = vmul.f32 %v2912, %v2931
        %v2933 = vadd.f32 %v2932, 1.0
        %v2934 = vrcp.pop %v2933
        %v2935 = vmul.f32 %v2933, %v2934
        %v2936 = vsub.f32 1.0, %v2935
        %v2937 = vmul.f32 %v2934, %v2936
        %v2938 = vadd.f32 %v2934, %v2937
        %vm2939 = vweird.f32 %v2933
        %vm2940 = vweird.f32 %v2934
        %vm2941 = vmor %vm2939, %vm2940
        %v2942 = vsel %vm2941, %v2934, %v2938
        %v2943 = vand.u32 2147483647, %v2933
        %vm2944 = vcmp.eq.f32.partialorder %v2943, 8.507059e+37
        %v2945 = vand.u32 %v2933, 2147483648
        %v2946 = vor.u32 1.1754944e-38, %v2945
        %v2947 = vsel %vm2944, %v2946, %v2942
        %v2948 = vmul.f32 %v2923, %v2947
        %v2949 = vmin.f32 %v2948, 1.0
        %v2950 = vmax.f32 %v2949, -1.0
        %v2951 = vmul.f32 %v742, %v742
        %v2952 = vmin.f32 16.0, %v2951
        %v2953 = vmul.f32 %v2952, 2.1237322e-06
        %v2954 = vadd.f32 %v2953, 0.00028619796
        %v2955 = vmul.f32 %v2952, %v2954
        %v2956 = vadd.f32 %v2955, 0.0036580483
        %v2957 = vmul.f32 %v2952, %v2956
        %v2958 = vadd.f32 %v2957, 0.05243302
        %v2959 = vmul.f32 %v2952, %v2958
        %v2960 = vadd.f32 %v2959, 0.18741608
        %v2961 = vmul.f32 %v2952, %v2960
        %v2962 = vadd.f32 %v2961, 1.1283791
        %v2963 = vmul.f32 %v742, %v2962
        %v2964 = vmul.f32 %v2952, 3.8918573e-05
        %v2965 = vadd.f32 %v2964, 0.001143296
        %v2966 = vmul.f32 %v2952, %v2965
        %v2967 = vadd.f32 %v2966, 0.014752088
        %v2968 = vmul.f32 %v2952, %v2967
        %v2969 = vadd.f32 %v2968, 0.112945676
        %v2970 = vmul.f32 %v2952, %v2969
        %v2971 = vadd.f32 %v2970, 0.4994258
        %v2972 = vmul.f32 %v2952, %v2971
        %v2973 = vadd.f32 %v2972, 1.0
        %v2974 = vrcp.pop %v2973
        %v2975 = vmul.f32 %v2973, %v2974
        %v2976 = vsub.f32 1.0, %v2975
        %v2977 = vmul.f32 %v2974, %v2976
        %v2978 = vadd.f32 %v2974, %v2977
        %vm2979 = vweird.f32 %v2973
        %vm2980 = vweird.f32 %v2974
        %vm2981 = vmor %vm2979, %vm2980
        %v2982 = vsel %vm2981, %v2974, %v2978
        %v2983 = vand.u32 2147483647, %v2973
        %vm2984 = vcmp.eq.f32.partialorder %v2983, 8.507059e+37
        %v2985 = vand.u32 %v2973, 2147483648
        %v2986 = vor.u32 1.1754944e-38, %v2985
        %v2987 = vsel %vm2984, %v2986, %v2982
        %v2988 = vmul.f32 %v2963, %v2987
        %v2989 = vmin.f32 %v2988, 1.0
        %v2990 = vmax.f32 %v2989, -1.0
        %v2991 = vmul.f32 %v743, %v743
        %v2992 = vmin.f32 16.0, %v2991
        %v2993 = vmul.f32 %v2992, 2.1237322e-06
        %v2994 = vadd.f32 %v2993, 0.00028619796
        %v2995 = vmul.f32 %v2992, %v2994
        %v2996 = vadd.f32 %v2995, 0.0036580483
        %v2997 = vmul.f32 %v2992, %v2996
        %v2998 = vadd.f32 %v2997, 0.05243302
        %v2999 = vmul.f32 %v2992, %v2998
        %v3000 = vadd.f32 %v2999, 0.18741608
        %v3001 = vmul.f32 %v2992, %v3000
        %v3002 = vadd.f32 %v3001, 1.1283791
        %v3003 = vmul.f32 %v743, %v3002
        %v3004 = vmul.f32 %v2992, 3.8918573e-05
        %v3005 = vadd.f32 %v3004, 0.001143296
        %v3006 = vmul.f32 %v2992, %v3005
        %v3007 = vadd.f32 %v3006, 0.014752088
        %v3008 = vmul.f32 %v2992, %v3007
        %v3009 = vadd.f32 %v3008, 0.112945676
        %v3010 = vmul.f32 %v2992, %v3009
        %v3011 = vadd.f32 %v3010, 0.4994258
        %v3012 = vmul.f32 %v2992, %v3011
        %v3013 = vadd.f32 %v3012, 1.0
        %v3014 = vrcp.pop %v3013
        %v3015 = vmul.f32 %v3013, %v3014
        %v3016 = vsub.f32 1.0, %v3015
        %v3017 = vmul.f32 %v3014, %v3016
        %v3018 = vadd.f32 %v3014, %v3017
        %vm3019 = vweird.f32 %v3013
        %vm3020 = vweird.f32 %v3014
        %vm3021 = vmor %vm3019, %vm3020
        %v3022 = vsel %vm3021, %v3014, %v3018
        %v3023 = vand.u32 2147483647, %v3013
        %vm3024 = vcmp.eq.f32.partialorder %v3023, 8.507059e+37
        %v3025 = vand.u32 %v3013, 2147483648
        %v3026 = vor.u32 1.1754944e-38, %v3025
        %v3027 = vsel %vm3024, %v3026, %v3022
        %v3028 = vmul.f32 %v3003, %v3027
        %v3029 = vmin.f32 %v3028, 1.0
        %v3030 = vmax.f32 %v3029, -1.0
        %v3031 = vmul.f32 %v744, %v744
        %v3032 = vmin.f32 16.0, %v3031
        %v3033 = vmul.f32 %v3032, 2.1237322e-06
        %v3034 = vadd.f32 %v3033, 0.00028619796
        %v3035 = vmul.f32 %v3032, %v3034
        %v3036 = vadd.f32 %v3035, 0.0036580483
        %v3037 = vmul.f32 %v3032, %v3036
        %v3038 = vadd.f32 %v3037, 0.05243302
        %v3039 = vmul.f32 %v3032, %v3038
        %v3040 = vadd.f32 %v3039, 0.18741608
        %v3041 = vmul.f32 %v3032, %v3040
        %v3042 = vadd.f32 %v3041, 1.1283791
        %v3043 = vmul.f32 %v744, %v3042
        %v3044 = vmul.f32 %v3032, 3.8918573e-05
        %v3045 = vadd.f32 %v3044, 0.001143296
        %v3046 = vmul.f32 %v3032, %v3045
        %v3047 = vadd.f32 %v3046, 0.014752088
        %v3048 = vmul.f32 %v3032, %v3047
        %v3049 = vadd.f32 %v3048, 0.112945676
        %v3050 = vmul.f32 %v3032, %v3049
        %v3051 = vadd.f32 %v3050, 0.4994258
        %v3052 = vmul.f32 %v3032, %v3051
        %v3053 = vadd.f32 %v3052, 1.0
        %v3054 = vrcp.pop %v3053
        %v3055 = vmul.f32 %v3053, %v3054
        %v3056 = vsub.f32 1.0, %v3055
        %v3057 = vmul.f32 %v3054, %v3056
        %v3058 = vadd.f32 %v3054, %v3057
        %vm3059 = vweird.f32 %v3053
        %vm3060 = vweird.f32 %v3054
        %vm3061 = vmor %vm3059, %vm3060
        %v3062 = vsel %vm3061, %v3054, %v3058
        %v3063 = vand.u32 2147483647, %v3053
        %vm3064 = vcmp.eq.f32.partialorder %v3063, 8.507059e+37
        %v3065 = vand.u32 %v3053, 2147483648
        %v3066 = vor.u32 1.1754944e-38, %v3065
        %v3067 = vsel %vm3064, %v3066, %v3062
        %v3068 = vmul.f32 %v3043, %v3067
        %v3069 = vmin.f32 %v3068, 1.0
        %v3070 = vmax.f32 %v3069, -1.0
        %v3071 = vmul.f32 %v745, %v745
        %v3072 = vmin.f32 16.0, %v3071
        %v3073 = vmul.f32 %v3072, 2.1237322e-06
        %v3074 = vadd.f32 %v3073, 0.00028619796
        %v3075 = vmul.f32 %v3072, %v3074
        %v3076 = vadd.f32 %v3075, 0.0036580483
        %v3077 = vmul.f32 %v3072, %v3076
        %v3078 = vadd.f32 %v3077, 0.05243302
        %v3079 = vmul.f32 %v3072, %v3078
        %v3080 = vadd.f32 %v3079, 0.18741608
        %v3081 = vmul.f32 %v3072, %v3080
        %v3082 = vadd.f32 %v3081, 1.1283791
        %v3083 = vmul.f32 %v745, %v3082
        %v3084 = vmul.f32 %v3072, 3.8918573e-05
        %v3085 = vadd.f32 %v3084, 0.001143296
        %v3086 = vmul.f32 %v3072, %v3085
        %v3087 = vadd.f32 %v3086, 0.014752088
        %v3088 = vmul.f32 %v3072, %v3087
        %v3089 = vadd.f32 %v3088, 0.112945676
        %v3090 = vmul.f32 %v3072, %v3089
        %v3091 = vadd.f32 %v3090, 0.4994258
        %v3092 = vmul.f32 %v3072, %v3091
        %v3093 = vadd.f32 %v3092, 1.0
        %v3094 = vrcp.pop %v3093
        %v3095 = vmul.f32 %v3093, %v3094
        %v3096 = vsub.f32 1.0, %v3095
        %v3097 = vmul.f32 %v3094, %v3096
        %v3098 = vadd.f32 %v3094, %v3097
        %vm3099 = vweird.f32 %v3093
        %vm3100 = vweird.f32 %v3094
        %vm3101 = vmor %vm3099, %vm3100
        %v3102 = vsel %vm3101, %v3094, %v3098
        %v3103 = vand.u32 2147483647, %v3093
        %vm3104 = vcmp.eq.f32.partialorder %v3103, 8.507059e+37
        %v3105 = vand.u32 %v3093, 2147483648
        %v3106 = vor.u32 1.1754944e-38, %v3105
        %v3107 = vsel %vm3104, %v3106, %v3102
        %v3108 = vmul.f32 %v3083, %v3107
        %v3109 = vmin.f32 %v3108, 1.0
        %v3110 = vmax.f32 %v3109, -1.0
        %v3111 = vmul.f32 %v746, %v746
        %v3112 = vmin.f32 16.0, %v3111
        %v3113 = vmul.f32 %v3112, 2.1237322e-06
        %v3114 = vadd.f32 %v3113, 0.00028619796
        %v3115 = vmul.f32 %v3112, %v3114
        %v3116 = vadd.f32 %v3115, 0.0036580483
        %v3117 = vmul.f32 %v3112, %v3116
        %v3118 = vadd.f32 %v3117, 0.05243302
        %v3119 = vmul.f32 %v3112, %v3118
        %v3120 = vadd.f32 %v3119, 0.18741608
        %v3121 = vmul.f32 %v3112, %v3120
        %v3122 = vadd.f32 %v3121, 1.1283791
        %v3123 = vmul.f32 %v746, %v3122
        %v3124 = vmul.f32 %v3112, 3.8918573e-05
        %v3125 = vadd.f32 %v3124, 0.001143296
        %v3126 = vmul.f32 %v3112, %v3125
        %v3127 = vadd.f32 %v3126, 0.014752088
        %v3128 = vmul.f32 %v3112, %v3127
        %v3129 = vadd.f32 %v3128, 0.112945676
        %v3130 = vmul.f32 %v3112, %v3129
        %v3131 = vadd.f32 %v3130, 0.4994258
        %v3132 = vmul.f32 %v3112, %v3131
        %v3133 = vadd.f32 %v3132, 1.0
        %v3134 = vrcp.pop %v3133
        %v3135 = vmul.f32 %v3133, %v3134
        %v3136 = vsub.f32 1.0, %v3135
        %v3137 = vmul.f32 %v3134, %v3136
        %v3138 = vadd.f32 %v3134, %v3137
        %vm3139 = vweird.f32 %v3133
        %vm3140 = vweird.f32 %v3134
        %vm3141 = vmor %vm3139, %vm3140
        %v3142 = vsel %vm3141, %v3134, %v3138
        %v3143 = vand.u32 2147483647, %v3133
        %vm3144 = vcmp.eq.f32.partialorder %v3143, 8.507059e+37
        %v3145 = vand.u32 %v3133, 2147483648
        %v3146 = vor.u32 1.1754944e-38, %v3145
        %v3147 = vsel %vm3144, %v3146, %v3142
        %v3148 = vmul.f32 %v3123, %v3147
        %v3149 = vmin.f32 %v3148, 1.0
        %v3150 = vmax.f32 %v3149, -1.0
        %v3151 = vmul.f32 %v747, %v747
        %v3152 = vmin.f32 16.0, %v3151
        %v3153 = vmul.f32 %v3152, 2.1237322e-06
        %v3154 = vadd.f32 %v3153, 0.00028619796
        %v3155 = vmul.f32 %v3152, %v3154
        %v3156 = vadd.f32 %v3155, 0.0036580483
        %v3157 = vmul.f32 %v3152, %v3156
        %v3158 = vadd.f32 %v3157, 0.05243302
        %v3159 = vmul.f32 %v3152, %v3158
        %v3160 = vadd.f32 %v3159, 0.18741608
        %v3161 = vmul.f32 %v3152, %v3160
        %v3162 = vadd.f32 %v3161, 1.1283791
        %v3163 = vmul.f32 %v747, %v3162
        %v3164 = vmul.f32 %v3152, 3.8918573e-05
        %v3165 = vadd.f32 %v3164, 0.001143296
        %v3166 = vmul.f32 %v3152, %v3165
        %v3167 = vadd.f32 %v3166, 0.014752088
        %v3168 = vmul.f32 %v3152, %v3167
        %v3169 = vadd.f32 %v3168, 0.112945676
        %v3170 = vmul.f32 %v3152, %v3169
        %v3171 = vadd.f32 %v3170, 0.4994258
        %v3172 = vmul.f32 %v3152, %v3171
        %v3173 = vadd.f32 %v3172, 1.0
        %v3174 = vrcp.pop %v3173
        %v3175 = vmul.f32 %v3173, %v3174
        %v3176 = vsub.f32 1.0, %v3175
        %v3177 = vmul.f32 %v3174, %v3176
        %v3178 = vadd.f32 %v3174, %v3177
        %vm3179 = vweird.f32 %v3173
        %vm3180 = vweird.f32 %v3174
        %vm3181 = vmor %vm3179, %vm3180
        %v3182 = vsel %vm3181, %v3174, %v3178
        %v3183 = vand.u32 2147483647, %v3173
        %vm3184 = vcmp.eq.f32.partialorder %v3183, 8.507059e+37
        %v3185 = vand.u32 %v3173, 2147483648
        %v3186 = vor.u32 1.1754944e-38, %v3185
        %v3187 = vsel %vm3184, %v3186, %v3182
        %v3188 = vmul.f32 %v3163, %v3187
        %v3189 = vmin.f32 %v3188, 1.0
        %v3190 = vmax.f32 %v3189, -1.0
        %v3191 = vmul.f32 %v748, %v748
        %v3192 = vmin.f32 16.0, %v3191
        %v3193 = vmul.f32 %v3192, 2.1237322e-06
        %v3194 = vadd.f32 %v3193, 0.00028619796
        %v3195 = vmul.f32 %v3192, %v3194
        %v3196 = vadd.f32 %v3195, 0.0036580483
        %v3197 = vmul.f32 %v3192, %v3196
        %v3198 = vadd.f32 %v3197, 0.05243302
        %v3199 = vmul.f32 %v3192, %v3198
        %v3200 = vadd.f32 %v3199, 0.18741608
        %v3201 = vmul.f32 %v3192, %v3200
        %v3202 = vadd.f32 %v3201, 1.1283791
        %v3203 = vmul.f32 %v748, %v3202
        %v3204 = vmul.f32 %v3192, 3.8918573e-05
        %v3205 = vadd.f32 %v3204, 0.001143296
        %v3206 = vmul.f32 %v3192, %v3205
        %v3207 = vadd.f32 %v3206, 0.014752088
        %v3208 = vmul.f32 %v3192, %v3207
        %v3209 = vadd.f32 %v3208, 0.112945676
        %v3210 = vmul.f32 %v3192, %v3209
        %v3211 = vadd.f32 %v3210, 0.4994258
        %v3212 = vmul.f32 %v3192, %v3211
        %v3213 = vadd.f32 %v3212, 1.0
        %v3214 = vrcp.pop %v3213
        %v3215 = vmul.f32 %v3213, %v3214
        %v3216 = vsub.f32 1.0, %v3215
        %v3217 = vmul.f32 %v3214, %v3216
        %v3218 = vadd.f32 %v3214, %v3217
        %vm3219 = vweird.f32 %v3213
        %vm3220 = vweird.f32 %v3214
        %vm3221 = vmor %vm3219, %vm3220
        %v3222 = vsel %vm3221, %v3214, %v3218
        %v3223 = vand.u32 2147483647, %v3213
        %vm3224 = vcmp.eq.f32.partialorder %v3223, 8.507059e+37
        %v3225 = vand.u32 %v3213, 2147483648
        %v3226 = vor.u32 1.1754944e-38, %v3225
        %v3227 = vsel %vm3224, %v3226, %v3222
        %v3228 = vmul.f32 %v3203, %v3227
        %v3229 = vmin.f32 %v3228, 1.0
        %v3230 = vmax.f32 %v3229, -1.0
        %v3231 = vmul.f32 %v749, %v749
        %v3232 = vmin.f32 16.0, %v3231
        %v3233 = vmul.f32 %v3232, 2.1237322e-06
        %v3234 = vadd.f32 %v3233, 0.00028619796
        %v3235 = vmul.f32 %v3232, %v3234
        %v3236 = vadd.f32 %v3235, 0.0036580483
        %v3237 = vmul.f32 %v3232, %v3236
        %v3238 = vadd.f32 %v3237, 0.05243302
        %v3239 = vmul.f32 %v3232, %v3238
        %v3240 = vadd.f32 %v3239, 0.18741608
        %v3241 = vmul.f32 %v3232, %v3240
        %v3242 = vadd.f32 %v3241, 1.1283791
        %v3243 = vmul.f32 %v749, %v3242
        %v3244 = vmul.f32 %v3232, 3.8918573e-05
        %v3245 = vadd.f32 %v3244, 0.001143296
        %v3246 = vmul.f32 %v3232, %v3245
        %v3247 = vadd.f32 %v3246, 0.014752088
        %v3248 = vmul.f32 %v3232, %v3247
        %v3249 = vadd.f32 %v3248, 0.112945676
        %v3250 = vmul.f32 %v3232, %v3249
        %v3251 = vadd.f32 %v3250, 0.4994258
        %v3252 = vmul.f32 %v3232, %v3251
        %v3253 = vadd.f32 %v3252, 1.0
        %v3254 = vrcp.pop %v3253
        %v3255 = vmul.f32 %v3253, %v3254
        %v3256 = vsub.f32 1.0, %v3255
        %v3257 = vmul.f32 %v3254, %v3256
        %v3258 = vadd.f32 %v3254, %v3257
        %vm3259 = vweird.f32 %v3253
        %vm3260 = vweird.f32 %v3254
        %vm3261 = vmor %vm3259, %vm3260
        %v3262 = vsel %vm3261, %v3254, %v3258
        %v3263 = vand.u32 2147483647, %v3253
        %vm3264 = vcmp.eq.f32.partialorder %v3263, 8.507059e+37
        %v3265 = vand.u32 %v3253, 2147483648
        %v3266 = vor.u32 1.1754944e-38, %v3265
        %v3267 = vsel %vm3264, %v3266, %v3262
        %v3268 = vmul.f32 %v3243, %v3267
        %v3269 = vmin.f32 %v3268, 1.0
        %v3270 = vmax.f32 %v3269, -1.0
        %v3271 = vmul.f32 %v750, %v750
        %v3272 = vmin.f32 16.0, %v3271
        %v3273 = vmul.f32 %v3272, 2.1237322e-06
        %v3274 = vadd.f32 %v3273, 0.00028619796
        %v3275 = vmul.f32 %v3272, %v3274
        %v3276 = vadd.f32 %v3275, 0.0036580483
        %v3277 = vmul.f32 %v3272, %v3276
        %v3278 = vadd.f32 %v3277, 0.05243302
        %v3279 = vmul.f32 %v3272, %v3278
        %v3280 = vadd.f32 %v3279, 0.18741608
        %v3281 = vmul.f32 %v3272, %v3280
        %v3282 = vadd.f32 %v3281, 1.1283791
        %v3283 = vmul.f32 %v750, %v3282
        %v3284 = vmul.f32 %v3272, 3.8918573e-05
        %v3285 = vadd.f32 %v3284, 0.001143296
        %v3286 = vmul.f32 %v3272, %v3285
        %v3287 = vadd.f32 %v3286, 0.014752088
        %v3288 = vmul.f32 %v3272, %v3287
        %v3289 = vadd.f32 %v3288, 0.112945676
        %v3290 = vmul.f32 %v3272, %v3289
        %v3291 = vadd.f32 %v3290, 0.4994258
        %v3292 = vmul.f32 %v3272, %v3291
        %v3293 = vadd.f32 %v3292, 1.0
        %v3294 = vrcp.pop %v3293
        %v3295 = vmul.f32 %v3293, %v3294
        %v3296 = vsub.f32 1.0, %v3295
        %v3297 = vmul.f32 %v3294, %v3296
        %v3298 = vadd.f32 %v3294, %v3297
        %vm3299 = vweird.f32 %v3293
        %vm3300 = vweird.f32 %v3294
        %vm3301 = vmor %vm3299, %vm3300
        %v3302 = vsel %vm3301, %v3294, %v3298
        %v3303 = vand.u32 2147483647, %v3293
        %vm3304 = vcmp.eq.f32.partialorder %v3303, 8.507059e+37
        %v3305 = vand.u32 %v3293, 2147483648
        %v3306 = vor.u32 1.1754944e-38, %v3305
        %v3307 = vsel %vm3304, %v3306, %v3302
        %v3308 = vmul.f32 %v3283, %v3307
        %v3309 = vmin.f32 %v3308, 1.0
        %v3310 = vmax.f32 %v3309, -1.0
        %v3311 = vadd.f32 %v790, 1.0
        %v3312 = vadd.f32 %v830, 1.0
        %v3313 = vadd.f32 %v870, 1.0
        %v3314 = vadd.f32 %v910, 1.0
        %v3315 = vadd.f32 %v950, 1.0
        %v3316 = vadd.f32 %v990, 1.0
        %v3317 = vadd.f32 %v1030, 1.0
        %v3318 = vadd.f32 %v1070, 1.0
        %v3319 = vadd.f32 %v1110, 1.0
        %v3320 = vadd.f32 %v1150, 1.0
        %v3321 = vadd.f32 %v1190, 1.0
        %v3322 = vadd.f32 %v1230, 1.0
        %v3323 = vadd.f32 %v1270, 1.0
        %v3324 = vadd.f32 %v1310, 1.0
        %v3325 = vadd.f32 %v1350, 1.0
        %v3326 = vadd.f32 %v1390, 1.0
        %v3327 = vadd.f32 %v1430, 1.0
        %v3328 = vadd.f32 %v1470, 1.0
        %v3329 = vadd.f32 %v1510, 1.0
        %v3330 = vadd.f32 %v1550, 1.0
        %v3331 = vadd.f32 %v1590, 1.0
        %v3332 = vadd.f32 %v1630, 1.0
        %v3333 = vadd.f32 %v1670, 1.0
        %v3334 = vadd.f32 %v1710, 1.0
        %v3335 = vadd.f32 %v1750, 1.0
        %v3336 = vadd.f32 %v1790, 1.0
        %v3337 = vadd.f32 %v1830, 1.0
        %v3338 = vadd.f32 %v1870, 1.0
        %v3339 = vadd.f32 %v1910, 1.0
        %v3340 = vadd.f32 %v1950, 1.0
        %v3341 = vadd.f32 %v1990, 1.0
        %v3342 = vadd.f32 %v2030, 1.0
        %v3343 = vadd.f32 %v2070, 1.0
        %v3344 = vadd.f32 %v2110, 1.0
        %v3345 = vadd.f32 %v2150, 1.0
        %v3346 = vadd.f32 %v2190, 1.0
        %v3347 = vadd.f32 %v2230, 1.0
        %v3348 = vadd.f32 %v2270, 1.0
        %v3349 = vadd.f32 %v2310, 1.0
        %v3350 = vadd.f32 %v2350, 1.0
        %v3351 = vadd.f32 %v2390, 1.0
        %v3352 = vadd.f32 %v2430, 1.0
        %v3353 = vadd.f32 %v2470, 1.0
        %v3354 = vadd.f32 %v2510, 1.0
        %v3355 = vadd.f32 %v2550, 1.0
        %v3356 = vadd.f32 %v2590, 1.0
        %v3357 = vadd.f32 %v2630, 1.0
        %v3358 = vadd.f32 %v2670, 1.0
        %v3359 = vadd.f32 %v2710, 1.0
        %v3360 = vadd.f32 %v2750, 1.0
        %v3361 = vadd.f32 %v2790, 1.0
        %v3362 = vadd.f32 %v2830, 1.0
        %v3363 = vadd.f32 %v2870, 1.0
        %v3364 = vadd.f32 %v2910, 1.0
        %v3365 = vadd.f32 %v2950, 1.0
        %v3366 = vadd.f32 %v2990, 1.0
        %v3367 = vadd.f32 %v3030, 1.0
        %v3368 = vadd.f32 %v3070, 1.0
        %v3369 = vadd.f32 %v3110, 1.0
        %v3370 = vadd.f32 %v3150, 1.0
        %v3371 = vadd.f32 %v3190, 1.0
        %v3372 = vadd.f32 %v3230, 1.0
        %v3373 = vadd.f32 %v3270, 1.0
        %v3374 = vadd.f32 %v3310, 1.0
        %v3375 = vmul.f32 %v623, %v3311
        %v3376 = vmul.f32 %v624, %v3312
        %v3377 = vmul.f32 %v625, %v3313
        %v3378 = vmul.f32 %v626, %v3314
        %v3379 = vmul.f32 %v627, %v3315
        %v3380 = vmul.f32 %v628, %v3316
        %v3381 = vmul.f32 %v629, %v3317
        %v3382 = vmul.f32 %v630, %v3318
        %v3383 = vmul.f32 %v631, %v3319
        %v3384 = vmul.f32 %v632, %v3320
        %v3385 = vmul.f32 %v633, %v3321
        %v3386 = vmul.f32 %v634, %v3322
        %v3387 = vmul.f32 %v635, %v3323
        %v3388 = vmul.f32 %v636, %v3324
        %v3389 = vmul.f32 %v637, %v3325
        %v3390 = vmul.f32 %v638, %v3326
        %v3391 = vmul.f32 %v639, %v3327
        %v3392 = vmul.f32 %v640, %v3328
        %v3393 = vmul.f32 %v641, %v3329
        %v3394 = vmul.f32 %v642, %v3330
        %v3395 = vmul.f32 %v643, %v3331
        %v3396 = vmul.f32 %v644, %v3332
        %v3397 = vmul.f32 %v645, %v3333
        %v3398 = vmul.f32 %v646, %v3334
        %v3399 = vmul.f32 %v647, %v3335
        %v3400 = vmul.f32 %v648, %v3336
        %v3401 = vmul.f32 %v649, %v3337
        %v3402 = vmul.f32 %v650, %v3338
        %v3403 = vmul.f32 %v651, %v3339
        %v3404 = vmul.f32 %v652, %v3340
        %v3405 = vmul.f32 %v653, %v3341
        %v3406 = vmul.f32 %v654, %v3342
        %v3407 = vmul.f32 %v655, %v3343
        %v3408 = vmul.f32 %v656, %v3344
        %v3409 = vmul.f32 %v657, %v3345
        %v3410 = vmul.f32 %v658, %v3346
        %v3411 = vmul.f32 %v659, %v3347
        %v3412 = vmul.f32 %v660, %v3348
        %v3413 = vmul.f32 %v661, %v3349
        %v3414 = vmul.f32 %v662, %v3350
        %v3415 = vmul.f32 %v663, %v3351
        %v3416 = vmul.f32 %v664, %v3352
        %v3417 = vmul.f32 %v665, %v3353
        %v3418 = vmul.f32 %v666, %v3354
        %v3419 = vmul.f32 %v667, %v3355
        %v3420 = vmul.f32 %v668, %v3356
        %v3421 = vmul.f32 %v669, %v3357
        %v3422 = vmul.f32 %v670, %v3358
        %v3423 = vmul.f32 %v671, %v3359
        %v3424 = vmul.f32 %v672, %v3360
        %v3425 = vmul.f32 %v673, %v3361
        %v3426 = vmul.f32 %v674, %v3362
        %v3427 = vmul.f32 %v675, %v3363
        %v3428 = vmul.f32 %v676, %v3364
        %v3429 = vmul.f32 %v677, %v3365
        %v3430 = vmul.f32 %v678, %v3366
        %v3431 = vmul.f32 %v679, %v3367
        %v3432 = vmul.f32 %v680, %v3368
        %v3433 = vmul.f32 %v681, %v3369
        %v3434 = vmul.f32 %v682, %v3370
        %v3435 = vmul.f32 %v683, %v3371
        %v3436 = vmul.f32 %v684, %v3372
        %v3437 = vmul.f32 %v685, %v3373
        %v3438 = vmul.f32 %v686, %v3374
        %v3439 = vpack.c.bf16 %v3377, %v3375
        %v3440 = vpack.c.bf16 %v3378, %v3376
        %v3441 = vpack.c.bf16 %v3381, %v3379
        %v3442 = vpack.c.bf16 %v3382, %v3380
        %v3443 = vpack.c.bf16 %v3385, %v3383
        %v3444 = vpack.c.bf16 %v3386, %v3384
        %v3445 = vpack.c.bf16 %v3389, %v3387
        %v3446 = vpack.c.bf16 %v3390, %v3388
        %v3447 = vpack.c.bf16 %v3393, %v3391
        %v3448 = vpack.c.bf16 %v3394, %v3392
        %v3449 = vpack.c.bf16 %v3397, %v3395
        %v3450 = vpack.c.bf16 %v3398, %v3396
        %v3451 = vpack.c.bf16 %v3401, %v3399
        %v3452 = vpack.c.bf16 %v3402, %v3400
        %v3453 = vpack.c.bf16 %v3405, %v3403
        %v3454 = vpack.c.bf16 %v3406, %v3404
        %v3455 = vpack.c.bf16 %v3409, %v3407
        %v3456 = vpack.c.bf16 %v3410, %v3408
        %v3457 = vpack.c.bf16 %v3413, %v3411
        %v3458 = vpack.c.bf16 %v3414, %v3412
        %v3459 = vpack.c.bf16 %v3417, %v3415
        %v3460 = vpack.c.bf16 %v3418, %v3416
        %v3461 = vpack.c.bf16 %v3421, %v3419
        %v3462 = vpack.c.bf16 %v3422, %v3420
        %v3463 = vpack.c.bf16 %v3425, %v3423
        %v3464 = vpack.c.bf16 %v3426, %v3424
        %v3465 = vpack.c.bf16 %v3429, %v3427
        %v3466 = vpack.c.bf16 %v3430, %v3428
        %v3467 = vpack.c.bf16 %v3433, %v3431
        %v3468 = vpack.c.bf16 %v3434, %v3432
        %v3469 = vpack.c.bf16 %v3437, %v3435
        %v3470 = vpack.c.bf16 %v3438, %v3436
        %v3471 = vld [vmem:[#allocation8] sm:$0xf]
        %v3472 = vld [vmem:[#allocation8 + $0x4] sm:$0xf]
        %v3473 = vld [vmem:[#allocation8 + $0x8] sm:$0xf]
        %v3474 = vld [vmem:[#allocation8 + $0xc] sm:$0xf]
        %v3475 = vld [vmem:[#allocation8 + $0x10] sm:$0xf]
        %v3476 = vld [vmem:[#allocation8 + $0x14] sm:$0xf]
        %v3477 = vld [vmem:[#allocation8 + $0x18] sm:$0xf]
        %v3478 = vld [vmem:[#allocation8 + $0x1c] sm:$0xf]
        %v3479 = vld [vmem:[#allocation8 + $0x20] sm:$0xf]
        %v3480 = vld [vmem:[#allocation8 + $0x24] sm:$0xf]
        %v3481 = vld [vmem:[#allocation8 + $0x28] sm:$0xf]
        %v3482 = vld [vmem:[#allocation8 + $0x2c] sm:$0xf]
        %v3483 = vld [vmem:[#allocation8 + $0x30] sm:$0xf]
        %v3484 = vld [vmem:[#allocation8 + $0x34] sm:$0xf]
        %v3485 = vld [vmem:[#allocation8 + $0x38] sm:$0xf]
        %v3486 = vld [vmem:[#allocation8 + $0x3c] sm:$0xf]
        %v3487 = vld [vmem:[#allocation8 + $0x40] sm:$0xf]
        %v3488 = vld [vmem:[#allocation8 + $0x44] sm:$0xf]
        %v3489 = vld [vmem:[#allocation8 + $0x48] sm:$0xf]
        %v3490 = vld [vmem:[#allocation8 + $0x4c] sm:$0xf]
        %v3491 = vld [vmem:[#allocation8 + $0x50] sm:$0xf]
        %v3492 = vld [vmem:[#allocation8 + $0x54] sm:$0xf]
        %v3493 = vld [vmem:[#allocation8 + $0x58] sm:$0xf]
        %v3494 = vld [vmem:[#allocation8 + $0x5c] sm:$0xf]
        %v3495 = vld [vmem:[#allocation8 + $0x60] sm:$0xf]
        %v3496 = vld [vmem:[#allocation8 + $0x64] sm:$0xf]
        %v3497 = vld [vmem:[#allocation8 + $0x68] sm:$0xf]
        %v3498 = vld [vmem:[#allocation8 + $0x6c] sm:$0xf]
        %v3499 = vld [vmem:[#allocation8 + $0x70] sm:$0xf]
        %v3500 = vld [vmem:[#allocation8 + $0x74] sm:$0xf]
        %v3501 = vld [vmem:[#allocation8 + $0x78] sm:$0xf]
        %v3502 = vld [vmem:[#allocation8 + $0x7c] sm:$0xf]
        %v3503 = vld [vmem:[%s4] sm:$0x1]
        %v3505 = vperm.slane %v3503, 0
        %v3539 = vunpack.c.l.b16 %v3471
        %v3540 = vunpack.c.l.b16 %v3472
        %v3541 = vunpack.c.l.b16 %v3473
        %v3542 = vunpack.c.l.b16 %v3474
        %v3543 = vunpack.c.l.b16 %v3475
        %v3544 = vunpack.c.l.b16 %v3476
        %v3545 = vunpack.c.l.b16 %v3477
        %v3546 = vunpack.c.l.b16 %v3478
        %v3547 = vunpack.c.l.b16 %v3479
        %v3548 = vunpack.c.l.b16 %v3480
        %v3549 = vunpack.c.l.b16 %v3481
        %v3550 = vunpack.c.l.b16 %v3482
        %v3551 = vunpack.c.l.b16 %v3483
        %v3552 = vunpack.c.l.b16 %v3484
        %v3553 = vunpack.c.l.b16 %v3485
        %v3554 = vunpack.c.l.b16 %v3486
        %v3555 = vunpack.c.l.b16 %v3487
        %v3556 = vunpack.c.l.b16 %v3488
        %v3557 = vunpack.c.l.b16 %v3489
        %v3558 = vunpack.c.l.b16 %v3490
        %v3559 = vunpack.c.l.b16 %v3491
        %v3560 = vunpack.c.l.b16 %v3492
        %v3561 = vunpack.c.l.b16 %v3493
        %v3562 = vunpack.c.l.b16 %v3494
        %v3563 = vunpack.c.l.b16 %v3495
        %v3564 = vunpack.c.l.b16 %v3496
        %v3565 = vunpack.c.l.b16 %v3497
        %v3566 = vunpack.c.l.b16 %v3498
        %v3567 = vunpack.c.l.b16 %v3499
        %v3568 = vunpack.c.l.b16 %v3500
        %v3569 = vunpack.c.l.b16 %v3501
        %v3570 = vunpack.c.l.b16 %v3502
        %v3571 = vpack.c.b16 %v3540, %v3539
        %v3572 = vpack.c.b16 %v3542, %v3541
        %v3573 = vpack.c.b16 %v3544, %v3543
        %v3574 = vpack.c.b16 %v3546, %v3545
        %v3575 = vpack.c.b16 %v3548, %v3547
        %v3576 = vpack.c.b16 %v3550, %v3549
        %v3577 = vpack.c.b16 %v3552, %v3551
        %v3578 = vpack.c.b16 %v3554, %v3553
        %v3579 = vpack.c.b16 %v3556, %v3555
        %v3580 = vpack.c.b16 %v3558, %v3557
        %v3581 = vpack.c.b16 %v3560, %v3559
        %v3582 = vpack.c.b16 %v3562, %v3561
        %v3583 = vpack.c.b16 %v3564, %v3563
        %v3584 = vpack.c.b16 %v3566, %v3565
        %v3585 = vpack.c.b16 %v3568, %v3567
        %v3586 = vpack.c.b16 %v3570, %v3569
        %3603 = vmatpush.bf16.msra.mxu0 %v3578
        %3604 = vmatpush.bf16.msra.mxu0 %v3577
        %3605 = vmatpush.bf16.msra.mxu0 %v3576
        %3606 = vmatpush.bf16.msra.mxu0 %v3575
        %3607 = vmatpush.bf16.msra.mxu0 %v3574
        %3608 = vmatpush.bf16.msra.mxu0 %v3573
        %3609 = vmatpush.bf16.msra.mxu0 %v3572
        %3610 = vmatpush.bf16.msra.mxu0 %v3571
        %3611 = vmatmul.bf16.gmra.mxu0 %v3439
        %v3612 = vpop.f32.mrf.mxu0
        %v3613 = vadd.f32 %v3505, %v3612
        %v3614 = vpop.f32.mrf.mxu0
        %v3615 = vadd.f32 %v3505, %v3614
        %3616 = vmatmul.bf16.gmra.mxu0 %v3441
        %v3617 = vpop.f32.mrf.mxu0
        %v3618 = vadd.f32 %v3505, %v3617
        %v3619 = vpop.f32.mrf.mxu0
        %v3620 = vadd.f32 %v3505, %v3619
        %3621 = vmatmul.bf16.gmra.mxu0 %v3443
        %v3622 = vpop.f32.mrf.mxu0
        %v3623 = vadd.f32 %v3505, %v3622
        %v3624 = vpop.f32.mrf.mxu0
        %v3625 = vadd.f32 %v3505, %v3624
        %3626 = vmatmul.bf16.gmra.mxu0 %v3445
        %v3627 = vpop.f32.mrf.mxu0
        %v3628 = vadd.f32 %v3505, %v3627
        %v3629 = vpop.f32.mrf.mxu0
        %v3630 = vadd.f32 %v3505, %v3629
        %3631 = vmatmul.bf16.gmra.mxu0 %v3447
        %v3632 = vpop.f32.mrf.mxu0
        %v3633 = vadd.f32 %v3505, %v3632
        %v3634 = vpop.f32.mrf.mxu0
        %v3635 = vadd.f32 %v3505, %v3634
        %3636 = vmatmul.bf16.gmra.mxu0 %v3449
        %v3637 = vpop.f32.mrf.mxu0
        %v3638 = vadd.f32 %v3505, %v3637
        %v3639 = vpop.f32.mrf.mxu0
        %v3640 = vadd.f32 %v3505, %v3639
        %3641 = vmatmul.bf16.gmra.mxu0 %v3451
        %v3642 = vpop.f32.mrf.mxu0
        %v3643 = vadd.f32 %v3505, %v3642
        %v3644 = vpop.f32.mrf.mxu0
        %v3645 = vadd.f32 %v3505, %v3644
        %3646 = vmatmul.bf16.gmra.mxu0 %v3453
        %v3647 = vpop.f32.mrf.mxu0
        %v3648 = vadd.f32 %v3505, %v3647
        %v3649 = vpop.f32.mrf.mxu0
        %v3650 = vadd.f32 %v3505, %v3649
        %3651 = vmatmul.bf16.gmra.mxu0 %v3455
        %v3652 = vpop.f32.mrf.mxu0
        %v3653 = vadd.f32 %v3505, %v3652
        %v3654 = vpop.f32.mrf.mxu0
        %v3655 = vadd.f32 %v3505, %v3654
        %3656 = vmatmul.bf16.gmra.mxu0 %v3457
        %v3657 = vpop.f32.mrf.mxu0
        %v3658 = vadd.f32 %v3505, %v3657
        %v3659 = vpop.f32.mrf.mxu0
        %v3660 = vadd.f32 %v3505, %v3659
        %3661 = vmatmul.bf16.gmra.mxu0 %v3459
        %v3662 = vpop.f32.mrf.mxu0
        %v3663 = vadd.f32 %v3505, %v3662
        %v3664 = vpop.f32.mrf.mxu0
        %v3665 = vadd.f32 %v3505, %v3664
        %3666 = vmatmul.bf16.gmra.mxu0 %v3461
        %v3667 = vpop.f32.mrf.mxu0
        %v3668 = vadd.f32 %v3505, %v3667
        %v3669 = vpop.f32.mrf.mxu0
        %v3670 = vadd.f32 %v3505, %v3669
        %3671 = vmatmul.bf16.gmra.mxu0 %v3463
        %v3672 = vpop.f32.mrf.mxu0
        %v3673 = vadd.f32 %v3505, %v3672
        %v3674 = vpop.f32.mrf.mxu0
        %v3675 = vadd.f32 %v3505, %v3674
        %3676 = vmatmul.bf16.gmra.mxu0 %v3465
        %v3677 = vpop.f32.mrf.mxu0
        %v3678 = vadd.f32 %v3505, %v3677
        %v3679 = vpop.f32.mrf.mxu0
        %v3680 = vadd.f32 %v3505, %v3679
        %3681 = vmatmul.bf16.gmra.mxu0 %v3467
        %v3682 = vpop.f32.mrf.mxu0
        %v3683 = vadd.f32 %v3505, %v3682
        %v3684 = vpop.f32.mrf.mxu0
        %v3685 = vadd.f32 %v3505, %v3684
        %3686 = vmatmul.bf16.gmra.mxu0 %v3469
        %v3687 = vpop.f32.mrf.mxu0
        %v3688 = vadd.f32 %v3505, %v3687
        %v3689 = vpop.f32.mrf.mxu0
        %v3690 = vadd.f32 %v3505, %v3689
        %3691 = vdwg.mxu0
        %3692 = vmatpush.bf16.msra.mxu0 %v3586
        %3693 = vmatpush.bf16.msra.mxu0 %v3585
        %3694 = vmatpush.bf16.msra.mxu0 %v3584
        %3695 = vmatpush.bf16.msra.mxu0 %v3583
        %3696 = vmatpush.bf16.msra.mxu0 %v3582
        %3697 = vmatpush.bf16.msra.mxu0 %v3581
        %3698 = vmatpush.bf16.msra.mxu0 %v3580
        %3699 = vmatpush.bf16.msra.mxu0 %v3579
        %3700 = vmatmul.bf16.gmra.mxu0 %v3440
        %v3701 = vpop.f32.mrf.mxu0
        %v3702 = vadd.f32 %v3613, %v3701
        %v3703 = vpop.f32.mrf.mxu0
        %v3704 = vadd.f32 %v3615, %v3703
        %3705 = vmatmul.bf16.gmra.mxu0 %v3442
        %v3706 = vpop.f32.mrf.mxu0
        %v3707 = vadd.f32 %v3618, %v3706
        %v3708 = vpop.f32.mrf.mxu0
        %v3709 = vadd.f32 %v3620, %v3708
        %3710 = vmatmul.bf16.gmra.mxu0 %v3444
        %v3711 = vpop.f32.mrf.mxu0
        %v3712 = vadd.f32 %v3623, %v3711
        %v3713 = vpop.f32.mrf.mxu0
        %v3714 = vadd.f32 %v3625, %v3713
        %3715 = vmatmul.bf16.gmra.mxu0 %v3446
        %v3716 = vpop.f32.mrf.mxu0
        %v3717 = vadd.f32 %v3628, %v3716
        %v3718 = vpop.f32.mrf.mxu0
        %v3719 = vadd.f32 %v3630, %v3718
        %3720 = vmatmul.bf16.gmra.mxu0 %v3448
        %v3721 = vpop.f32.mrf.mxu0
        %v3722 = vadd.f32 %v3633, %v3721
        %v3723 = vpop.f32.mrf.mxu0
        %v3724 = vadd.f32 %v3635, %v3723
        %3725 = vmatmul.bf16.gmra.mxu0 %v3450
        %v3726 = vpop.f32.mrf.mxu0
        %v3727 = vadd.f32 %v3638, %v3726
        %v3728 = vpop.f32.mrf.mxu0
        %v3729 = vadd.f32 %v3640, %v3728
        %3730 = vmatmul.bf16.gmra.mxu0 %v3452
        %v3731 = vpop.f32.mrf.mxu0
        %v3732 = vadd.f32 %v3643, %v3731
        %v3733 = vpop.f32.mrf.mxu0
        %v3734 = vadd.f32 %v3645, %v3733
        %3735 = vmatmul.bf16.gmra.mxu0 %v3454
        %v3736 = vpop.f32.mrf.mxu0
        %v3737 = vadd.f32 %v3648, %v3736
        %v3738 = vpop.f32.mrf.mxu0
        %v3739 = vadd.f32 %v3650, %v3738
        %3740 = vmatmul.bf16.gmra.mxu0 %v3456
        %v3741 = vpop.f32.mrf.mxu0
        %v3742 = vadd.f32 %v3653, %v3741
        %v3743 = vpop.f32.mrf.mxu0
        %v3744 = vadd.f32 %v3655, %v3743
        %3745 = vmatmul.bf16.gmra.mxu0 %v3458
        %v3746 = vpop.f32.mrf.mxu0
        %v3747 = vadd.f32 %v3658, %v3746
        %v3748 = vpop.f32.mrf.mxu0
        %v3749 = vadd.f32 %v3660, %v3748
        %3750 = vmatmul.bf16.gmra.mxu0 %v3460
        %v3751 = vpop.f32.mrf.mxu0
        %v3752 = vadd.f32 %v3663, %v3751
        %v3753 = vpop.f32.mrf.mxu0
        %v3754 = vadd.f32 %v3665, %v3753
        %3755 = vmatmul.bf16.gmra.mxu0 %v3462
        %v3756 = vpop.f32.mrf.mxu0
        %v3757 = vadd.f32 %v3668, %v3756
        %v3758 = vpop.f32.mrf.mxu0
        %v3759 = vadd.f32 %v3670, %v3758
        %3760 = vmatmul.bf16.gmra.mxu0 %v3464
        %v3761 = vpop.f32.mrf.mxu0
        %v3762 = vadd.f32 %v3673, %v3761
        %v3763 = vpop.f32.mrf.mxu0
        %v3764 = vadd.f32 %v3675, %v3763
        %3765 = vmatmul.bf16.gmra.mxu0 %v3466
        %v3766 = vpop.f32.mrf.mxu0
        %v3767 = vadd.f32 %v3678, %v3766
        %v3768 = vpop.f32.mrf.mxu0
        %v3769 = vadd.f32 %v3680, %v3768
        %3770 = vmatmul.bf16.gmra.mxu0 %v3468
        %v3771 = vpop.f32.mrf.mxu0
        %v3772 = vadd.f32 %v3683, %v3771
        %v3773 = vpop.f32.mrf.mxu0
        %v3774 = vadd.f32 %v3685, %v3773
        %3775 = vmatmul.bf16.gmra.mxu0 %v3470
        %v3776 = vpop.f32.mrf.mxu0
        %v3777 = vadd.f32 %v3688, %v3776
        %v3778 = vpop.f32.mrf.mxu0
        %v3779 = vadd.f32 %v3690, %v3778
        %3780 = vdwg.mxu0
        %3781 = vst [vmem:[%s292] sm:$0xff] %v3702
        %3782 = vst [vmem:[%s292 + $0x8] sm:$0xff] %v3704
        %3783 = vst [vmem:[%s292 + $0x10] sm:$0xff] %v3707
        %3784 = vst [vmem:[%s292 + $0x18] sm:$0xff] %v3709
        %3785 = vst [vmem:[%s292 + $0x20] sm:$0xff] %v3712
        %3786 = vst [vmem:[%s292 + $0x28] sm:$0xff] %v3714
        %3787 = vst [vmem:[%s292 + $0x30] sm:$0xff] %v3717
        %3788 = vst [vmem:[%s292 + $0x38] sm:$0xff] %v3719
        %3789 = vst [vmem:[%s292 + $0x40] sm:$0xff] %v3722
        %3790 = vst [vmem:[%s292 + $0x48] sm:$0xff] %v3724
        %3791 = vst [vmem:[%s292 + $0x50] sm:$0xff] %v3727
        %3792 = vst [vmem:[%s292 + $0x58] sm:$0xff] %v3729
        %3793 = vst [vmem:[%s292 + $0x60] sm:$0xff] %v3732
        %3794 = vst [vmem:[%s292 + $0x68] sm:$0xff] %v3734
        %3795 = vst [vmem:[%s292 + $0x70] sm:$0xff] %v3737
        %3796 = vst [vmem:[%s292 + $0x78] sm:$0xff] %v3739
        %3797 = vst [vmem:[%s292 + $0x80] sm:$0xff] %v3742
        %3798 = vst [vmem:[%s292 + $0x88] sm:$0xff] %v3744
        %3799 = vst [vmem:[%s292 + $0x90] sm:$0xff] %v3747
        %3800 = vst [vmem:[%s292 + $0x98] sm:$0xff] %v3749
        %3801 = vst [vmem:[%s292 + $0xa0] sm:$0xff] %v3752
        %3802 = vst [vmem:[%s292 + $0xa8] sm:$0xff] %v3754
        %3803 = vst [vmem:[%s292 + $0xb0] sm:$0xff] %v3757
        %3804 = vst [vmem:[%s292 + $0xb8] sm:$0xff] %v3759
        %3805 = vst [vmem:[%s292 + $0xc0] sm:$0xff] %v3762
        %3806 = vst [vmem:[%s292 + $0xc8] sm:$0xff] %v3764
        %3807 = vst [vmem:[%s292 + $0xd0] sm:$0xff] %v3767
        %3808 = vst [vmem:[%s292 + $0xd8] sm:$0xff] %v3769
        %3809 = vst [vmem:[%s292 + $0xe0] sm:$0xff] %v3772
        %3810 = vst [vmem:[%s292 + $0xe8] sm:$0xff] %v3774
        %3811 = vst [vmem:[%s292 + $0xf0] sm:$0xff] %v3777
        %3812 = vst [vmem:[%s292 + $0xf8] sm:$0xff] %v3779
        %s3813 = sand.u32 %s142, 1
        %s3814 = scalar_lea.sflag [#allocation4], %s3813
        %s3815 = sand.u32 %s142, 1
        %s3816 = smul.addr %s3815, 256
        %s3817 = scalar_lea.vmem [#allocation10], %s3816
        // Predicated region
        $region57: #{tpu_custom_call.1} parent=39 // pred_check
          %p3818 = pneg %p152
        $region58: #{tpu_custom_call.1} parent=39 // pred_check_branch
          %3820 = sbr.rel (%p3818) target = $region60
        $region59: #{tpu_custom_call.1} parent=39 // pred_region
          %s3821 = smul.u32 32, %s24
          %3823 = vsyncadd %s3814, 0
          %s3824 = smul.addr %s3821, 8
          %s3825 = scalar_lea.hbm %s5, %s3824
          %s3826 = sshll.u32 %s3817, 4
          %s3827 = int_to_ptr.vmem [resolvable:$true] %s3826
          %s3828 = sshll.u32 %s3825, 4
          %s3829 = int_to_ptr.hbm [resolvable:$true] %s3828
          %3834 = dma.vmem_to_hbm [thread:$0]  %s3827, 4096, %s3829, %s3814, 128, 128, 8
        $region60: #{tpu_custom_call.1} parent=39 // pred_fallthru
          _
      $region40: #{tpu_custom_call.1} parent=5 // pred_fallthru
        _
      %p3835 = scmp.le.s32.totalorder 2, %s19
      // Predicated region
      $region61: #{tpu_custom_call.1} parent=5 // pred_check
        %p3836 = pneg %p3835
      $region62: #{tpu_custom_call.1} parent=5 // pred_check_branch
        %3838 = sbr.rel (%p3836) target = $region64
      $region63: #{tpu_custom_call.1} parent=5 // pred_region
        %s3839 = ssub.s32 %s19, 2
        // Predicated region
        $region65: #{tpu_custom_call.1} parent=63 // pred_check
          %p3840 = pneg %p158
        $region66: #{tpu_custom_call.1} parent=63 // pred_check_branch
          %3842 = sbr.rel (%p3840) target = $region68
        $region67: #{tpu_custom_call.1} parent=63 // pred_region
          %s3843 = sand.u32 %s143, 1
          %s3844 = scalar_lea.sflag [#allocation4], %s3843
          %s3845 = sand.u32 %s143, 1
          %s3846 = smul.addr %s3845, 256
          %s3847 = scalar_lea.vmem [#allocation10], %s3846
          %3849 = dma.done %s3844, 4096
        $region68: #{tpu_custom_call.1} parent=63 // pred_fallthru
          _
      $region64: #{tpu_custom_call.1} parent=5 // pred_fallthru
        _
    $region6: #{tpu_custom_call.1} parent=1 // loop_footer
      %s23 = sadd.s32 1, %s19
    $region7: #{tpu_custom_call.1} parent=1 // loop_footer_branch
      %18 = sbr.rel target = $region3
    $region8: #{tpu_custom_call.1} parent=1 // loop_exit
      _
    %3850 = vsyncpa [#allocation3], 1
    %s3851 = scalar_lea.sflag [#allocation3], 1
    %3852 = vsyncpa %s3851, 1
    %3853 = vsyncpa [#allocation6], 1
    %3854 = vsyncpa [#allocation9], 1
    %3855 = vsyncpa [#allocation4], 1
    %s3856 = scalar_lea.sflag [#allocation4], 1
    %3857 = vsyncpa %s3856, 1

</llo_original>
